<compile_context>
chip_gen: v5e
topology: v5e:2x2
jax: 0.10.0
libtpu: 0.0.40
codegen_flags: <defaults>
</compile_context>

<pallas_src>
import numpy as np
import jax
import jax.numpy as jnp
from jax import lax
from jax.experimental import pallas as pl
from jax.experimental.pallas import tpu as pltpu


_VMEM = pl.BlockSpec(memory_space=pltpu.MemorySpace.VMEM)

# (kernel_size, stride, padding) for the four SignalEncoder convs.
CONV_CFG = ((7, 4, 3), (5, 4, 2), (3, 2, 1), (3, 2, 1))


# ----------------------------------------------------------------------------
# The fused model kernel (built per static geometry via closure)
# ----------------------------------------------------------------------------
def _build_kernel(geom, in_pad, inv_l4):
    """geom: tuple of (k, stride, l_out, next_pad) per conv (all static)."""

    def kernel(x_ref, pers_ref,
               w1, b1, w2, b2, w3, b3, w4, b4,
               wproj, bproj, wp1, bp1, wp2, bp2,
               wr1a, wr1b, br1, wr2, br2, wr3, br3,
               o_ref,
               x1p, y1p, y2p, y3p, feat_ref):
        batch = x_ref.shape[0]
        l_in = x_ref.shape[1]

        # Zero the padded activation scratches ONCE: pad rows stay zero across
        # the unrolled batch loop; the interiors are fully rewritten each time.
        x1p[...] = jnp.zeros_like(x1p)
        y1p[...] = jnp.zeros_like(y1p)
        y2p[...] = jnp.zeros_like(y2p)
        y3p[...] = jnp.zeros_like(y3p)

        conv_src = (x1p, y1p, y2p, y3p)
        conv_dst = (y1p, y2p, y3p, None)
        conv_w = (w1, w2, w3, w4)
        conv_b = (b1, b2, b3, b4)

        for bi in range(batch):
            # Stage this sample's channel-last signal into the padded scratch.
            x1p[pl.ds(in_pad, l_in), :] = x_ref[bi]

            for ci, (k, s, l_out, next_pad) in enumerate(geom):
                src, w_kco, b_row = conv_src[ci], conv_w[ci], conv_b[ci]
                c_out = w_kco.shape[2]
                acc = jnp.zeros((l_out, c_out), jnp.float32)
                # Conv1d as a sum over k taps of strided-slice matmuls.
                for t in range(k):
                    xt = src[pl.ds(t, l_out, stride=s), :]        # (l_out, C_in)
                    acc = acc + jnp.dot(xt.astype(w_kco.dtype), w_kco[t],
                                        preferred_element_type=jnp.float32)
                y = jnp.maximum(acc + b_row[...], 0.0)            # folded-BN bias + ReLU
                if conv_dst[ci] is not None:
                    # Write into the (already zero-padded) scratch of the next conv.
                    conv_dst[ci][pl.ds(next_pad, l_out), :] = y
                else:
                    # AdaptiveAvgPool1d(1) folded into sum * (1 / L_final).
                    feat_ref[pl.ds(bi, 1), :] = (
                        jnp.sum(y, axis=0, keepdims=True) * inv_l4)

        # ---------------- fused head (batched over all rows, f32) -----------
        feat = feat_ref[...]                                       # (B, C4)
        rep = jnp.dot(feat, wproj[...],
                      preferred_element_type=jnp.float32) + bproj[...]
        # F.normalize(rep, p=2, dim=1) (eps=1e-12 on the norm -> 1e-24 on norm^2)
        nrm2 = jnp.sum(rep * rep, axis=1, keepdims=True)
        rep_n = rep * lax.rsqrt(jnp.maximum(nrm2, 1e-24))

        pf = jnp.maximum(
            jnp.dot(pers_ref[...], wp1[...],
                    preferred_element_type=jnp.float32) + bp1[...], 0.0)
        pf = jnp.maximum(
            jnp.dot(pf, wp2[...],
                    preferred_element_type=jnp.float32) + bp2[...], 0.0)

        # concat([rep_n, pf]) @ W1 expressed as a pre-split matmul.
        h = jnp.dot(rep_n, wr1a[...], preferred_element_type=jnp.float32)
        h = h + jnp.dot(pf, wr1b[...], preferred_element_type=jnp.float32)
        h = jnp.maximum(h + br1[...], 0.0)
        h = jnp.maximum(
            jnp.dot(h, wr2[...], preferred_element_type=jnp.float32) + br2[...], 0.0)
        o_ref[...] = jnp.dot(h, wr3[...],
                             preferred_element_type=jnp.float32) + br3[...]

    return kernel


def fused_forward(x_nlc, personal, packed):
    B, L, c_in = x_nlc.shape
    convs, hp = packed["convs"], packed["head"]

    # Static conv geometry derived from the input length.
    geom, l_prev = [], L
    for i, (k, s, p) in enumerate(CONV_CFG):
        l_out = (l_prev + 2 * p - k) // s + 1
        assert l_out >= 1, "signal too short for the conv stack"
        next_pad = CONV_CFG[i + 1][2] if i + 1 < len(CONV_CFG) else 0
        geom.append((k, s, l_out, next_pad))
        l_prev = l_out
    l4 = geom[-1][2]
    c_outs = [cp["w"].shape[2] for cp in convs]

    kernel = _build_kernel(tuple(geom), CONV_CFG[0][2], 1.0 / l4)

    scratch = [
        pltpu.VMEM((L + 2 * CONV_CFG[0][2], c_in), jnp.float32),             # padded input
        pltpu.VMEM((geom[0][2] + 2 * CONV_CFG[1][2], c_outs[0]), jnp.float32),
        pltpu.VMEM((geom[1][2] + 2 * CONV_CFG[2][2], c_outs[1]), jnp.float32),
        pltpu.VMEM((geom[2][2] + 2 * CONV_CFG[3][2], c_outs[2]), jnp.float32),
        pltpu.VMEM((B, c_outs[3]), jnp.float32),                              # pooled feats
    ]

    args = (x_nlc, personal,
            convs[0]["w"], convs[0]["b"], convs[1]["w"], convs[1]["b"],
            convs[2]["w"], convs[2]["b"], convs[3]["w"], convs[3]["b"],
            hp["wproj"], hp["bproj"], hp["wp1"], hp["bp1"], hp["wp2"], hp["bp2"],
            hp["wr1a"], hp["wr1b"], hp["br1"], hp["wr2"], hp["br2"],
            hp["wr3"], hp["br3"])

    return pl.pallas_call(
        kernel,
        out_shape=jax.ShapeDtypeStruct((B, hp["wr3"].shape[1]), jnp.float32),
        in_specs=[_VMEM] * len(args),
        out_specs=_VMEM,
        scratch_shapes=scratch,
    )(*args)


@jax.jit
def end2end_forward(packed, signal_ncw, personal_info):
    # signal_ncw: PyTorch NCW (B, C_in, L) -> channel-last (B, L, C_in).
    # (Single tiny XLA glue op; padding/everything else happens in-kernel.)
    x = jnp.transpose(signal_ncw, (0, 2, 1)).astype(jnp.float32)
    return fused_forward(x, personal_info.astype(jnp.float32), packed)


# ----------------------------------------------------------------------------
# Deterministic parameter init (PyTorch-style uniform fan-in bounds)
# ----------------------------------------------------------------------------
def init_params(key, signal_in_channels=2, personal_input_dim=4,
                base_channels=32, rep_dim=128):
    def dense(k, fan_in, fan_out):
        k1, k2 = jax.random.split(k)
        bound = 1.0 / (fan_in ** 0.5)
        w = jax.random.uniform(k1, (fan_in, fan_out), jnp.float32, -bound, bound)
        b = jax.random.uniform(k2, (fan_out,), jnp.float32, -bound, bound)
        return w, b

    def conv(k, c_out, c_in, ks):
        k1, k2 = jax.random.split(k)
        bound = 1.0 / ((c_in * ks) ** 0.5)
        w = jax.random.uniform(k1, (c_out, c_in, ks), jnp.float32, -bound, bound)
        b = jax.random.uniform(k2, (c_out,), jnp.float32, -bound, bound)
        return w, b

    def bn(c):
        return (jnp.ones((c,), jnp.float32), jnp.zeros((c,), jnp.float32),
                jnp.zeros((c,), jnp.float32), jnp.ones((c,), jnp.float32), 1e-5)

    keys = jax.random.split(key, 10)
    bc = base_channels
    return {
        "conv1": conv(keys[0], bc, signal_in_channels, 7) + (bn(bc),),
        "conv2": conv(keys[1], bc * 2, bc, 5) + (bn(bc * 2),),
        "conv3": conv(keys[2], bc * 4, bc * 2, 3) + (bn(bc * 4),),
        "conv4": conv(keys[3], bc * 8, bc * 4, 3) + (bn(bc * 8),),
        "proj": dense(keys[4], bc * 8, rep_dim),
        "pfc1": dense(keys[5], personal_input_dim, 32),
        "pfc2": dense(keys[6], 32, 32),
        "reg1": dense(keys[7], rep_dim + 32, 128),
        "reg2": dense(keys[8], 128, 64),
        "reg3": dense(keys[9], 64, 2),
    }


# ----------------------------------------------------------------------------
# One-time parameter packing (eager, outside the jitted forward):
#   - fold eval-mode BatchNorm into conv weight/bias
#   - store conv weights per-tap as (K, C_in, C_out) in bf16 (MXU path)
#   - pre-split reg1 into rep/personal halves, biases as (1, N) rows (f32 head)
# ----------------------------------------------------------------------------
def pack_params(params, conv_dtype=jnp.bfloat16):
    # TODO(synk): BatchNorm1d is folded in eval mode only (running statistics);
    # PyTorch train-mode batch statistics are not reproduced.
    def fold_conv(w, b, bn):
        gamma, beta, mean, var, eps = bn
        scale = gamma / jnp.sqrt(var + eps)
        # (C_out, C_in, K) -> per-tap (K, C_in, C_out) matmul layout, BN folded.
        wk = jnp.transpose(w, (2, 1, 0)) * scale[None, None, :]
        bias = (b - mean) * scale + beta
        return {"w": wk.astype(conv_dtype),
                "b": bias.reshape(1, -1).astype(jnp.float32)}

    packed = {"convs": [fold_conv(*params[f"conv{i}"]) for i in range(1, 5)]}

    wproj, bproj = params["proj"]
    wp1, bp1 = params["pfc1"]
    wp2, bp2 = params["pfc2"]
    wr1, br1 = params["reg1"]
    wr2, br2 = params["reg2"]
    wr3, br3 = params["reg3"]
    rep_dim = wproj.shape[1]
    f32 = jnp.float32
    packed["head"] = {
        "wproj": wproj.astype(f32), "bproj": bproj.reshape(1, -1).astype(f32),
        "wp1": wp1.astype(f32), "bp1": bp1.reshape(1, -1).astype(f32),
        "wp2": wp2.astype(f32), "bp2": bp2.reshape(1, -1).astype(f32),
        "wr1a": wr1[:rep_dim].astype(f32), "wr1b": wr1[rep_dim:].astype(f32),
        "br1": br1.reshape(1, -1).astype(f32),
        "wr2": wr2.astype(f32), "br2": br2.reshape(1, -1).astype(f32),
        "wr3": wr3.astype(f32), "br3": br3.reshape(1, -1).astype(f32),
    }
    return packed


# ----------------------------------------------------------------------------
# Pure-JAX reference (PyTorch semantics, eval-mode BN) for a parity check.
# Conv weights are rounded through `conv_dtype` to mirror kernel storage.
# ----------------------------------------------------------------------------
def reference_forward(params, signal, personal, conv_dtype=jnp.bfloat16):
    x = signal.astype(jnp.float32)
    for i, (k, s, p) in enumerate(CONV_CFG):
        w, b, (gamma, beta, mean, var, eps) = params[f"conv{i + 1}"]
        w = w.astype(conv_dtype).astype(jnp.float32)
        x = lax.conv_general_dilated(x, w, window_strides=(s,), padding=[(p, p)],
                                     dimension_numbers=("NCH", "OIH", "NCH"))
        x = x + b[None, :, None]
        scale = gamma / jnp.sqrt(var + eps)
        x = (x - mean[None, :, None]) * scale[None, :, None] + beta[None, :, None]
        x = jnp.maximum(x, 0.0)
    feat = jnp.mean(x, axis=2)                                   # AdaptiveAvgPool1d(1)
    wproj, bproj = params["proj"]
    rep = feat @ wproj + bproj
    rep = rep / jnp.maximum(jnp.linalg.norm(rep, axis=1, keepdims=True), 1e-12)
    wp1, bp1 = params["pfc1"]
    wp2, bp2 = params["pfc2"]
    pf = jnp.maximum(personal @ wp1 + bp1, 0.0)
    pf = jnp.maximum(pf @ wp2 + bp2, 0.0)
    comb = jnp.concatenate([rep, pf], axis=1)
    w1, b1 = params["reg1"]
    w2, b2 = params["reg2"]
    w3, b3 = params["reg3"]
    h = jnp.maximum(comb @ w1 + b1, 0.0)
    h = jnp.maximum(h @ w2 + b2, 0.0)
    return h @ w3 + b3


if __name__ == "__main__":
    key = jax.random.PRNGKey(0)
    k_params, k_sig, k_per = jax.random.split(key, 3)

    B, C_IN, L = 2, 2, 256   # L=256 downsamples 4*4*2*2 = 64x -> final length 4
    params = init_params(k_params, signal_in_channels=C_IN)
    packed = pack_params(params)       # one-time weight packing, outside jit

    signal = jax.random.normal(k_sig, (B, C_IN, L), jnp.float32)        # NCW
    personal_info = jax.random.normal(k_per, (B, 4), jnp.float32)

    pred = end2end_forward(packed, signal, personal_info)
    jax.block_until_ready(pred)
    assert pred.shape == (B, 2) and pred.dtype == jnp.float32

    ref = reference_forward(params, signal, personal_info)
    np.testing.assert_allclose(np.asarray(pred), np.asarray(ref),
                               rtol=1e-2, atol=1e-2)
    print("KERNEL_OK")
</pallas_src>

<mosaic_0001>
module attributes {stable_mosaic.version = 11 : i64} {
  func.func @kernel(%arg0: memref<2x256x2xf32, #tpu.memory_space<vmem>>, %arg1: memref<2x4xf32, #tpu.memory_space<vmem>>, %arg2: memref<7x2x32xbf16, #tpu.memory_space<vmem>>, %arg3: memref<1x32xf32, #tpu.memory_space<vmem>>, %arg4: memref<5x32x64xbf16, #tpu.memory_space<vmem>>, %arg5: memref<1x64xf32, #tpu.memory_space<vmem>>, %arg6: memref<3x64x128xbf16, #tpu.memory_space<vmem>>, %arg7: memref<1x128xf32, #tpu.memory_space<vmem>>, %arg8: memref<3x128x256xbf16, #tpu.memory_space<vmem>>, %arg9: memref<1x256xf32, #tpu.memory_space<vmem>>, %arg10: memref<256x128xf32, #tpu.memory_space<vmem>>, %arg11: memref<1x128xf32, #tpu.memory_space<vmem>>, %arg12: memref<4x32xf32, #tpu.memory_space<vmem>>, %arg13: memref<1x32xf32, #tpu.memory_space<vmem>>, %arg14: memref<32x32xf32, #tpu.memory_space<vmem>>, %arg15: memref<1x32xf32, #tpu.memory_space<vmem>>, %arg16: memref<128x128xf32, #tpu.memory_space<vmem>>, %arg17: memref<32x128xf32, #tpu.memory_space<vmem>>, %arg18: memref<1x128xf32, #tpu.memory_space<vmem>>, %arg19: memref<128x64xf32, #tpu.memory_space<vmem>>, %arg20: memref<1x64xf32, #tpu.memory_space<vmem>>, %arg21: memref<64x2xf32, #tpu.memory_space<vmem>>, %arg22: memref<1x2xf32, #tpu.memory_space<vmem>>, %arg23: memref<2x2xf32, #tpu.memory_space<vmem>>, %arg24: memref<262x2xf32, #tpu.memory_space<vmem>>, %arg25: memref<68x32xf32, #tpu.memory_space<vmem>>, %arg26: memref<18x64xf32, #tpu.memory_space<vmem>>, %arg27: memref<10x128xf32, #tpu.memory_space<vmem>>, %arg28: memref<2x256xf32, #tpu.memory_space<vmem>>) attributes {dimension_semantics = [], scalar_prefetch = 0 : i64, scratch_operands = 5 : i64, tpu.core_type = #tpu.core_type<tc>} {
    %cst = arith.constant 0.000000e+00 : f32
    %0 = vector.broadcast %cst : f32 to vector<262x2xf32>
    %c0 = arith.constant 0 : index
    %c0_0 = arith.constant 0 : index
    %1 = vector.load %arg24[%c0, %c0_0] : memref<262x2xf32, #tpu.memory_space<vmem>>, vector<262x2xf32>
    tpu.vector_store %arg24[%c0, %c0_0], %0 {strides = array<i32>} : memref<262x2xf32, #tpu.memory_space<vmem>>, vector<262x2xf32>,
    %cst_1 = arith.constant 0.000000e+00 : f32
    %2 = vector.broadcast %cst_1 : f32 to vector<68x32xf32>
    %c0_2 = arith.constant 0 : index
    %c0_3 = arith.constant 0 : index
    %3 = vector.load %arg25[%c0_2, %c0_3] : memref<68x32xf32, #tpu.memory_space<vmem>>, vector<68x32xf32>
    tpu.vector_store %arg25[%c0_2, %c0_3], %2 {strides = array<i32>} : memref<68x32xf32, #tpu.memory_space<vmem>>, vector<68x32xf32>,
    %cst_4 = arith.constant 0.000000e+00 : f32
    %4 = vector.broadcast %cst_4 : f32 to vector<18x64xf32>
    %c0_5 = arith.constant 0 : index
    %c0_6 = arith.constant 0 : index
    %5 = vector.load %arg26[%c0_5, %c0_6] : memref<18x64xf32, #tpu.memory_space<vmem>>, vector<18x64xf32>
    tpu.vector_store %arg26[%c0_5, %c0_6], %4 {strides = array<i32>} : memref<18x64xf32, #tpu.memory_space<vmem>>, vector<18x64xf32>,
    %cst_7 = arith.constant 0.000000e+00 : f32
    %6 = vector.broadcast %cst_7 : f32 to vector<10x128xf32>
    %c0_8 = arith.constant 0 : index
    %c0_9 = arith.constant 0 : index
    %7 = vector.load %arg27[%c0_8, %c0_9] : memref<10x128xf32, #tpu.memory_space<vmem>>, vector<10x128xf32>
    tpu.vector_store %arg27[%c0_8, %c0_9], %6 {strides = array<i32>} : memref<10x128xf32, #tpu.memory_space<vmem>>, vector<10x128xf32>,
    %c0_10 = arith.constant 0 : index
    %c0_11 = arith.constant 0 : index
    %c0_12 = arith.constant 0 : index
    %8 = vector.load %arg0[%c0_10, %c0_11, %c0_12] : memref<2x256x2xf32, #tpu.memory_space<vmem>>, vector<1x256x2xf32>
    %9 = vector.shape_cast %8 : vector<1x256x2xf32> to vector<256x2xf32>
    %c3 = arith.constant 3 : index
    %c0_13 = arith.constant 0 : index
    %10 = vector.load %arg24[%c3, %c0_13] : memref<262x2xf32, #tpu.memory_space<vmem>>, vector<256x2xf32>
    tpu.vector_store %arg24[%c3, %c0_13], %9 {strides = array<i32>} : memref<262x2xf32, #tpu.memory_space<vmem>>, vector<256x2xf32>,
    %cst_14 = arith.constant 0.000000e+00 : f32
    %11 = vector.broadcast %cst_14 : f32 to vector<64x32xf32>
    %c0_15 = arith.constant 0 : index
    %c0_16 = arith.constant 0 : index
    %12 = tpu.strided_load %arg24[%c0_15, %c0_16] {strides = array<i32: 4, 1>} : memref<262x2xf32, #tpu.memory_space<vmem>>, vector<64x2xf32>
    %13 = arith.truncf %12 : vector<64x2xf32> to vector<64x2xbf16>
    %c0_17 = arith.constant 0 : index
    %c0_18 = arith.constant 0 : index
    %c0_19 = arith.constant 0 : index
    %14 = vector.load %arg2[%c0_17, %c0_18, %c0_19] : memref<7x2x32xbf16, #tpu.memory_space<vmem>>, vector<1x2x32xbf16>
    %15 = vector.shape_cast %14 : vector<1x2x32xbf16> to vector<2x32xbf16>
    %cst_20 = arith.constant dense<0.000000e+00> : vector<64x32xf32>
    %16 = tpu.matmul %13, %15, %cst_20 {dimension_numbers = #tpu.dot_dimension_numbers<[1], [0], [0], [1], [0, 0, 1, 1], [], []>} : vector<64x2xbf16>, vector<2x32xbf16>, vector<64x32xf32> -> vector<64x32xf32>
    %17 = arith.addf %11, %16 : vector<64x32xf32>
    %c1 = arith.constant 1 : index
    %c0_21 = arith.constant 0 : index
    %18 = tpu.strided_load %arg24[%c1, %c0_21] {strides = array<i32: 4, 1>} : memref<262x2xf32, #tpu.memory_space<vmem>>, vector<64x2xf32>
    %19 = arith.truncf %18 : vector<64x2xf32> to vector<64x2xbf16>
    %c1_22 = arith.constant 1 : index
    %c0_23 = arith.constant 0 : index
    %c0_24 = arith.constant 0 : index
    %20 = vector.load %arg2[%c1_22, %c0_23, %c0_24] : memref<7x2x32xbf16, #tpu.memory_space<vmem>>, vector<1x2x32xbf16>
    %21 = vector.shape_cast %20 : vector<1x2x32xbf16> to vector<2x32xbf16>
    %cst_25 = arith.constant dense<0.000000e+00> : vector<64x32xf32>
    %22 = tpu.matmul %19, %21, %cst_25 {dimension_numbers = #tpu.dot_dimension_numbers<[1], [0], [0], [1], [0, 0, 1, 1], [], []>} : vector<64x2xbf16>, vector<2x32xbf16>, vector<64x32xf32> -> vector<64x32xf32>
    %23 = arith.addf %17, %22 : vector<64x32xf32>
    %c2 = arith.constant 2 : index
    %c0_26 = arith.constant 0 : index
    %24 = tpu.strided_load %arg24[%c2, %c0_26] {strides = array<i32: 4, 1>} : memref<262x2xf32, #tpu.memory_space<vmem>>, vector<64x2xf32>
    %25 = arith.truncf %24 : vector<64x2xf32> to vector<64x2xbf16>
    %c2_27 = arith.constant 2 : index
    %c0_28 = arith.constant 0 : index
    %c0_29 = arith.constant 0 : index
    %26 = vector.load %arg2[%c2_27, %c0_28, %c0_29] : memref<7x2x32xbf16, #tpu.memory_space<vmem>>, vector<1x2x32xbf16>
    %27 = vector.shape_cast %26 : vector<1x2x32xbf16> to vector<2x32xbf16>
    %cst_30 = arith.constant dense<0.000000e+00> : vector<64x32xf32>
    %28 = tpu.matmul %25, %27, %cst_30 {dimension_numbers = #tpu.dot_dimension_numbers<[1], [0], [0], [1], [0, 0, 1, 1], [], []>} : vector<64x2xbf16>, vector<2x32xbf16>, vector<64x32xf32> -> vector<64x32xf32>
    %29 = arith.addf %23, %28 : vector<64x32xf32>
    %c3_31 = arith.constant 3 : index
    %c0_32 = arith.constant 0 : index
    %30 = tpu.strided_load %arg24[%c3_31, %c0_32] {strides = array<i32: 4, 1>} : memref<262x2xf32, #tpu.memory_space<vmem>>, vector<64x2xf32>
    %31 = arith.truncf %30 : vector<64x2xf32> to vector<64x2xbf16>
    %c3_33 = arith.constant 3 : index
    %c0_34 = arith.constant 0 : index
    %c0_35 = arith.constant 0 : index
    %32 = vector.load %arg2[%c3_33, %c0_34, %c0_35] : memref<7x2x32xbf16, #tpu.memory_space<vmem>>, vector<1x2x32xbf16>
    %33 = vector.shape_cast %32 : vector<1x2x32xbf16> to vector<2x32xbf16>
    %cst_36 = arith.constant dense<0.000000e+00> : vector<64x32xf32>
    %34 = tpu.matmul %31, %33, %cst_36 {dimension_numbers = #tpu.dot_dimension_numbers<[1], [0], [0], [1], [0, 0, 1, 1], [], []>} : vector<64x2xbf16>, vector<2x32xbf16>, vector<64x32xf32> -> vector<64x32xf32>
    %35 = arith.addf %29, %34 : vector<64x32xf32>
    %c4 = arith.constant 4 : index
    %c0_37 = arith.constant 0 : index
    %36 = tpu.strided_load %arg24[%c4, %c0_37] {strides = array<i32: 4, 1>} : memref<262x2xf32, #tpu.memory_space<vmem>>, vector<64x2xf32>
    %37 = arith.truncf %36 : vector<64x2xf32> to vector<64x2xbf16>
    %c4_38 = arith.constant 4 : index
    %c0_39 = arith.constant 0 : index
    %c0_40 = arith.constant 0 : index
    %38 = vector.load %arg2[%c4_38, %c0_39, %c0_40] : memref<7x2x32xbf16, #tpu.memory_space<vmem>>, vector<1x2x32xbf16>
    %39 = vector.shape_cast %38 : vector<1x2x32xbf16> to vector<2x32xbf16>
    %cst_41 = arith.constant dense<0.000000e+00> : vector<64x32xf32>
    %40 = tpu.matmul %37, %39, %cst_41 {dimension_numbers = #tpu.dot_dimension_numbers<[1], [0], [0], [1], [0, 0, 1, 1], [], []>} : vector<64x2xbf16>, vector<2x32xbf16>, vector<64x32xf32> -> vector<64x32xf32>
    %41 = arith.addf %35, %40 : vector<64x32xf32>
    %c5 = arith.constant 5 : index
    %c0_42 = arith.constant 0 : index
    %42 = tpu.strided_load %arg24[%c5, %c0_42] {strides = array<i32: 4, 1>} : memref<262x2xf32, #tpu.memory_space<vmem>>, vector<64x2xf32>
    %43 = arith.truncf %42 : vector<64x2xf32> to vector<64x2xbf16>
    %c5_43 = arith.constant 5 : index
    %c0_44 = arith.constant 0 : index
    %c0_45 = arith.constant 0 : index
    %44 = vector.load %arg2[%c5_43, %c0_44, %c0_45] : memref<7x2x32xbf16, #tpu.memory_space<vmem>>, vector<1x2x32xbf16>
    %45 = vector.shape_cast %44 : vector<1x2x32xbf16> to vector<2x32xbf16>
    %cst_46 = arith.constant dense<0.000000e+00> : vector<64x32xf32>
    %46 = tpu.matmul %43, %45, %cst_46 {dimension_numbers = #tpu.dot_dimension_numbers<[1], [0], [0], [1], [0, 0, 1, 1], [], []>} : vector<64x2xbf16>, vector<2x32xbf16>, vector<64x32xf32> -> vector<64x32xf32>
    %47 = arith.addf %41, %46 : vector<64x32xf32>
    %c6 = arith.constant 6 : index
    %c0_47 = arith.constant 0 : index
    %48 = tpu.strided_load %arg24[%c6, %c0_47] {strides = array<i32: 4, 1>} : memref<262x2xf32, #tpu.memory_space<vmem>>, vector<64x2xf32>
    %49 = arith.truncf %48 : vector<64x2xf32> to vector<64x2xbf16>
    %c6_48 = arith.constant 6 : index
    %c0_49 = arith.constant 0 : index
    %c0_50 = arith.constant 0 : index
    %50 = vector.load %arg2[%c6_48, %c0_49, %c0_50] : memref<7x2x32xbf16, #tpu.memory_space<vmem>>, vector<1x2x32xbf16>
    %51 = vector.shape_cast %50 : vector<1x2x32xbf16> to vector<2x32xbf16>
    %cst_51 = arith.constant dense<0.000000e+00> : vector<64x32xf32>
    %52 = tpu.matmul %49, %51, %cst_51 {dimension_numbers = #tpu.dot_dimension_numbers<[1], [0], [0], [1], [0, 0, 1, 1], [], []>} : vector<64x2xbf16>, vector<2x32xbf16>, vector<64x32xf32> -> vector<64x32xf32>
    %53 = arith.addf %47, %52 : vector<64x32xf32>
    %c0_52 = arith.constant 0 : index
    %c0_53 = arith.constant 0 : index
    %54 = vector.load %arg3[%c0_52, %c0_53] : memref<1x32xf32, #tpu.memory_space<vmem>>, vector<1x32xf32>
    %55 = vector.broadcast %54 : vector<1x32xf32> to vector<64x32xf32>
    %56 = arith.addf %53, %55 : vector<64x32xf32>
    %cst_54 = arith.constant 0.000000e+00 : f32
    %57 = vector.broadcast %cst_54 : f32 to vector<64x32xf32>
    %58 = arith.maximumf %56, %57 : vector<64x32xf32>
    %c2_55 = arith.constant 2 : index
    %c0_56 = arith.constant 0 : index
    %59 = vector.load %arg25[%c2_55, %c0_56] : memref<68x32xf32, #tpu.memory_space<vmem>>, vector<64x32xf32>
    tpu.vector_store %arg25[%c2_55, %c0_56], %58 {strides = array<i32>} : memref<68x32xf32, #tpu.memory_space<vmem>>, vector<64x32xf32>,
    %cst_57 = arith.constant 0.000000e+00 : f32
    %60 = vector.broadcast %cst_57 : f32 to vector<16x64xf32>
    %c0_58 = arith.constant 0 : index
    %c0_59 = arith.constant 0 : index
    %61 = tpu.strided_load %arg25[%c0_58, %c0_59] {strides = array<i32: 4, 1>} : memref<68x32xf32, #tpu.memory_space<vmem>>, vector<16x32xf32>
    %62 = arith.truncf %61 : vector<16x32xf32> to vector<16x32xbf16>
    %c0_60 = arith.constant 0 : index
    %c0_61 = arith.constant 0 : index
    %c0_62 = arith.constant 0 : index
    %63 = vector.load %arg4[%c0_60, %c0_61, %c0_62] : memref<5x32x64xbf16, #tpu.memory_space<vmem>>, vector<1x32x64xbf16>
    %64 = vector.shape_cast %63 : vector<1x32x64xbf16> to vector<32x64xbf16>
    %cst_63 = arith.constant dense<0.000000e+00> : vector<16x64xf32>
    %65 = tpu.matmul %62, %64, %cst_63 {dimension_numbers = #tpu.dot_dimension_numbers<[1], [0], [0], [1], [0, 0, 1, 1], [], []>} : vector<16x32xbf16>, vector<32x64xbf16>, vector<16x64xf32> -> vector<16x64xf32>
    %66 = arith.addf %60, %65 : vector<16x64xf32>
    %c1_64 = arith.constant 1 : index
    %c0_65 = arith.constant 0 : index
    %67 = tpu.strided_load %arg25[%c1_64, %c0_65] {strides = array<i32: 4, 1>} : memref<68x32xf32, #tpu.memory_space<vmem>>, vector<16x32xf32>
    %68 = arith.truncf %67 : vector<16x32xf32> to vector<16x32xbf16>
    %c1_66 = arith.constant 1 : index
    %c0_67 = arith.constant 0 : index
    %c0_68 = arith.constant 0 : index
    %69 = vector.load %arg4[%c1_66, %c0_67, %c0_68] : memref<5x32x64xbf16, #tpu.memory_space<vmem>>, vector<1x32x64xbf16>
    %70 = vector.shape_cast %69 : vector<1x32x64xbf16> to vector<32x64xbf16>
    %cst_69 = arith.constant dense<0.000000e+00> : vector<16x64xf32>
    %71 = tpu.matmul %68, %70, %cst_69 {dimension_numbers = #tpu.dot_dimension_numbers<[1], [0], [0], [1], [0, 0, 1, 1], [], []>} : vector<16x32xbf16>, vector<32x64xbf16>, vector<16x64xf32> -> vector<16x64xf32>
    %72 = arith.addf %66, %71 : vector<16x64xf32>
    %c2_70 = arith.constant 2 : index
    %c0_71 = arith.constant 0 : index
    %73 = tpu.strided_load %arg25[%c2_70, %c0_71] {strides = array<i32: 4, 1>} : memref<68x32xf32, #tpu.memory_space<vmem>>, vector<16x32xf32>
    %74 = arith.truncf %73 : vector<16x32xf32> to vector<16x32xbf16>
    %c2_72 = arith.constant 2 : index
    %c0_73 = arith.constant 0 : index
    %c0_74 = arith.constant 0 : index
    %75 = vector.load %arg4[%c2_72, %c0_73, %c0_74] : memref<5x32x64xbf16, #tpu.memory_space<vmem>>, vector<1x32x64xbf16>
    %76 = vector.shape_cast %75 : vector<1x32x64xbf16> to vector<32x64xbf16>
    %cst_75 = arith.constant dense<0.000000e+00> : vector<16x64xf32>
    %77 = tpu.matmul %74, %76, %cst_75 {dimension_numbers = #tpu.dot_dimension_numbers<[1], [0], [0], [1], [0, 0, 1, 1], [], []>} : vector<16x32xbf16>, vector<32x64xbf16>, vector<16x64xf32> -> vector<16x64xf32>
    %78 = arith.addf %72, %77 : vector<16x64xf32>
    %c3_76 = arith.constant 3 : index
    %c0_77 = arith.constant 0 : index
    %79 = tpu.strided_load %arg25[%c3_76, %c0_77] {strides = array<i32: 4, 1>} : memref<68x32xf32, #tpu.memory_space<vmem>>, vector<16x32xf32>
    %80 = arith.truncf %79 : vector<16x32xf32> to vector<16x32xbf16>
    %c3_78 = arith.constant 3 : index
    %c0_79 = arith.constant 0 : index
    %c0_80 = arith.constant 0 : index
    %81 = vector.load %arg4[%c3_78, %c0_79, %c0_80] : memref<5x32x64xbf16, #tpu.memory_space<vmem>>, vector<1x32x64xbf16>
    %82 = vector.shape_cast %81 : vector<1x32x64xbf16> to vector<32x64xbf16>
    %cst_81 = arith.constant dense<0.000000e+00> : vector<16x64xf32>
    %83 = tpu.matmul %80, %82, %cst_81 {dimension_numbers = #tpu.dot_dimension_numbers<[1], [0], [0], [1], [0, 0, 1, 1], [], []>} : vector<16x32xbf16>, vector<32x64xbf16>, vector<16x64xf32> -> vector<16x64xf32>
    %84 = arith.addf %78, %83 : vector<16x64xf32>
    %c4_82 = arith.constant 4 : index
    %c0_83 = arith.constant 0 : index
    %85 = tpu.strided_load %arg25[%c4_82, %c0_83] {strides = array<i32: 4, 1>} : memref<68x32xf32, #tpu.memory_space<vmem>>, vector<16x32xf32>
    %86 = arith.truncf %85 : vector<16x32xf32> to vector<16x32xbf16>
    %c4_84 = arith.constant 4 : index
    %c0_85 = arith.constant 0 : index
    %c0_86 = arith.constant 0 : index
    %87 = vector.load %arg4[%c4_84, %c0_85, %c0_86] : memref<5x32x64xbf16, #tpu.memory_space<vmem>>, vector<1x32x64xbf16>
    %88 = vector.shape_cast %87 : vector<1x32x64xbf16> to vector<32x64xbf16>
    %cst_87 = arith.constant dense<0.000000e+00> : vector<16x64xf32>
    %89 = tpu.matmul %86, %88, %cst_87 {dimension_numbers = #tpu.dot_dimension_numbers<[1], [0], [0], [1], [0, 0, 1, 1], [], []>} : vector<16x32xbf16>, vector<32x64xbf16>, vector<16x64xf32> -> vector<16x64xf32>
    %90 = arith.addf %84, %89 : vector<16x64xf32>
    %c0_88 = arith.constant 0 : index
    %c0_89 = arith.constant 0 : index
    %91 = vector.load %arg5[%c0_88, %c0_89] : memref<1x64xf32, #tpu.memory_space<vmem>>, vector<1x64xf32>
    %92 = vector.broadcast %91 : vector<1x64xf32> to vector<16x64xf32>
    %93 = arith.addf %90, %92 : vector<16x64xf32>
    %cst_90 = arith.constant 0.000000e+00 : f32
    %94 = vector.broadcast %cst_90 : f32 to vector<16x64xf32>
    %95 = arith.maximumf %93, %94 : vector<16x64xf32>
    %c1_91 = arith.constant 1 : index
    %c0_92 = arith.constant 0 : index
    %96 = vector.load %arg26[%c1_91, %c0_92] : memref<18x64xf32, #tpu.memory_space<vmem>>, vector<16x64xf32>
    tpu.vector_store %arg26[%c1_91, %c0_92], %95 {strides = array<i32>} : memref<18x64xf32, #tpu.memory_space<vmem>>, vector<16x64xf32>,
    %cst_93 = arith.constant 0.000000e+00 : f32
    %97 = vector.broadcast %cst_93 : f32 to vector<8x128xf32>
    %c0_94 = arith.constant 0 : index
    %c0_95 = arith.constant 0 : index
    %98 = tpu.strided_load %arg26[%c0_94, %c0_95] {strides = array<i32: 2, 1>} : memref<18x64xf32, #tpu.memory_space<vmem>>, vector<8x64xf32>
    %99 = arith.truncf %98 : vector<8x64xf32> to vector<8x64xbf16>
    %c0_96 = arith.constant 0 : index
    %c0_97 = arith.constant 0 : index
    %c0_98 = arith.constant 0 : index
    %100 = vector.load %arg6[%c0_96, %c0_97, %c0_98] : memref<3x64x128xbf16, #tpu.memory_space<vmem>>, vector<1x64x128xbf16>
    %101 = vector.shape_cast %100 : vector<1x64x128xbf16> to vector<64x128xbf16>
    %cst_99 = arith.constant dense<0.000000e+00> : vector<8x128xf32>
    %102 = tpu.matmul %99, %101, %cst_99 {dimension_numbers = #tpu.dot_dimension_numbers<[1], [0], [0], [1], [0, 0, 1, 1], [], []>} : vector<8x64xbf16>, vector<64x128xbf16>, vector<8x128xf32> -> vector<8x128xf32>
    %103 = arith.addf %97, %102 : vector<8x128xf32>
    %c1_100 = arith.constant 1 : index
    %c0_101 = arith.constant 0 : index
    %104 = tpu.strided_load %arg26[%c1_100, %c0_101] {strides = array<i32: 2, 1>} : memref<18x64xf32, #tpu.memory_space<vmem>>, vector<8x64xf32>
    %105 = arith.truncf %104 : vector<8x64xf32> to vector<8x64xbf16>
    %c1_102 = arith.constant 1 : index
    %c0_103 = arith.constant 0 : index
    %c0_104 = arith.constant 0 : index
    %106 = vector.load %arg6[%c1_102, %c0_103, %c0_104] : memref<3x64x128xbf16, #tpu.memory_space<vmem>>, vector<1x64x128xbf16>
    %107 = vector.shape_cast %106 : vector<1x64x128xbf16> to vector<64x128xbf16>
    %cst_105 = arith.constant dense<0.000000e+00> : vector<8x128xf32>
    %108 = tpu.matmul %105, %107, %cst_105 {dimension_numbers = #tpu.dot_dimension_numbers<[1], [0], [0], [1], [0, 0, 1, 1], [], []>} : vector<8x64xbf16>, vector<64x128xbf16>, vector<8x128xf32> -> vector<8x128xf32>
    %109 = arith.addf %103, %108 : vector<8x128xf32>
    %c2_106 = arith.constant 2 : index
    %c0_107 = arith.constant 0 : index
    %110 = tpu.strided_load %arg26[%c2_106, %c0_107] {strides = array<i32: 2, 1>} : memref<18x64xf32, #tpu.memory_space<vmem>>, vector<8x64xf32>
    %111 = arith.truncf %110 : vector<8x64xf32> to vector<8x64xbf16>
    %c2_108 = arith.constant 2 : index
    %c0_109 = arith.constant 0 : index
    %c0_110 = arith.constant 0 : index
    %112 = vector.load %arg6[%c2_108, %c0_109, %c0_110] : memref<3x64x128xbf16, #tpu.memory_space<vmem>>, vector<1x64x128xbf16>
    %113 = vector.shape_cast %112 : vector<1x64x128xbf16> to vector<64x128xbf16>
    %cst_111 = arith.constant dense<0.000000e+00> : vector<8x128xf32>
    %114 = tpu.matmul %111, %113, %cst_111 {dimension_numbers = #tpu.dot_dimension_numbers<[1], [0], [0], [1], [0, 0, 1, 1], [], []>} : vector<8x64xbf16>, vector<64x128xbf16>, vector<8x128xf32> -> vector<8x128xf32>
    %115 = arith.addf %109, %114 : vector<8x128xf32>
    %c0_112 = arith.constant 0 : index
    %c0_113 = arith.constant 0 : index
    %116 = vector.load %arg7[%c0_112, %c0_113] : memref<1x128xf32, #tpu.memory_space<vmem>>, vector<1x128xf32>
    %117 = vector.broadcast %116 : vector<1x128xf32> to vector<8x128xf32>
    %118 = arith.addf %115, %117 : vector<8x128xf32>
    %cst_114 = arith.constant 0.000000e+00 : f32
    %119 = vector.broadcast %cst_114 : f32 to vector<8x128xf32>
    %120 = arith.maximumf %118, %119 : vector<8x128xf32>
    %c1_115 = arith.constant 1 : index
    %c0_116 = arith.constant 0 : index
    %121 = vector.load %arg27[%c1_115, %c0_116] : memref<10x128xf32, #tpu.memory_space<vmem>>, vector<8x128xf32>
    tpu.vector_store %arg27[%c1_115, %c0_116], %120 {strides = array<i32>} : memref<10x128xf32, #tpu.memory_space<vmem>>, vector<8x128xf32>,
    %cst_117 = arith.constant 0.000000e+00 : f32
    %122 = vector.broadcast %cst_117 : f32 to vector<4x256xf32>
    %c0_118 = arith.constant 0 : index
    %c0_119 = arith.constant 0 : index
    %123 = tpu.strided_load %arg27[%c0_118, %c0_119] {strides = array<i32: 2, 1>} : memref<10x128xf32, #tpu.memory_space<vmem>>, vector<4x128xf32>
    %124 = arith.truncf %123 : vector<4x128xf32> to vector<4x128xbf16>
    %c0_120 = arith.constant 0 : index
    %c0_121 = arith.constant 0 : index
    %c0_122 = arith.constant 0 : index
    %125 = vector.load %arg8[%c0_120, %c0_121, %c0_122] : memref<3x128x256xbf16, #tpu.memory_space<vmem>>, vector<1x128x256xbf16>
    %126 = vector.shape_cast %125 : vector<1x128x256xbf16> to vector<128x256xbf16>
    %cst_123 = arith.constant dense<0.000000e+00> : vector<4x256xf32>
    %127 = tpu.matmul %124, %126, %cst_123 {dimension_numbers = #tpu.dot_dimension_numbers<[1], [0], [0], [1], [0, 0, 1, 1], [], []>} : vector<4x128xbf16>, vector<128x256xbf16>, vector<4x256xf32> -> vector<4x256xf32>
    %128 = arith.addf %122, %127 : vector<4x256xf32>
    %c1_124 = arith.constant 1 : index
    %c0_125 = arith.constant 0 : index
    %129 = tpu.strided_load %arg27[%c1_124, %c0_125] {strides = array<i32: 2, 1>} : memref<10x128xf32, #tpu.memory_space<vmem>>, vector<4x128xf32>
    %130 = arith.truncf %129 : vector<4x128xf32> to vector<4x128xbf16>
    %c1_126 = arith.constant 1 : index
    %c0_127 = arith.constant 0 : index
    %c0_128 = arith.constant 0 : index
    %131 = vector.load %arg8[%c1_126, %c0_127, %c0_128] : memref<3x128x256xbf16, #tpu.memory_space<vmem>>, vector<1x128x256xbf16>
    %132 = vector.shape_cast %131 : vector<1x128x256xbf16> to vector<128x256xbf16>
    %cst_129 = arith.constant dense<0.000000e+00> : vector<4x256xf32>
    %133 = tpu.matmul %130, %132, %cst_129 {dimension_numbers = #tpu.dot_dimension_numbers<[1], [0], [0], [1], [0, 0, 1, 1], [], []>} : vector<4x128xbf16>, vector<128x256xbf16>, vector<4x256xf32> -> vector<4x256xf32>
    %134 = arith.addf %128, %133 : vector<4x256xf32>
    %c2_130 = arith.constant 2 : index
    %c0_131 = arith.constant 0 : index
    %135 = tpu.strided_load %arg27[%c2_130, %c0_131] {strides = array<i32: 2, 1>} : memref<10x128xf32, #tpu.memory_space<vmem>>, vector<4x128xf32>
    %136 = arith.truncf %135 : vector<4x128xf32> to vector<4x128xbf16>
    %c2_132 = arith.constant 2 : index
    %c0_133 = arith.constant 0 : index
    %c0_134 = arith.constant 0 : index
    %137 = vector.load %arg8[%c2_132, %c0_133, %c0_134] : memref<3x128x256xbf16, #tpu.memory_space<vmem>>, vector<1x128x256xbf16>
    %138 = vector.shape_cast %137 : vector<1x128x256xbf16> to vector<128x256xbf16>
    %cst_135 = arith.constant dense<0.000000e+00> : vector<4x256xf32>
    %139 = tpu.matmul %136, %138, %cst_135 {dimension_numbers = #tpu.dot_dimension_numbers<[1], [0], [0], [1], [0, 0, 1, 1], [], []>} : vector<4x128xbf16>, vector<128x256xbf16>, vector<4x256xf32> -> vector<4x256xf32>
    %140 = arith.addf %134, %139 : vector<4x256xf32>
    %c0_136 = arith.constant 0 : index
    %c0_137 = arith.constant 0 : index
    %141 = vector.load %arg9[%c0_136, %c0_137] : memref<1x256xf32, #tpu.memory_space<vmem>>, vector<1x256xf32>
    %142 = vector.broadcast %141 : vector<1x256xf32> to vector<4x256xf32>
    %143 = arith.addf %140, %142 : vector<4x256xf32>
    %cst_138 = arith.constant 0.000000e+00 : f32
    %144 = vector.broadcast %cst_138 : f32 to vector<4x256xf32>
    %145 = arith.maximumf %143, %144 : vector<4x256xf32>
    %cst_139 = arith.constant dense<0.000000e+00> : vector<256xf32>
    %146 = vector.multi_reduction <add>, %145, %cst_139 [0] : vector<4x256xf32> to vector<256xf32>
    %147 = vector.shape_cast %146 : vector<256xf32> to vector<1x256xf32>
    %cst_140 = arith.constant 2.500000e-01 : f32
    %148 = vector.broadcast %cst_140 : f32 to vector<1x256xf32>
    %149 = arith.mulf %147, %148 : vector<1x256xf32>
    %c0_141 = arith.constant 0 : index
    %c0_142 = arith.constant 0 : index
    %150 = vector.load %arg28[%c0_141, %c0_142] : memref<2x256xf32, #tpu.memory_space<vmem>>, vector<1x256xf32>
    tpu.vector_store %arg28[%c0_141, %c0_142], %149 {strides = array<i32>} : memref<2x256xf32, #tpu.memory_space<vmem>>, vector<1x256xf32>,
    %c1_143 = arith.constant 1 : index
    %c0_144 = arith.constant 0 : index
    %c0_145 = arith.constant 0 : index
    %151 = vector.load %arg0[%c1_143, %c0_144, %c0_145] : memref<2x256x2xf32, #tpu.memory_space<vmem>>, vector<1x256x2xf32>
    %152 = vector.shape_cast %151 : vector<1x256x2xf32> to vector<256x2xf32>
    %c3_146 = arith.constant 3 : index
    %c0_147 = arith.constant 0 : index
    %153 = vector.load %arg24[%c3_146, %c0_147] : memref<262x2xf32, #tpu.memory_space<vmem>>, vector<256x2xf32>
    tpu.vector_store %arg24[%c3_146, %c0_147], %152 {strides = array<i32>} : memref<262x2xf32, #tpu.memory_space<vmem>>, vector<256x2xf32>,
    %cst_148 = arith.constant 0.000000e+00 : f32
    %154 = vector.broadcast %cst_148 : f32 to vector<64x32xf32>
    %c0_149 = arith.constant 0 : index
    %c0_150 = arith.constant 0 : index
    %155 = tpu.strided_load %arg24[%c0_149, %c0_150] {strides = array<i32: 4, 1>} : memref<262x2xf32, #tpu.memory_space<vmem>>, vector<64x2xf32>
    %156 = arith.truncf %155 : vector<64x2xf32> to vector<64x2xbf16>
    %c0_151 = arith.constant 0 : index
    %c0_152 = arith.constant 0 : index
    %c0_153 = arith.constant 0 : index
    %157 = vector.load %arg2[%c0_151, %c0_152, %c0_153] : memref<7x2x32xbf16, #tpu.memory_space<vmem>>, vector<1x2x32xbf16>
    %158 = vector.shape_cast %157 : vector<1x2x32xbf16> to vector<2x32xbf16>
    %cst_154 = arith.constant dense<0.000000e+00> : vector<64x32xf32>
    %159 = tpu.matmul %156, %158, %cst_154 {dimension_numbers = #tpu.dot_dimension_numbers<[1], [0], [0], [1], [0, 0, 1, 1], [], []>} : vector<64x2xbf16>, vector<2x32xbf16>, vector<64x32xf32> -> vector<64x32xf32>
    %160 = arith.addf %154, %159 : vector<64x32xf32>
    %c1_155 = arith.constant 1 : index
    %c0_156 = arith.constant 0 : index
    %161 = tpu.strided_load %arg24[%c1_155, %c0_156] {strides = array<i32: 4, 1>} : memref<262x2xf32, #tpu.memory_space<vmem>>, vector<64x2xf32>
    %162 = arith.truncf %161 : vector<64x2xf32> to vector<64x2xbf16>
    %c1_157 = arith.constant 1 : index
    %c0_158 = arith.constant 0 : index
    %c0_159 = arith.constant 0 : index
    %163 = vector.load %arg2[%c1_157, %c0_158, %c0_159] : memref<7x2x32xbf16, #tpu.memory_space<vmem>>, vector<1x2x32xbf16>
    %164 = vector.shape_cast %163 : vector<1x2x32xbf16> to vector<2x32xbf16>
    %cst_160 = arith.constant dense<0.000000e+00> : vector<64x32xf32>
    %165 = tpu.matmul %162, %164, %cst_160 {dimension_numbers = #tpu.dot_dimension_numbers<[1], [0], [0], [1], [0, 0, 1, 1], [], []>} : vector<64x2xbf16>, vector<2x32xbf16>, vector<64x32xf32> -> vector<64x32xf32>
    %166 = arith.addf %160, %165 : vector<64x32xf32>
    %c2_161 = arith.constant 2 : index
    %c0_162 = arith.constant 0 : index
    %167 = tpu.strided_load %arg24[%c2_161, %c0_162] {strides = array<i32: 4, 1>} : memref<262x2xf32, #tpu.memory_space<vmem>>, vector<64x2xf32>
    %168 = arith.truncf %167 : vector<64x2xf32> to vector<64x2xbf16>
    %c2_163 = arith.constant 2 : index
    %c0_164 = arith.constant 0 : index
    %c0_165 = arith.constant 0 : index
    %169 = vector.load %arg2[%c2_163, %c0_164, %c0_165] : memref<7x2x32xbf16, #tpu.memory_space<vmem>>, vector<1x2x32xbf16>
    %170 = vector.shape_cast %169 : vector<1x2x32xbf16> to vector<2x32xbf16>
    %cst_166 = arith.constant dense<0.000000e+00> : vector<64x32xf32>
    %171 = tpu.matmul %168, %170, %cst_166 {dimension_numbers = #tpu.dot_dimension_numbers<[1], [0], [0], [1], [0, 0, 1, 1], [], []>} : vector<64x2xbf16>, vector<2x32xbf16>, vector<64x32xf32> -> vector<64x32xf32>
    %172 = arith.addf %166, %171 : vector<64x32xf32>
    %c3_167 = arith.constant 3 : index
    %c0_168 = arith.constant 0 : index
    %173 = tpu.strided_load %arg24[%c3_167, %c0_168] {strides = array<i32: 4, 1>} : memref<262x2xf32, #tpu.memory_space<vmem>>, vector<64x2xf32>
    %174 = arith.truncf %173 : vector<64x2xf32> to vector<64x2xbf16>
    %c3_169 = arith.constant 3 : index
    %c0_170 = arith.constant 0 : index
    %c0_171 = arith.constant 0 : index
    %175 = vector.load %arg2[%c3_169, %c0_170, %c0_171] : memref<7x2x32xbf16, #tpu.memory_space<vmem>>, vector<1x2x32xbf16>
    %176 = vector.shape_cast %175 : vector<1x2x32xbf16> to vector<2x32xbf16>
    %cst_172 = arith.constant dense<0.000000e+00> : vector<64x32xf32>
    %177 = tpu.matmul %174, %176, %cst_172 {dimension_numbers = #tpu.dot_dimension_numbers<[1], [0], [0], [1], [0, 0, 1, 1], [], []>} : vector<64x2xbf16>, vector<2x32xbf16>, vector<64x32xf32> -> vector<64x32xf32>
    %178 = arith.addf %172, %177 : vector<64x32xf32>
    %c4_173 = arith.constant 4 : index
    %c0_174 = arith.constant 0 : index
    %179 = tpu.strided_load %arg24[%c4_173, %c0_174] {strides = array<i32: 4, 1>} : memref<262x2xf32, #tpu.memory_space<vmem>>, vector<64x2xf32>
    %180 = arith.truncf %179 : vector<64x2xf32> to vector<64x2xbf16>
    %c4_175 = arith.constant 4 : index
    %c0_176 = arith.constant 0 : index
    %c0_177 = arith.constant 0 : index
    %181 = vector.load %arg2[%c4_175, %c0_176, %c0_177] : memref<7x2x32xbf16, #tpu.memory_space<vmem>>, vector<1x2x32xbf16>
    %182 = vector.shape_cast %181 : vector<1x2x32xbf16> to vector<2x32xbf16>
    %cst_178 = arith.constant dense<0.000000e+00> : vector<64x32xf32>
    %183 = tpu.matmul %180, %182, %cst_178 {dimension_numbers = #tpu.dot_dimension_numbers<[1], [0], [0], [1], [0, 0, 1, 1], [], []>} : vector<64x2xbf16>, vector<2x32xbf16>, vector<64x32xf32> -> vector<64x32xf32>
    %184 = arith.addf %178, %183 : vector<64x32xf32>
    %c5_179 = arith.constant 5 : index
    %c0_180 = arith.constant 0 : index
    %185 = tpu.strided_load %arg24[%c5_179, %c0_180] {strides = array<i32: 4, 1>} : memref<262x2xf32, #tpu.memory_space<vmem>>, vector<64x2xf32>
    %186 = arith.truncf %185 : vector<64x2xf32> to vector<64x2xbf16>
    %c5_181 = arith.constant 5 : index
    %c0_182 = arith.constant 0 : index
    %c0_183 = arith.constant 0 : index
    %187 = vector.load %arg2[%c5_181, %c0_182, %c0_183] : memref<7x2x32xbf16, #tpu.memory_space<vmem>>, vector<1x2x32xbf16>
    %188 = vector.shape_cast %187 : vector<1x2x32xbf16> to vector<2x32xbf16>
    %cst_184 = arith.constant dense<0.000000e+00> : vector<64x32xf32>
    %189 = tpu.matmul %186, %188, %cst_184 {dimension_numbers = #tpu.dot_dimension_numbers<[1], [0], [0], [1], [0, 0, 1, 1], [], []>} : vector<64x2xbf16>, vector<2x32xbf16>, vector<64x32xf32> -> vector<64x32xf32>
    %190 = arith.addf %184, %189 : vector<64x32xf32>
    %c6_185 = arith.constant 6 : index
    %c0_186 = arith.constant 0 : index
    %191 = tpu.strided_load %arg24[%c6_185, %c0_186] {strides = array<i32: 4, 1>} : memref<262x2xf32, #tpu.memory_space<vmem>>, vector<64x2xf32>
    %192 = arith.truncf %191 : vector<64x2xf32> to vector<64x2xbf16>
    %c6_187 = arith.constant 6 : index
    %c0_188 = arith.constant 0 : index
    %c0_189 = arith.constant 0 : index
    %193 = vector.load %arg2[%c6_187, %c0_188, %c0_189] : memref<7x2x32xbf16, #tpu.memory_space<vmem>>, vector<1x2x32xbf16>
    %194 = vector.shape_cast %193 : vector<1x2x32xbf16> to vector<2x32xbf16>
    %cst_190 = arith.constant dense<0.000000e+00> : vector<64x32xf32>
    %195 = tpu.matmul %192, %194, %cst_190 {dimension_numbers = #tpu.dot_dimension_numbers<[1], [0], [0], [1], [0, 0, 1, 1], [], []>} : vector<64x2xbf16>, vector<2x32xbf16>, vector<64x32xf32> -> vector<64x32xf32>
    %196 = arith.addf %190, %195 : vector<64x32xf32>
    %c0_191 = arith.constant 0 : index
    %c0_192 = arith.constant 0 : index
    %197 = vector.load %arg3[%c0_191, %c0_192] : memref<1x32xf32, #tpu.memory_space<vmem>>, vector<1x32xf32>
    %198 = vector.broadcast %197 : vector<1x32xf32> to vector<64x32xf32>
    %199 = arith.addf %196, %198 : vector<64x32xf32>
    %cst_193 = arith.constant 0.000000e+00 : f32
    %200 = vector.broadcast %cst_193 : f32 to vector<64x32xf32>
    %201 = arith.maximumf %199, %200 : vector<64x32xf32>
    %c2_194 = arith.constant 2 : index
    %c0_195 = arith.constant 0 : index
    %202 = vector.load %arg25[%c2_194, %c0_195] : memref<68x32xf32, #tpu.memory_space<vmem>>, vector<64x32xf32>
    tpu.vector_store %arg25[%c2_194, %c0_195], %201 {strides = array<i32>} : memref<68x32xf32, #tpu.memory_space<vmem>>, vector<64x32xf32>,
    %cst_196 = arith.constant 0.000000e+00 : f32
    %203 = vector.broadcast %cst_196 : f32 to vector<16x64xf32>
    %c0_197 = arith.constant 0 : index
    %c0_198 = arith.constant 0 : index
    %204 = tpu.strided_load %arg25[%c0_197, %c0_198] {strides = array<i32: 4, 1>} : memref<68x32xf32, #tpu.memory_space<vmem>>, vector<16x32xf32>
    %205 = arith.truncf %204 : vector<16x32xf32> to vector<16x32xbf16>
    %c0_199 = arith.constant 0 : index
    %c0_200 = arith.constant 0 : index
    %c0_201 = arith.constant 0 : index
    %206 = vector.load %arg4[%c0_199, %c0_200, %c0_201] : memref<5x32x64xbf16, #tpu.memory_space<vmem>>, vector<1x32x64xbf16>
    %207 = vector.shape_cast %206 : vector<1x32x64xbf16> to vector<32x64xbf16>
    %cst_202 = arith.constant dense<0.000000e+00> : vector<16x64xf32>
    %208 = tpu.matmul %205, %207, %cst_202 {dimension_numbers = #tpu.dot_dimension_numbers<[1], [0], [0], [1], [0, 0, 1, 1], [], []>} : vector<16x32xbf16>, vector<32x64xbf16>, vector<16x64xf32> -> vector<16x64xf32>
    %209 = arith.addf %203, %208 : vector<16x64xf32>
    %c1_203 = arith.constant 1 : index
    %c0_204 = arith.constant 0 : index
    %210 = tpu.strided_load %arg25[%c1_203, %c0_204] {strides = array<i32: 4, 1>} : memref<68x32xf32, #tpu.memory_space<vmem>>, vector<16x32xf32>
    %211 = arith.truncf %210 : vector<16x32xf32> to vector<16x32xbf16>
    %c1_205 = arith.constant 1 : index
    %c0_206 = arith.constant 0 : index
    %c0_207 = arith.constant 0 : index
    %212 = vector.load %arg4[%c1_205, %c0_206, %c0_207] : memref<5x32x64xbf16, #tpu.memory_space<vmem>>, vector<1x32x64xbf16>
    %213 = vector.shape_cast %212 : vector<1x32x64xbf16> to vector<32x64xbf16>
    %cst_208 = arith.constant dense<0.000000e+00> : vector<16x64xf32>
    %214 = tpu.matmul %211, %213, %cst_208 {dimension_numbers = #tpu.dot_dimension_numbers<[1], [0], [0], [1], [0, 0, 1, 1], [], []>} : vector<16x32xbf16>, vector<32x64xbf16>, vector<16x64xf32> -> vector<16x64xf32>
    %215 = arith.addf %209, %214 : vector<16x64xf32>
    %c2_209 = arith.constant 2 : index
    %c0_210 = arith.constant 0 : index
    %216 = tpu.strided_load %arg25[%c2_209, %c0_210] {strides = array<i32: 4, 1>} : memref<68x32xf32, #tpu.memory_space<vmem>>, vector<16x32xf32>
    %217 = arith.truncf %216 : vector<16x32xf32> to vector<16x32xbf16>
    %c2_211 = arith.constant 2 : index
    %c0_212 = arith.constant 0 : index
    %c0_213 = arith.constant 0 : index
    %218 = vector.load %arg4[%c2_211, %c0_212, %c0_213] : memref<5x32x64xbf16, #tpu.memory_space<vmem>>, vector<1x32x64xbf16>
    %219 = vector.shape_cast %218 : vector<1x32x64xbf16> to vector<32x64xbf16>
    %cst_214 = arith.constant dense<0.000000e+00> : vector<16x64xf32>
    %220 = tpu.matmul %217, %219, %cst_214 {dimension_numbers = #tpu.dot_dimension_numbers<[1], [0], [0], [1], [0, 0, 1, 1], [], []>} : vector<16x32xbf16>, vector<32x64xbf16>, vector<16x64xf32> -> vector<16x64xf32>
    %221 = arith.addf %215, %220 : vector<16x64xf32>
    %c3_215 = arith.constant 3 : index
    %c0_216 = arith.constant 0 : index
    %222 = tpu.strided_load %arg25[%c3_215, %c0_216] {strides = array<i32: 4, 1>} : memref<68x32xf32, #tpu.memory_space<vmem>>, vector<16x32xf32>
    %223 = arith.truncf %222 : vector<16x32xf32> to vector<16x32xbf16>
    %c3_217 = arith.constant 3 : index
    %c0_218 = arith.constant 0 : index
    %c0_219 = arith.constant 0 : index
    %224 = vector.load %arg4[%c3_217, %c0_218, %c0_219] : memref<5x32x64xbf16, #tpu.memory_space<vmem>>, vector<1x32x64xbf16>
    %225 = vector.shape_cast %224 : vector<1x32x64xbf16> to vector<32x64xbf16>
    %cst_220 = arith.constant dense<0.000000e+00> : vector<16x64xf32>
    %226 = tpu.matmul %223, %225, %cst_220 {dimension_numbers = #tpu.dot_dimension_numbers<[1], [0], [0], [1], [0, 0, 1, 1], [], []>} : vector<16x32xbf16>, vector<32x64xbf16>, vector<16x64xf32> -> vector<16x64xf32>
    %227 = arith.addf %221, %226 : vector<16x64xf32>
    %c4_221 = arith.constant 4 : index
    %c0_222 = arith.constant 0 : index
    %228 = tpu.strided_load %arg25[%c4_221, %c0_222] {strides = array<i32: 4, 1>} : memref<68x32xf32, #tpu.memory_space<vmem>>, vector<16x32xf32>
    %229 = arith.truncf %228 : vector<16x32xf32> to vector<16x32xbf16>
    %c4_223 = arith.constant 4 : index
    %c0_224 = arith.constant 0 : index
    %c0_225 = arith.constant 0 : index
    %230 = vector.load %arg4[%c4_223, %c0_224, %c0_225] : memref<5x32x64xbf16, #tpu.memory_space<vmem>>, vector<1x32x64xbf16>
    %231 = vector.shape_cast %230 : vector<1x32x64xbf16> to vector<32x64xbf16>
    %cst_226 = arith.constant dense<0.000000e+00> : vector<16x64xf32>
    %232 = tpu.matmul %229, %231, %cst_226 {dimension_numbers = #tpu.dot_dimension_numbers<[1], [0], [0], [1], [0, 0, 1, 1], [], []>} : vector<16x32xbf16>, vector<32x64xbf16>, vector<16x64xf32> -> vector<16x64xf32>
    %233 = arith.addf %227, %232 : vector<16x64xf32>
    %c0_227 = arith.constant 0 : index
    %c0_228 = arith.constant 0 : index
    %234 = vector.load %arg5[%c0_227, %c0_228] : memref<1x64xf32, #tpu.memory_space<vmem>>, vector<1x64xf32>
    %235 = vector.broadcast %234 : vector<1x64xf32> to vector<16x64xf32>
    %236 = arith.addf %233, %235 : vector<16x64xf32>
    %cst_229 = arith.constant 0.000000e+00 : f32
    %237 = vector.broadcast %cst_229 : f32 to vector<16x64xf32>
    %238 = arith.maximumf %236, %237 : vector<16x64xf32>
    %c1_230 = arith.constant 1 : index
    %c0_231 = arith.constant 0 : index
    %239 = vector.load %arg26[%c1_230, %c0_231] : memref<18x64xf32, #tpu.memory_space<vmem>>, vector<16x64xf32>
    tpu.vector_store %arg26[%c1_230, %c0_231], %238 {strides = array<i32>} : memref<18x64xf32, #tpu.memory_space<vmem>>, vector<16x64xf32>,
    %cst_232 = arith.constant 0.000000e+00 : f32
    %240 = vector.broadcast %cst_232 : f32 to vector<8x128xf32>
    %c0_233 = arith.constant 0 : index
    %c0_234 = arith.constant 0 : index
    %241 = tpu.strided_load %arg26[%c0_233, %c0_234] {strides = array<i32: 2, 1>} : memref<18x64xf32, #tpu.memory_space<vmem>>, vector<8x64xf32>
    %242 = arith.truncf %241 : vector<8x64xf32> to vector<8x64xbf16>
    %c0_235 = arith.constant 0 : index
    %c0_236 = arith.constant 0 : index
    %c0_237 = arith.constant 0 : index
    %243 = vector.load %arg6[%c0_235, %c0_236, %c0_237] : memref<3x64x128xbf16, #tpu.memory_space<vmem>>, vector<1x64x128xbf16>
    %244 = vector.shape_cast %243 : vector<1x64x128xbf16> to vector<64x128xbf16>
    %cst_238 = arith.constant dense<0.000000e+00> : vector<8x128xf32>
    %245 = tpu.matmul %242, %244, %cst_238 {dimension_numbers = #tpu.dot_dimension_numbers<[1], [0], [0], [1], [0, 0, 1, 1], [], []>} : vector<8x64xbf16>, vector<64x128xbf16>, vector<8x128xf32> -> vector<8x128xf32>
    %246 = arith.addf %240, %245 : vector<8x128xf32>
    %c1_239 = arith.constant 1 : index
    %c0_240 = arith.constant 0 : index
    %247 = tpu.strided_load %arg26[%c1_239, %c0_240] {strides = array<i32: 2, 1>} : memref<18x64xf32, #tpu.memory_space<vmem>>, vector<8x64xf32>
    %248 = arith.truncf %247 : vector<8x64xf32> to vector<8x64xbf16>
    %c1_241 = arith.constant 1 : index
    %c0_242 = arith.constant 0 : index
    %c0_243 = arith.constant 0 : index
    %249 = vector.load %arg6[%c1_241, %c0_242, %c0_243] : memref<3x64x128xbf16, #tpu.memory_space<vmem>>, vector<1x64x128xbf16>
    %250 = vector.shape_cast %249 : vector<1x64x128xbf16> to vector<64x128xbf16>
    %cst_244 = arith.constant dense<0.000000e+00> : vector<8x128xf32>
    %251 = tpu.matmul %248, %250, %cst_244 {dimension_numbers = #tpu.dot_dimension_numbers<[1], [0], [0], [1], [0, 0, 1, 1], [], []>} : vector<8x64xbf16>, vector<64x128xbf16>, vector<8x128xf32> -> vector<8x128xf32>
    %252 = arith.addf %246, %251 : vector<8x128xf32>
    %c2_245 = arith.constant 2 : index
    %c0_246 = arith.constant 0 : index
    %253 = tpu.strided_load %arg26[%c2_245, %c0_246] {strides = array<i32: 2, 1>} : memref<18x64xf32, #tpu.memory_space<vmem>>, vector<8x64xf32>
    %254 = arith.truncf %253 : vector<8x64xf32> to vector<8x64xbf16>
    %c2_247 = arith.constant 2 : index
    %c0_248 = arith.constant 0 : index
    %c0_249 = arith.constant 0 : index
    %255 = vector.load %arg6[%c2_247, %c0_248, %c0_249] : memref<3x64x128xbf16, #tpu.memory_space<vmem>>, vector<1x64x128xbf16>
    %256 = vector.shape_cast %255 : vector<1x64x128xbf16> to vector<64x128xbf16>
    %cst_250 = arith.constant dense<0.000000e+00> : vector<8x128xf32>
    %257 = tpu.matmul %254, %256, %cst_250 {dimension_numbers = #tpu.dot_dimension_numbers<[1], [0], [0], [1], [0, 0, 1, 1], [], []>} : vector<8x64xbf16>, vector<64x128xbf16>, vector<8x128xf32> -> vector<8x128xf32>
    %258 = arith.addf %252, %257 : vector<8x128xf32>
    %c0_251 = arith.constant 0 : index
    %c0_252 = arith.constant 0 : index
    %259 = vector.load %arg7[%c0_251, %c0_252] : memref<1x128xf32, #tpu.memory_space<vmem>>, vector<1x128xf32>
    %260 = vector.broadcast %259 : vector<1x128xf32> to vector<8x128xf32>
    %261 = arith.addf %258, %260 : vector<8x128xf32>
    %cst_253 = arith.constant 0.000000e+00 : f32
    %262 = vector.broadcast %cst_253 : f32 to vector<8x128xf32>
    %263 = arith.maximumf %261, %262 : vector<8x128xf32>
    %c1_254 = arith.constant 1 : index
    %c0_255 = arith.constant 0 : index
    %264 = vector.load %arg27[%c1_254, %c0_255] : memref<10x128xf32, #tpu.memory_space<vmem>>, vector<8x128xf32>
    tpu.vector_store %arg27[%c1_254, %c0_255], %263 {strides = array<i32>} : memref<10x128xf32, #tpu.memory_space<vmem>>, vector<8x128xf32>,
    %cst_256 = arith.constant 0.000000e+00 : f32
    %265 = vector.broadcast %cst_256 : f32 to vector<4x256xf32>
    %c0_257 = arith.constant 0 : index
    %c0_258 = arith.constant 0 : index
    %266 = tpu.strided_load %arg27[%c0_257, %c0_258] {strides = array<i32: 2, 1>} : memref<10x128xf32, #tpu.memory_space<vmem>>, vector<4x128xf32>
    %267 = arith.truncf %266 : vector<4x128xf32> to vector<4x128xbf16>
    %c0_259 = arith.constant 0 : index
    %c0_260 = arith.constant 0 : index
    %c0_261 = arith.constant 0 : index
    %268 = vector.load %arg8[%c0_259, %c0_260, %c0_261] : memref<3x128x256xbf16, #tpu.memory_space<vmem>>, vector<1x128x256xbf16>
    %269 = vector.shape_cast %268 : vector<1x128x256xbf16> to vector<128x256xbf16>
    %cst_262 = arith.constant dense<0.000000e+00> : vector<4x256xf32>
    %270 = tpu.matmul %267, %269, %cst_262 {dimension_numbers = #tpu.dot_dimension_numbers<[1], [0], [0], [1], [0, 0, 1, 1], [], []>} : vector<4x128xbf16>, vector<128x256xbf16>, vector<4x256xf32> -> vector<4x256xf32>
    %271 = arith.addf %265, %270 : vector<4x256xf32>
    %c1_263 = arith.constant 1 : index
    %c0_264 = arith.constant 0 : index
    %272 = tpu.strided_load %arg27[%c1_263, %c0_264] {strides = array<i32: 2, 1>} : memref<10x128xf32, #tpu.memory_space<vmem>>, vector<4x128xf32>
    %273 = arith.truncf %272 : vector<4x128xf32> to vector<4x128xbf16>
    %c1_265 = arith.constant 1 : index
    %c0_266 = arith.constant 0 : index
    %c0_267 = arith.constant 0 : index
    %274 = vector.load %arg8[%c1_265, %c0_266, %c0_267] : memref<3x128x256xbf16, #tpu.memory_space<vmem>>, vector<1x128x256xbf16>
    %275 = vector.shape_cast %274 : vector<1x128x256xbf16> to vector<128x256xbf16>
    %cst_268 = arith.constant dense<0.000000e+00> : vector<4x256xf32>
    %276 = tpu.matmul %273, %275, %cst_268 {dimension_numbers = #tpu.dot_dimension_numbers<[1], [0], [0], [1], [0, 0, 1, 1], [], []>} : vector<4x128xbf16>, vector<128x256xbf16>, vector<4x256xf32> -> vector<4x256xf32>
    %277 = arith.addf %271, %276 : vector<4x256xf32>
    %c2_269 = arith.constant 2 : index
    %c0_270 = arith.constant 0 : index
    %278 = tpu.strided_load %arg27[%c2_269, %c0_270] {strides = array<i32: 2, 1>} : memref<10x128xf32, #tpu.memory_space<vmem>>, vector<4x128xf32>
    %279 = arith.truncf %278 : vector<4x128xf32> to vector<4x128xbf16>
    %c2_271 = arith.constant 2 : index
    %c0_272 = arith.constant 0 : index
    %c0_273 = arith.constant 0 : index
    %280 = vector.load %arg8[%c2_271, %c0_272, %c0_273] : memref<3x128x256xbf16, #tpu.memory_space<vmem>>, vector<1x128x256xbf16>
    %281 = vector.shape_cast %280 : vector<1x128x256xbf16> to vector<128x256xbf16>
    %cst_274 = arith.constant dense<0.000000e+00> : vector<4x256xf32>
    %282 = tpu.matmul %279, %281, %cst_274 {dimension_numbers = #tpu.dot_dimension_numbers<[1], [0], [0], [1], [0, 0, 1, 1], [], []>} : vector<4x128xbf16>, vector<128x256xbf16>, vector<4x256xf32> -> vector<4x256xf32>
    %283 = arith.addf %277, %282 : vector<4x256xf32>
    %c0_275 = arith.constant 0 : index
    %c0_276 = arith.constant 0 : index
    %284 = vector.load %arg9[%c0_275, %c0_276] : memref<1x256xf32, #tpu.memory_space<vmem>>, vector<1x256xf32>
    %285 = vector.broadcast %284 : vector<1x256xf32> to vector<4x256xf32>
    %286 = arith.addf %283, %285 : vector<4x256xf32>
    %cst_277 = arith.constant 0.000000e+00 : f32
    %287 = vector.broadcast %cst_277 : f32 to vector<4x256xf32>
    %288 = arith.maximumf %286, %287 : vector<4x256xf32>
    %cst_278 = arith.constant dense<0.000000e+00> : vector<256xf32>
    %289 = vector.multi_reduction <add>, %288, %cst_278 [0] : vector<4x256xf32> to vector<256xf32>
    %290 = vector.shape_cast %289 : vector<256xf32> to vector<1x256xf32>
    %cst_279 = arith.constant 2.500000e-01 : f32
    %291 = vector.broadcast %cst_279 : f32 to vector<1x256xf32>
    %292 = arith.mulf %290, %291 : vector<1x256xf32>
    %c1_280 = arith.constant 1 : index
    %c0_281 = arith.constant 0 : index
    %293 = vector.load %arg28[%c1_280, %c0_281] : memref<2x256xf32, #tpu.memory_space<vmem>>, vector<1x256xf32>
    tpu.vector_store %arg28[%c1_280, %c0_281], %292 {strides = array<i32>} : memref<2x256xf32, #tpu.memory_space<vmem>>, vector<1x256xf32>,
    %c0_282 = arith.constant 0 : index
    %c0_283 = arith.constant 0 : index
    %294 = vector.load %arg28[%c0_282, %c0_283] : memref<2x256xf32, #tpu.memory_space<vmem>>, vector<2x256xf32>
    %c0_284 = arith.constant 0 : index
    %c0_285 = arith.constant 0 : index
    %295 = vector.load %arg10[%c0_284, %c0_285] : memref<256x128xf32, #tpu.memory_space<vmem>>, vector<256x128xf32>
    %cst_286 = arith.constant dense<0.000000e+00> : vector<2x128xf32>
    %296 = tpu.matmul %294, %295, %cst_286 {dimension_numbers = #tpu.dot_dimension_numbers<[1], [0], [0], [1], [0, 0, 1, 1], [], []>} : vector<2x256xf32>, vector<256x128xf32>, vector<2x128xf32> -> vector<2x128xf32>
    %c0_287 = arith.constant 0 : index
    %c0_288 = arith.constant 0 : index
    %297 = vector.load %arg11[%c0_287, %c0_288] : memref<1x128xf32, #tpu.memory_space<vmem>>, vector<1x128xf32>
    %298 = vector.broadcast %297 : vector<1x128xf32> to vector<2x128xf32>
    %299 = arith.addf %296, %298 : vector<2x128xf32>
    %300 = arith.mulf %299, %299 : vector<2x128xf32>
    %cst_289 = arith.constant dense<0.000000e+00> : vector<2xf32>
    %301 = vector.multi_reduction <add>, %300, %cst_289 [1] : vector<2x128xf32> to vector<2xf32>
    %302 = vector.shape_cast %301 : vector<2xf32> to vector<2x1xf32>
    %cst_290 = arith.constant 1.000000e-24 : f32
    %303 = vector.broadcast %cst_290 : f32 to vector<2x1xf32>
    %304 = arith.maximumf %302, %303 : vector<2x1xf32>
    %305 = math.rsqrt %304 : vector<2x1xf32>
    %306 = vector.broadcast %305 : vector<2x1xf32> to vector<2x128xf32>
    %307 = arith.mulf %299, %306 : vector<2x128xf32>
    %c0_291 = arith.constant 0 : index
    %c0_292 = arith.constant 0 : index
    %308 = vector.load %arg1[%c0_291, %c0_292] : memref<2x4xf32, #tpu.memory_space<vmem>>, vector<2x4xf32>
    %c0_293 = arith.constant 0 : index
    %c0_294 = arith.constant 0 : index
    %309 = vector.load %arg12[%c0_293, %c0_294] : memref<4x32xf32, #tpu.memory_space<vmem>>, vector<4x32xf32>
    %cst_295 = arith.constant dense<0.000000e+00> : vector<2x32xf32>
    %310 = tpu.matmul %308, %309, %cst_295 {dimension_numbers = #tpu.dot_dimension_numbers<[1], [0], [0], [1], [0, 0, 1, 1], [], []>} : vector<2x4xf32>, vector<4x32xf32>, vector<2x32xf32> -> vector<2x32xf32>
    %c0_296 = arith.constant 0 : index
    %c0_297 = arith.constant 0 : index
    %311 = vector.load %arg13[%c0_296, %c0_297] : memref<1x32xf32, #tpu.memory_space<vmem>>, vector<1x32xf32>
    %312 = vector.broadcast %311 : vector<1x32xf32> to vector<2x32xf32>
    %313 = arith.addf %310, %312 : vector<2x32xf32>
    %cst_298 = arith.constant 0.000000e+00 : f32
    %314 = vector.broadcast %cst_298 : f32 to vector<2x32xf32>
    %315 = arith.maximumf %313, %314 : vector<2x32xf32>
    %c0_299 = arith.constant 0 : index
    %c0_300 = arith.constant 0 : index
    %316 = vector.load %arg14[%c0_299, %c0_300] : memref<32x32xf32, #tpu.memory_space<vmem>>, vector<32x32xf32>
    %cst_301 = arith.constant dense<0.000000e+00> : vector<2x32xf32>
    %317 = tpu.matmul %315, %316, %cst_301 {dimension_numbers = #tpu.dot_dimension_numbers<[1], [0], [0], [1], [0, 0, 1, 1], [], []>} : vector<2x32xf32>, vector<32x32xf32>, vector<2x32xf32> -> vector<2x32xf32>
    %c0_302 = arith.constant 0 : index
    %c0_303 = arith.constant 0 : index
    %318 = vector.load %arg15[%c0_302, %c0_303] : memref<1x32xf32, #tpu.memory_space<vmem>>, vector<1x32xf32>
    %319 = vector.broadcast %318 : vector<1x32xf32> to vector<2x32xf32>
    %320 = arith.addf %317, %319 : vector<2x32xf32>
    %cst_304 = arith.constant 0.000000e+00 : f32
    %321 = vector.broadcast %cst_304 : f32 to vector<2x32xf32>
    %322 = arith.maximumf %320, %321 : vector<2x32xf32>
    %c0_305 = arith.constant 0 : index
    %c0_306 = arith.constant 0 : index
    %323 = vector.load %arg16[%c0_305, %c0_306] : memref<128x128xf32, #tpu.memory_space<vmem>>, vector<128x128xf32>
    %cst_307 = arith.constant dense<0.000000e+00> : vector<2x128xf32>
    %324 = tpu.matmul %307, %323, %cst_307 {dimension_numbers = #tpu.dot_dimension_numbers<[1], [0], [0], [1], [0, 0, 1, 1], [], []>} : vector<2x128xf32>, vector<128x128xf32>, vector<2x128xf32> -> vector<2x128xf32>
    %c0_308 = arith.constant 0 : index
    %c0_309 = arith.constant 0 : index
    %325 = vector.load %arg17[%c0_308, %c0_309] : memref<32x128xf32, #tpu.memory_space<vmem>>, vector<32x128xf32>
    %cst_310 = arith.constant dense<0.000000e+00> : vector<2x128xf32>
    %326 = tpu.matmul %322, %325, %cst_310 {dimension_numbers = #tpu.dot_dimension_numbers<[1], [0], [0], [1], [0, 0, 1, 1], [], []>} : vector<2x32xf32>, vector<32x128xf32>, vector<2x128xf32> -> vector<2x128xf32>
    %327 = arith.addf %324, %326 : vector<2x128xf32>
    %c0_311 = arith.constant 0 : index
    %c0_312 = arith.constant 0 : index
    %328 = vector.load %arg18[%c0_311, %c0_312] : memref<1x128xf32, #tpu.memory_space<vmem>>, vector<1x128xf32>
    %329 = vector.broadcast %328 : vector<1x128xf32> to vector<2x128xf32>
    %330 = arith.addf %327, %329 : vector<2x128xf32>
    %cst_313 = arith.constant 0.000000e+00 : f32
    %331 = vector.broadcast %cst_313 : f32 to vector<2x128xf32>
    %332 = arith.maximumf %330, %331 : vector<2x128xf32>
    %c0_314 = arith.constant 0 : index
    %c0_315 = arith.constant 0 : index
    %333 = vector.load %arg19[%c0_314, %c0_315] : memref<128x64xf32, #tpu.memory_space<vmem>>, vector<128x64xf32>
    %cst_316 = arith.constant dense<0.000000e+00> : vector<2x64xf32>
    %334 = tpu.matmul %332, %333, %cst_316 {dimension_numbers = #tpu.dot_dimension_numbers<[1], [0], [0], [1], [0, 0, 1, 1], [], []>} : vector<2x128xf32>, vector<128x64xf32>, vector<2x64xf32> -> vector<2x64xf32>
    %c0_317 = arith.constant 0 : index
    %c0_318 = arith.constant 0 : index
    %335 = vector.load %arg20[%c0_317, %c0_318] : memref<1x64xf32, #tpu.memory_space<vmem>>, vector<1x64xf32>
    %336 = vector.broadcast %335 : vector<1x64xf32> to vector<2x64xf32>
    %337 = arith.addf %334, %336 : vector<2x64xf32>
    %cst_319 = arith.constant 0.000000e+00 : f32
    %338 = vector.broadcast %cst_319 : f32 to vector<2x64xf32>
    %339 = arith.maximumf %337, %338 : vector<2x64xf32>
    %c0_320 = arith.constant 0 : index
    %c0_321 = arith.constant 0 : index
    %340 = vector.load %arg21[%c0_320, %c0_321] : memref<64x2xf32, #tpu.memory_space<vmem>>, vector<64x2xf32>
    %cst_322 = arith.constant dense<0.000000e+00> : vector<2x2xf32>
    %341 = tpu.matmul %339, %340, %cst_322 {dimension_numbers = #tpu.dot_dimension_numbers<[1], [0], [0], [1], [0, 0, 1, 1], [], []>} : vector<2x64xf32>, vector<64x2xf32>, vector<2x2xf32> -> vector<2x2xf32>
    %c0_323 = arith.constant 0 : index
    %c0_324 = arith.constant 0 : index
    %342 = vector.load %arg22[%c0_323, %c0_324] : memref<1x2xf32, #tpu.memory_space<vmem>>, vector<1x2xf32>
    %343 = vector.broadcast %342 : vector<1x2xf32> to vector<2x2xf32>
    %344 = arith.addf %341, %343 : vector<2x2xf32>
    %c0_325 = arith.constant 0 : index
    %c0_326 = arith.constant 0 : index
    %345 = vector.load %arg23[%c0_325, %c0_326] : memref<2x2xf32, #tpu.memory_space<vmem>>, vector<2x2xf32>
    tpu.vector_store %arg23[%c0_325, %c0_326], %344 {strides = array<i32>} : memref<2x2xf32, #tpu.memory_space<vmem>>, vector<2x2xf32>,
    return
  }
}

</mosaic_0001>

<llo_original>
// kernel: end2end_forward.1
$region0: #{end2end_forward.1}
  #allocation0 [shape = 'u32[]', space=smem, size = 0x4, offset = 0x4, fixed_abs, tag = 'smem constant byte address 0x4 - core index']
  #allocation1 [shape = 'u32[72,128]{1,0:T(1,128)}', space=vmem, size = 0x9000, scoped, tag = 'internal scratch']
  #allocation2 [shape = 'f32[262,2]{1,0:T(8,128)}', space=vmem, size = 0x21000, scoped, tag = 'scratch operand']
  #allocation3 [shape = 'f32[68,32]{1,0:T(8,128)}', space=vmem, size = 0x9000, scoped, tag = 'scratch operand']
  #allocation4 [shape = 'f32[18,64]{1,0:T(8,128)}', space=vmem, size = 0x3000, scoped, tag = 'scratch operand']
  #allocation5 [shape = 'f32[10,128]{1,0:T(8,128)}', space=vmem, size = 0x2000, scoped, tag = 'scratch operand']
  #allocation6 [shape = 'f32[2,256]{1,0:T(2,128)}', space=vmem, size = 0x800, scoped, tag = 'scratch operand']
  %s0 = inlined_call_operand.vmem [shape: f32[2,256,2], index: 0, kind: input, shape index: {}]
  %s1 = inlined_call_operand.hbm [shape: f32[2,4], index: 1, kind: input, shape index: {}]
  %s2 = inlined_call_operand.hbm [shape: bf16[7,2,32], index: 2, kind: input, shape index: {}]
  %s3 = inlined_call_operand.hbm [shape: f32[1,32], index: 3, kind: input, shape index: {}]
  %s4 = inlined_call_operand.vmem [shape: bf16[5,32,64], index: 4, kind: input, shape index: {}]
  %s5 = inlined_call_operand.hbm [shape: f32[1,64], index: 5, kind: input, shape index: {}]
  %s6 = inlined_call_operand.hbm [shape: bf16[3,64,128], index: 6, kind: input, shape index: {}]
  %s7 = inlined_call_operand.hbm [shape: f32[1,128], index: 7, kind: input, shape index: {}]
  %s8 = inlined_call_operand.vmem [shape: bf16[3,128,256], index: 8, kind: input, shape index: {}]
  %s9 = inlined_call_operand.hbm [shape: f32[1,256], index: 9, kind: input, shape index: {}]
  %s10 = inlined_call_operand.vmem [shape: f32[256,128], index: 10, kind: input, shape index: {}]
  %s11 = inlined_call_operand.hbm [shape: f32[1,128], index: 11, kind: input, shape index: {}]
  %s12 = inlined_call_operand.vmem [shape: f32[4,32], index: 12, kind: input, shape index: {}]
  %s13 = inlined_call_operand.hbm [shape: f32[1,32], index: 13, kind: input, shape index: {}]
  %s14 = inlined_call_operand.hbm [shape: f32[32,32], index: 14, kind: input, shape index: {}]
  %s15 = inlined_call_operand.hbm [shape: f32[1,32], index: 15, kind: input, shape index: {}]
  %s16 = inlined_call_operand.hbm [shape: f32[128,128], index: 16, kind: input, shape index: {}]
  %s17 = inlined_call_operand.hbm [shape: f32[32,128], index: 17, kind: input, shape index: {}]
  %s18 = inlined_call_operand.hbm [shape: f32[1,128], index: 18, kind: input, shape index: {}]
  %s19 = inlined_call_operand.vmem [shape: f32[128,64], index: 19, kind: input, shape index: {}]
  %s20 = inlined_call_operand.hbm [shape: f32[1,64], index: 20, kind: input, shape index: {}]
  %s21 = inlined_call_operand.vmem [shape: f32[64,2], index: 21, kind: input, shape index: {}]
  %s22 = inlined_call_operand.hbm [shape: f32[1,2], index: 22, kind: input, shape index: {}]
  %s23 = inlined_call_operand.hbm [shape: f32[2,2], index: 23, kind: output, shape index: {}]
  %s24 = sld [smem:[#allocation0]]
  $region166: #{end2end_forward.1} parent=0
    _
  %s26 = ssub.s32 1, %s24
  %s27 = scalar_select 0, %s26, %s24
  $region1: #{end2end_forward.1} parent=0
    #allocation7 [shape = 'u8[1024]{0}', space=vmem, size = 0x400, scoped, tag = 'input window, operand 1, single buffered']
    #allocation8 [shape = 's32[1]{0}', space=sflag, size = 0x4, scoped, tag = 'scoped memory for end2end_forward.1']
    #allocation9 [shape = 's32[1]{0}', space=sflag, size = 0x4, scoped, tag = 'scoped memory for end2end_forward.1']
    #allocation10 [shape = 'u8[3584]{0}', space=vmem, size = 0x1000, scoped, tag = 'input window, operand 2, single buffered']
    #allocation11 [shape = 's32[1]{0}', space=sflag, size = 0x4, scoped, tag = 'scoped memory for end2end_forward.1']
    #allocation12 [shape = 'u8[512]{0}', space=vmem, size = 0x400, scoped, tag = 'input window, operand 3, single buffered']
    #allocation13 [shape = 'u8[512]{0}', space=vmem, size = 0x400, scoped, tag = 'input window, operand 5, single buffered']
    #allocation14 [shape = 's32[1]{0}', space=sflag, size = 0x4, scoped, tag = 'scoped memory for end2end_forward.1']
    #allocation15 [shape = 'u8[49152]{0}', space=vmem, size = 0xc000, scoped, tag = 'input window, operand 6, single buffered']
    #allocation16 [shape = 'u8[512]{0}', space=vmem, size = 0x400, scoped, tag = 'input window, operand 7, single buffered']
    #allocation17 [shape = 's32[1]{0}', space=sflag, size = 0x4, scoped, tag = 'scoped memory for end2end_forward.1']
    #allocation18 [shape = 'u8[1024]{0}', space=vmem, size = 0x400, scoped, tag = 'input window, operand 9, single buffered']
    #allocation19 [shape = 'u8[512]{0}', space=vmem, size = 0x400, scoped, tag = 'input window, operand 11, single buffered']
    #allocation20 [shape = 's32[1]{0}', space=sflag, size = 0x4, scoped, tag = 'scoped memory for end2end_forward.1']
    #allocation21 [shape = 'u8[512]{0}', space=vmem, size = 0x400, scoped, tag = 'input window, operand 13, single buffered']
    #allocation22 [shape = 'u8[16384]{0}', space=vmem, size = 0x4000, scoped, tag = 'input window, operand 14, single buffered']
    #allocation23 [shape = 's32[1]{0}', space=sflag, size = 0x4, scoped, tag = 'scoped memory for end2end_forward.1']
    #allocation24 [shape = 'u8[512]{0}', space=vmem, size = 0x400, scoped, tag = 'input window, operand 15, single buffered']
    #allocation25 [shape = 'u8[65536]{0}', space=vmem, size = 0x10000, scoped, tag = 'input window, operand 16, single buffered']
    #allocation26 [shape = 's32[1]{0}', space=sflag, size = 0x4, scoped, tag = 'scoped memory for end2end_forward.1']
    #allocation27 [shape = 'u8[16384]{0}', space=vmem, size = 0x4000, scoped, tag = 'input window, operand 17, single buffered']
    #allocation28 [shape = 'u8[512]{0}', space=vmem, size = 0x400, scoped, tag = 'input window, operand 18, single buffered']
    #allocation29 [shape = 's32[1]{0}', space=sflag, size = 0x4, scoped, tag = 'scoped memory for end2end_forward.1']
    #allocation30 [shape = 'u8[512]{0}', space=vmem, size = 0x400, scoped, tag = 'input window, operand 20, single buffered']
    #allocation31 [shape = 'u8[512]{0}', space=vmem, size = 0x400, scoped, tag = 'input window, operand 22, single buffered']
    #allocation32 [shape = 's32[1]{0}', space=sflag, size = 0x4, scoped, tag = 'scoped memory for end2end_forward.1']
    #allocation33 [shape = 'u8[1024]{0}', space=vmem, size = 0x400, scoped, tag = 'output window, operand 0, single buffered']
    %28 = vsyncpa [#allocation8], 0
    %29 = vsyncpa [#allocation11], 0
    %30 = vsyncpa [#allocation14], 0
    %31 = vsyncpa [#allocation17], 0
    %32 = vsyncpa [#allocation20], 0
    %33 = vsyncpa [#allocation23], 0
    %34 = vsyncpa [#allocation26], 0
    %35 = vsyncpa [#allocation29], 0
    %36 = vsyncpa [#allocation32], 0
    %37 = vsyncpa [#allocation9], 0
    // Predicated region
    $region2: #{end2end_forward.1} parent=1 // pred_check
      _
    $region3: #{end2end_forward.1} parent=1 // pred_check_branch
      %39 = sbr.rel (0) target = $region5
    $region4: #{end2end_forward.1} parent=1 // pred_region
      _
    $region5: #{end2end_forward.1} parent=1 // pred_fallthru
      _
    // Predicated region
    $region6: #{end2end_forward.1} parent=1 // pred_check
      _
    $region7: #{end2end_forward.1} parent=1 // pred_check_branch
      %41 = sbr.rel (0) target = $region9
    $region8: #{end2end_forward.1} parent=1 // pred_region
      %43 = vsyncadd [#allocation8], 0
      %s45 = sshll.u32 %s1, 4
      %s46 = int_to_ptr.hbm [resolvable:$true] %s45
      %s47 = sshll.u32 [#allocation7], 4
      %s48 = int_to_ptr.vmem [resolvable:$true] %s47
      %50 = dma.hbm_to_vmem [thread:$0]  %s46, 32, %s48, [#allocation8]
    $region9: #{end2end_forward.1} parent=1 // pred_fallthru
      _
    // Predicated region
    $region10: #{end2end_forward.1} parent=1 // pred_check
      _
    $region11: #{end2end_forward.1} parent=1 // pred_check_branch
      %52 = sbr.rel (0) target = $region13
    $region12: #{end2end_forward.1} parent=1 // pred_region
      %54 = vsyncadd [#allocation11], 0
      %s55 = sshll.u32 %s2, 4
      %s56 = int_to_ptr.hbm [resolvable:$true] %s55
      %s57 = sshll.u32 [#allocation10], 4
      %s58 = int_to_ptr.vmem [resolvable:$true] %s57
      %63 = dma.hbm_to_vmem [thread:$0]  %s56, 112, %s58, [#allocation11], 16, 16, 1
    $region13: #{end2end_forward.1} parent=1 // pred_fallthru
      _
    // Predicated region
    $region14: #{end2end_forward.1} parent=1 // pred_check
      _
    $region15: #{end2end_forward.1} parent=1 // pred_check_branch
      %65 = sbr.rel (0) target = $region17
    $region16: #{end2end_forward.1} parent=1 // pred_region
      %67 = vsyncadd [#allocation11], 0
      %s69 = sshll.u32 %s3, 4
      %s70 = int_to_ptr.hbm [resolvable:$true] %s69
      %s71 = sshll.u32 [#allocation12], 4
      %s72 = int_to_ptr.vmem [resolvable:$true] %s71
      %74 = dma.hbm_to_vmem [thread:$0]  %s70, 16, %s72, [#allocation11]
    $region17: #{end2end_forward.1} parent=1 // pred_fallthru
      _
    // Predicated region
    $region18: #{end2end_forward.1} parent=1 // pred_check
      _
    $region19: #{end2end_forward.1} parent=1 // pred_check_branch
      %76 = sbr.rel (0) target = $region21
    $region20: #{end2end_forward.1} parent=1 // pred_region
      _
    $region21: #{end2end_forward.1} parent=1 // pred_fallthru
      _
    // Predicated region
    $region22: #{end2end_forward.1} parent=1 // pred_check
      _
    $region23: #{end2end_forward.1} parent=1 // pred_check_branch
      %78 = sbr.rel (0) target = $region25
    $region24: #{end2end_forward.1} parent=1 // pred_region
      %80 = vsyncadd [#allocation14], 0
      %s82 = sshll.u32 %s5, 4
      %s83 = int_to_ptr.hbm [resolvable:$true] %s82
      %s84 = sshll.u32 [#allocation13], 4
      %s85 = int_to_ptr.vmem [resolvable:$true] %s84
      %87 = dma.hbm_to_vmem [thread:$0]  %s83, 16, %s85, [#allocation14]
    $region25: #{end2end_forward.1} parent=1 // pred_fallthru
      _
    // Predicated region
    $region26: #{end2end_forward.1} parent=1 // pred_check
      _
    $region27: #{end2end_forward.1} parent=1 // pred_check_branch
      %89 = sbr.rel (0) target = $region29
    $region28: #{end2end_forward.1} parent=1 // pred_region
      %91 = vsyncadd [#allocation14], 0
      %s92 = sshll.u32 %s6, 4
      %s93 = int_to_ptr.hbm [resolvable:$true] %s92
      %s94 = sshll.u32 [#allocation15], 4
      %s95 = int_to_ptr.vmem [resolvable:$true] %s94
      %100 = dma.hbm_to_vmem [thread:$0]  %s93, 1536, %s95, [#allocation14], 64, 64, 4
    $region29: #{end2end_forward.1} parent=1 // pred_fallthru
      _
    // Predicated region
    $region30: #{end2end_forward.1} parent=1 // pred_check
      _
    $region31: #{end2end_forward.1} parent=1 // pred_check_branch
      %102 = sbr.rel (0) target = $region33
    $region32: #{end2end_forward.1} parent=1 // pred_region
      %104 = vsyncadd [#allocation17], 0
      %s106 = sshll.u32 %s7, 4
      %s107 = int_to_ptr.hbm [resolvable:$true] %s106
      %s108 = sshll.u32 [#allocation16], 4
      %s109 = int_to_ptr.vmem [resolvable:$true] %s108
      %111 = dma.hbm_to_vmem [thread:$0]  %s107, 16, %s109, [#allocation17]
    $region33: #{end2end_forward.1} parent=1 // pred_fallthru
      _
    // Predicated region
    $region34: #{end2end_forward.1} parent=1 // pred_check
      _
    $region35: #{end2end_forward.1} parent=1 // pred_check_branch
      %113 = sbr.rel (0) target = $region37
    $region36: #{end2end_forward.1} parent=1 // pred_region
      _
    $region37: #{end2end_forward.1} parent=1 // pred_fallthru
      _
    // Predicated region
    $region38: #{end2end_forward.1} parent=1 // pred_check
      _
    $region39: #{end2end_forward.1} parent=1 // pred_check_branch
      %115 = sbr.rel (0) target = $region41
    $region40: #{end2end_forward.1} parent=1 // pred_region
      %117 = vsyncadd [#allocation17], 0
      %s119 = sshll.u32 %s9, 4
      %s120 = int_to_ptr.hbm [resolvable:$true] %s119
      %s121 = sshll.u32 [#allocation18], 4
      %s122 = int_to_ptr.vmem [resolvable:$true] %s121
      %124 = dma.hbm_to_vmem [thread:$0]  %s120, 32, %s122, [#allocation17]
    $region41: #{end2end_forward.1} parent=1 // pred_fallthru
      _
    // Predicated region
    $region42: #{end2end_forward.1} parent=1 // pred_check
      _
    $region43: #{end2end_forward.1} parent=1 // pred_check_branch
      %126 = sbr.rel (0) target = $region45
    $region44: #{end2end_forward.1} parent=1 // pred_region
      _
    $region45: #{end2end_forward.1} parent=1 // pred_fallthru
      _
    // Predicated region
    $region46: #{end2end_forward.1} parent=1 // pred_check
      _
    $region47: #{end2end_forward.1} parent=1 // pred_check_branch
      %128 = sbr.rel (0) target = $region49
    $region48: #{end2end_forward.1} parent=1 // pred_region
      %130 = vsyncadd [#allocation20], 0
      %s132 = sshll.u32 %s11, 4
      %s133 = int_to_ptr.hbm [resolvable:$true] %s132
      %s134 = sshll.u32 [#allocation19], 4
      %s135 = int_to_ptr.vmem [resolvable:$true] %s134
      %137 = dma.hbm_to_vmem [thread:$0]  %s133, 16, %s135, [#allocation20]
    $region49: #{end2end_forward.1} parent=1 // pred_fallthru
      _
    // Predicated region
    $region50: #{end2end_forward.1} parent=1 // pred_check
      _
    $region51: #{end2end_forward.1} parent=1 // pred_check_branch
      %139 = sbr.rel (0) target = $region53
    $region52: #{end2end_forward.1} parent=1 // pred_region
      _
    $region53: #{end2end_forward.1} parent=1 // pred_fallthru
      _
    // Predicated region
    $region54: #{end2end_forward.1} parent=1 // pred_check
      _
    $region55: #{end2end_forward.1} parent=1 // pred_check_branch
      %141 = sbr.rel (0) target = $region57
    $region56: #{end2end_forward.1} parent=1 // pred_region
      %143 = vsyncadd [#allocation20], 0
      %s145 = sshll.u32 %s13, 4
      %s146 = int_to_ptr.hbm [resolvable:$true] %s145
      %s147 = sshll.u32 [#allocation21], 4
      %s148 = int_to_ptr.vmem [resolvable:$true] %s147
      %150 = dma.hbm_to_vmem [thread:$0]  %s146, 16, %s148, [#allocation20]
    $region57: #{end2end_forward.1} parent=1 // pred_fallthru
      _
    // Predicated region
    $region58: #{end2end_forward.1} parent=1 // pred_check
      _
    $region59: #{end2end_forward.1} parent=1 // pred_check_branch
      %152 = sbr.rel (0) target = $region61
    $region60: #{end2end_forward.1} parent=1 // pred_region
      %154 = vsyncadd [#allocation23], 0
      %s155 = sshll.u32 %s14, 4
      %s156 = int_to_ptr.hbm [resolvable:$true] %s155
      %s157 = sshll.u32 [#allocation22], 4
      %s158 = int_to_ptr.vmem [resolvable:$true] %s157
      %163 = dma.hbm_to_vmem [thread:$0]  %s156, 512, %s158, [#allocation23], 128, 128, 8
    $region61: #{end2end_forward.1} parent=1 // pred_fallthru
      _
    // Predicated region
    $region62: #{end2end_forward.1} parent=1 // pred_check
      _
    $region63: #{end2end_forward.1} parent=1 // pred_check_branch
      %165 = sbr.rel (0) target = $region65
    $region64: #{end2end_forward.1} parent=1 // pred_region
      %167 = vsyncadd [#allocation23], 0
      %s169 = sshll.u32 %s15, 4
      %s170 = int_to_ptr.hbm [resolvable:$true] %s169
      %s171 = sshll.u32 [#allocation24], 4
      %s172 = int_to_ptr.vmem [resolvable:$true] %s171
      %174 = dma.hbm_to_vmem [thread:$0]  %s170, 16, %s172, [#allocation23]
    $region65: #{end2end_forward.1} parent=1 // pred_fallthru
      _
    // Predicated region
    $region66: #{end2end_forward.1} parent=1 // pred_check
      _
    $region67: #{end2end_forward.1} parent=1 // pred_check_branch
      %176 = sbr.rel (0) target = $region69
    $region68: #{end2end_forward.1} parent=1 // pred_region
      %178 = vsyncadd [#allocation26], 0
      %s179 = sshll.u32 %s16, 4
      %s180 = int_to_ptr.hbm [resolvable:$true] %s179
      %s181 = sshll.u32 [#allocation25], 4
      %s182 = int_to_ptr.vmem [resolvable:$true] %s181
      %187 = dma.hbm_to_vmem [thread:$0]  %s180, 2048, %s182, [#allocation26], 128, 128, 8
    $region69: #{end2end_forward.1} parent=1 // pred_fallthru
      _
    // Predicated region
    $region70: #{end2end_forward.1} parent=1 // pred_check
      _
    $region71: #{end2end_forward.1} parent=1 // pred_check_branch
      %189 = sbr.rel (0) target = $region73
    $region72: #{end2end_forward.1} parent=1 // pred_region
      %191 = vsyncadd [#allocation26], 0
      %s192 = sshll.u32 %s17, 4
      %s193 = int_to_ptr.hbm [resolvable:$true] %s192
      %s194 = sshll.u32 [#allocation27], 4
      %s195 = int_to_ptr.vmem [resolvable:$true] %s194
      %200 = dma.hbm_to_vmem [thread:$0]  %s193, 512, %s195, [#allocation26], 128, 128, 8
    $region73: #{end2end_forward.1} parent=1 // pred_fallthru
      _
    // Predicated region
    $region74: #{end2end_forward.1} parent=1 // pred_check
      _
    $region75: #{end2end_forward.1} parent=1 // pred_check_branch
      %202 = sbr.rel (0) target = $region77
    $region76: #{end2end_forward.1} parent=1 // pred_region
      %204 = vsyncadd [#allocation29], 0
      %s206 = sshll.u32 %s18, 4
      %s207 = int_to_ptr.hbm [resolvable:$true] %s206
      %s208 = sshll.u32 [#allocation28], 4
      %s209 = int_to_ptr.vmem [resolvable:$true] %s208
      %211 = dma.hbm_to_vmem [thread:$0]  %s207, 16, %s209, [#allocation29]
    $region77: #{end2end_forward.1} parent=1 // pred_fallthru
      _
    // Predicated region
    $region78: #{end2end_forward.1} parent=1 // pred_check
      _
    $region79: #{end2end_forward.1} parent=1 // pred_check_branch
      %213 = sbr.rel (0) target = $region81
    $region80: #{end2end_forward.1} parent=1 // pred_region
      _
    $region81: #{end2end_forward.1} parent=1 // pred_fallthru
      _
    // Predicated region
    $region82: #{end2end_forward.1} parent=1 // pred_check
      _
    $region83: #{end2end_forward.1} parent=1 // pred_check_branch
      %215 = sbr.rel (0) target = $region85
    $region84: #{end2end_forward.1} parent=1 // pred_region
      %217 = vsyncadd [#allocation29], 0
      %s219 = sshll.u32 %s20, 4
      %s220 = int_to_ptr.hbm [resolvable:$true] %s219
      %s221 = sshll.u32 [#allocation30], 4
      %s222 = int_to_ptr.vmem [resolvable:$true] %s221
      %224 = dma.hbm_to_vmem [thread:$0]  %s220, 16, %s222, [#allocation29]
    $region85: #{end2end_forward.1} parent=1 // pred_fallthru
      _
    // Predicated region
    $region86: #{end2end_forward.1} parent=1 // pred_check
      _
    $region87: #{end2end_forward.1} parent=1 // pred_check_branch
      %226 = sbr.rel (0) target = $region89
    $region88: #{end2end_forward.1} parent=1 // pred_region
      _
    $region89: #{end2end_forward.1} parent=1 // pred_fallthru
      _
    // Predicated region
    $region90: #{end2end_forward.1} parent=1 // pred_check
      _
    $region91: #{end2end_forward.1} parent=1 // pred_check_branch
      %228 = sbr.rel (0) target = $region93
    $region92: #{end2end_forward.1} parent=1 // pred_region
      %230 = vsyncadd [#allocation32], 0
      %s232 = sshll.u32 %s22, 4
      %s233 = int_to_ptr.hbm [resolvable:$true] %s232
      %s234 = sshll.u32 [#allocation31], 4
      %s235 = int_to_ptr.vmem [resolvable:$true] %s234
      %237 = dma.hbm_to_vmem [thread:$0]  %s233, 16, %s235, [#allocation32]
    $region93: #{end2end_forward.1} parent=1 // pred_fallthru
      _
    // Predicated region
    $region94: #{end2end_forward.1} parent=1 // pred_check
      _
    $region95: #{end2end_forward.1} parent=1 // pred_check_branch
      %239 = sbr.rel (0) target = $region97
    $region96: #{end2end_forward.1} parent=1 // pred_region
      %241 = dma.done [#allocation8], 32
    $region97: #{end2end_forward.1} parent=1 // pred_fallthru
      _
    // Predicated region
    $region98: #{end2end_forward.1} parent=1 // pred_check
      _
    $region99: #{end2end_forward.1} parent=1 // pred_check_branch
      %243 = sbr.rel (0) target = $region101
    $region100: #{end2end_forward.1} parent=1 // pred_region
      %245 = dma.done [#allocation11], 112
    $region101: #{end2end_forward.1} parent=1 // pred_fallthru
      _
    // Predicated region
    $region102: #{end2end_forward.1} parent=1 // pred_check
      _
    $region103: #{end2end_forward.1} parent=1 // pred_check_branch
      %247 = sbr.rel (0) target = $region105
    $region104: #{end2end_forward.1} parent=1 // pred_region
      %249 = dma.done [#allocation11], 16
    $region105: #{end2end_forward.1} parent=1 // pred_fallthru
      _
    // Predicated region
    $region106: #{end2end_forward.1} parent=1 // pred_check
      _
    $region107: #{end2end_forward.1} parent=1 // pred_check_branch
      %251 = sbr.rel (0) target = $region109
    $region108: #{end2end_forward.1} parent=1 // pred_region
      %253 = dma.done [#allocation14], 16
    $region109: #{end2end_forward.1} parent=1 // pred_fallthru
      _
    // Predicated region
    $region110: #{end2end_forward.1} parent=1 // pred_check
      _
    $region111: #{end2end_forward.1} parent=1 // pred_check_branch
      %255 = sbr.rel (0) target = $region113
    $region112: #{end2end_forward.1} parent=1 // pred_region
      %257 = dma.done [#allocation14], 1536
    $region113: #{end2end_forward.1} parent=1 // pred_fallthru
      _
    // Predicated region
    $region114: #{end2end_forward.1} parent=1 // pred_check
      _
    $region115: #{end2end_forward.1} parent=1 // pred_check_branch
      %259 = sbr.rel (0) target = $region117
    $region116: #{end2end_forward.1} parent=1 // pred_region
      %261 = dma.done [#allocation17], 16
    $region117: #{end2end_forward.1} parent=1 // pred_fallthru
      _
    // Predicated region
    $region118: #{end2end_forward.1} parent=1 // pred_check
      _
    $region119: #{end2end_forward.1} parent=1 // pred_check_branch
      %263 = sbr.rel (0) target = $region121
    $region120: #{end2end_forward.1} parent=1 // pred_region
      %265 = dma.done [#allocation17], 32
    $region121: #{end2end_forward.1} parent=1 // pred_fallthru
      _
    // Predicated region
    $region122: #{end2end_forward.1} parent=1 // pred_check
      _
    $region123: #{end2end_forward.1} parent=1 // pred_check_branch
      %267 = sbr.rel (0) target = $region125
    $region124: #{end2end_forward.1} parent=1 // pred_region
      %269 = dma.done [#allocation20], 16
    $region125: #{end2end_forward.1} parent=1 // pred_fallthru
      _
    // Predicated region
    $region126: #{end2end_forward.1} parent=1 // pred_check
      _
    $region127: #{end2end_forward.1} parent=1 // pred_check_branch
      %271 = sbr.rel (0) target = $region129
    $region128: #{end2end_forward.1} parent=1 // pred_region
      %273 = dma.done [#allocation20], 16
    $region129: #{end2end_forward.1} parent=1 // pred_fallthru
      _
    // Predicated region
    $region130: #{end2end_forward.1} parent=1 // pred_check
      _
    $region131: #{end2end_forward.1} parent=1 // pred_check_branch
      %275 = sbr.rel (0) target = $region133
    $region132: #{end2end_forward.1} parent=1 // pred_region
      %277 = dma.done [#allocation23], 512
    $region133: #{end2end_forward.1} parent=1 // pred_fallthru
      _
    // Predicated region
    $region134: #{end2end_forward.1} parent=1 // pred_check
      _
    $region135: #{end2end_forward.1} parent=1 // pred_check_branch
      %279 = sbr.rel (0) target = $region137
    $region136: #{end2end_forward.1} parent=1 // pred_region
      %281 = dma.done [#allocation23], 16
    $region137: #{end2end_forward.1} parent=1 // pred_fallthru
      _
    // Predicated region
    $region138: #{end2end_forward.1} parent=1 // pred_check
      _
    $region139: #{end2end_forward.1} parent=1 // pred_check_branch
      %283 = sbr.rel (0) target = $region141
    $region140: #{end2end_forward.1} parent=1 // pred_region
      %285 = dma.done [#allocation26], 2048
    $region141: #{end2end_forward.1} parent=1 // pred_fallthru
      _
    // Predicated region
    $region142: #{end2end_forward.1} parent=1 // pred_check
      _
    $region143: #{end2end_forward.1} parent=1 // pred_check_branch
      %287 = sbr.rel (0) target = $region145
    $region144: #{end2end_forward.1} parent=1 // pred_region
      %289 = dma.done [#allocation26], 512
    $region145: #{end2end_forward.1} parent=1 // pred_fallthru
      _
    // Predicated region
    $region146: #{end2end_forward.1} parent=1 // pred_check
      _
    $region147: #{end2end_forward.1} parent=1 // pred_check_branch
      %291 = sbr.rel (0) target = $region149
    $region148: #{end2end_forward.1} parent=1 // pred_region
      %293 = dma.done [#allocation29], 16
    $region149: #{end2end_forward.1} parent=1 // pred_fallthru
      _
    // Predicated region
    $region150: #{end2end_forward.1} parent=1 // pred_check
      _
    $region151: #{end2end_forward.1} parent=1 // pred_check_branch
      %295 = sbr.rel (0) target = $region153
    $region152: #{end2end_forward.1} parent=1 // pred_region
      %297 = dma.done [#allocation29], 16
    $region153: #{end2end_forward.1} parent=1 // pred_fallthru
      _
    // Predicated region
    $region154: #{end2end_forward.1} parent=1 // pred_check
      _
    $region155: #{end2end_forward.1} parent=1 // pred_check_branch
      %299 = sbr.rel (0) target = $region157
    $region156: #{end2end_forward.1} parent=1 // pred_region
      %301 = dma.done [#allocation32], 16
    $region157: #{end2end_forward.1} parent=1 // pred_fallthru
      _
    %vm303 = vcmask 15360
    %304 = vst.msk [vmem:[#allocation2] sm:$0xff] %vm303, 0.0
    %305 = vst.msk [vmem:[#allocation2 + $0x8] sm:$0xff] %vm303, 0.0
    %306 = vst.msk [vmem:[#allocation2 + $0x10] sm:$0xff] %vm303, 0.0
    %307 = vst.msk [vmem:[#allocation2 + $0x18] sm:$0xff] %vm303, 0.0
    %308 = vst.msk [vmem:[#allocation2 + $0x20] sm:$0xff] %vm303, 0.0
    %309 = vst.msk [vmem:[#allocation2 + $0x28] sm:$0xff] %vm303, 0.0
    %310 = vst.msk [vmem:[#allocation2 + $0x30] sm:$0xff] %vm303, 0.0
    %311 = vst.msk [vmem:[#allocation2 + $0x38] sm:$0xff] %vm303, 0.0
    %312 = vst.msk [vmem:[#allocation2 + $0x40] sm:$0xff] %vm303, 0.0
    %313 = vst.msk [vmem:[#allocation2 + $0x48] sm:$0xff] %vm303, 0.0
    %314 = vst.msk [vmem:[#allocation2 + $0x50] sm:$0xff] %vm303, 0.0
    %315 = vst.msk [vmem:[#allocation2 + $0x58] sm:$0xff] %vm303, 0.0
    %316 = vst.msk [vmem:[#allocation2 + $0x60] sm:$0xff] %vm303, 0.0
    %317 = vst.msk [vmem:[#allocation2 + $0x68] sm:$0xff] %vm303, 0.0
    %318 = vst.msk [vmem:[#allocation2 + $0x70] sm:$0xff] %vm303, 0.0
    %319 = vst.msk [vmem:[#allocation2 + $0x78] sm:$0xff] %vm303, 0.0
    %320 = vst.msk [vmem:[#allocation2 + $0x80] sm:$0xff] %vm303, 0.0
    %321 = vst.msk [vmem:[#allocation2 + $0x88] sm:$0xff] %vm303, 0.0
    %322 = vst.msk [vmem:[#allocation2 + $0x90] sm:$0xff] %vm303, 0.0
    %323 = vst.msk [vmem:[#allocation2 + $0x98] sm:$0xff] %vm303, 0.0
    %324 = vst.msk [vmem:[#allocation2 + $0xa0] sm:$0xff] %vm303, 0.0
    %325 = vst.msk [vmem:[#allocation2 + $0xa8] sm:$0xff] %vm303, 0.0
    %326 = vst.msk [vmem:[#allocation2 + $0xb0] sm:$0xff] %vm303, 0.0
    %327 = vst.msk [vmem:[#allocation2 + $0xb8] sm:$0xff] %vm303, 0.0
    %328 = vst.msk [vmem:[#allocation2 + $0xc0] sm:$0xff] %vm303, 0.0
    %329 = vst.msk [vmem:[#allocation2 + $0xc8] sm:$0xff] %vm303, 0.0
    %330 = vst.msk [vmem:[#allocation2 + $0xd0] sm:$0xff] %vm303, 0.0
    %331 = vst.msk [vmem:[#allocation2 + $0xd8] sm:$0xff] %vm303, 0.0
    %332 = vst.msk [vmem:[#allocation2 + $0xe0] sm:$0xff] %vm303, 0.0
    %333 = vst.msk [vmem:[#allocation2 + $0xe8] sm:$0xff] %vm303, 0.0
    %334 = vst.msk [vmem:[#allocation2 + $0xf0] sm:$0xff] %vm303, 0.0
    %335 = vst.msk [vmem:[#allocation2 + $0xf8] sm:$0xff] %vm303, 0.0
    %vm336 = vcmask 13312
    %337 = vst.msk [vmem:[#allocation2 + $0x100] sm:$0x3f] %vm336, 0.0
    %vm338 = vcmask 261120
    %339 = vst.msk [vmem:[#allocation3] sm:$0xff] %vm338, 0.0
    %340 = vst.msk [vmem:[#allocation3 + $0x8] sm:$0xff] %vm338, 0.0
    %341 = vst.msk [vmem:[#allocation3 + $0x10] sm:$0xff] %vm338, 0.0
    %342 = vst.msk [vmem:[#allocation3 + $0x18] sm:$0xff] %vm338, 0.0
    %343 = vst.msk [vmem:[#allocation3 + $0x20] sm:$0xff] %vm338, 0.0
    %344 = vst.msk [vmem:[#allocation3 + $0x28] sm:$0xff] %vm338, 0.0
    %345 = vst.msk [vmem:[#allocation3 + $0x30] sm:$0xff] %vm338, 0.0
    %346 = vst.msk [vmem:[#allocation3 + $0x38] sm:$0xff] %vm338, 0.0
    %vm347 = vcmask 257024
    %348 = vst.msk [vmem:[#allocation3 + $0x40] sm:$0xf] %vm347, 0.0
    %vm349 = vcmask 523264
    %350 = vst.msk [vmem:[#allocation4] sm:$0xff] %vm349, 0.0
    %351 = vst.msk [vmem:[#allocation4 + $0x8] sm:$0xff] %vm349, 0.0
    %vm352 = vcmask 517120
    %353 = vst.msk [vmem:[#allocation4 + $0x10] sm:$0x3] %vm352, 0.0
    %354 = vst [vmem:[#allocation5] sm:$0xff] 0.0
    %355 = vst [vmem:[#allocation5 + $0x8] sm:$0x3] 0.0
    %v356 = vld [vmem:[%s0] sm:$0xff]
    %v357 = vld [vmem:[%s0 + $0x8] sm:$0xff]
    %v358 = vld [vmem:[%s0 + $0x10] sm:$0xff]
    %v359 = vld [vmem:[%s0 + $0x18] sm:$0xff]
    %v360 = vld [vmem:[%s0 + $0x20] sm:$0xff]
    %v361 = vld [vmem:[%s0 + $0x28] sm:$0xff]
    %v362 = vld [vmem:[%s0 + $0x30] sm:$0xff]
    %v363 = vld [vmem:[%s0 + $0x38] sm:$0xff]
    %v364 = vld [vmem:[%s0 + $0x40] sm:$0xff]
    %v365 = vld [vmem:[%s0 + $0x48] sm:$0xff]
    %v366 = vld [vmem:[%s0 + $0x50] sm:$0xff]
    %v367 = vld [vmem:[%s0 + $0x58] sm:$0xff]
    %v368 = vld [vmem:[%s0 + $0x60] sm:$0xff]
    %v369 = vld [vmem:[%s0 + $0x68] sm:$0xff]
    %v370 = vld [vmem:[%s0 + $0x70] sm:$0xff]
    %v371 = vld [vmem:[%s0 + $0x78] sm:$0xff]
    %v372 = vld [vmem:[%s0 + $0x80] sm:$0xff]
    %v373 = vld [vmem:[%s0 + $0x88] sm:$0xff]
    %v374 = vld [vmem:[%s0 + $0x90] sm:$0xff]
    %v375 = vld [vmem:[%s0 + $0x98] sm:$0xff]
    %v376 = vld [vmem:[%s0 + $0xa0] sm:$0xff]
    %v377 = vld [vmem:[%s0 + $0xa8] sm:$0xff]
    %v378 = vld [vmem:[%s0 + $0xb0] sm:$0xff]
    %v379 = vld [vmem:[%s0 + $0xb8] sm:$0xff]
    %v380 = vld [vmem:[%s0 + $0xc0] sm:$0xff]
    %v381 = vld [vmem:[%s0 + $0xc8] sm:$0xff]
    %v382 = vld [vmem:[%s0 + $0xd0] sm:$0xff]
    %v383 = vld [vmem:[%s0 + $0xd8] sm:$0xff]
    %v384 = vld [vmem:[%s0 + $0xe0] sm:$0xff]
    %v385 = vld [vmem:[%s0 + $0xe8] sm:$0xff]
    %v386 = vld [vmem:[%s0 + $0xf0] sm:$0xff]
    %v387 = vld [vmem:[%s0 + $0xf8] sm:$0xff]
    %388 = vst.msk [vmem:[#allocation2 + $0x3] sm:$0xff] %vm303, %v356
    %389 = vst.msk [vmem:[#allocation2 + $0xb] sm:$0xff] %vm303, %v357
    %390 = vst.msk [vmem:[#allocation2 + $0x13] sm:$0xff] %vm303, %v358
    %391 = vst.msk [vmem:[#allocation2 + $0x1b] sm:$0xff] %vm303, %v359
    %392 = vst.msk [vmem:[#allocation2 + $0x23] sm:$0xff] %vm303, %v360
    %393 = vst.msk [vmem:[#allocation2 + $0x2b] sm:$0xff] %vm303, %v361
    %394 = vst.msk [vmem:[#allocation2 + $0x33] sm:$0xff] %vm303, %v362
    %395 = vst.msk [vmem:[#allocation2 + $0x3b] sm:$0xff] %vm303, %v363
    %396 = vst.msk [vmem:[#allocation2 + $0x43] sm:$0xff] %vm303, %v364
    %397 = vst.msk [vmem:[#allocation2 + $0x4b] sm:$0xff] %vm303, %v365
    %398 = vst.msk [vmem:[#allocation2 + $0x53] sm:$0xff] %vm303, %v366
    %399 = vst.msk [vmem:[#allocation2 + $0x5b] sm:$0xff] %vm303, %v367
    %400 = vst.msk [vmem:[#allocation2 + $0x63] sm:$0xff] %vm303, %v368
    %401 = vst.msk [vmem:[#allocation2 + $0x6b] sm:$0xff] %vm303, %v369
    %402 = vst.msk [vmem:[#allocation2 + $0x73] sm:$0xff] %vm303, %v370
    %403 = vst.msk [vmem:[#allocation2 + $0x7b] sm:$0xff] %vm303, %v371
    %404 = vst.msk [vmem:[#allocation2 + $0x83] sm:$0xff] %vm303, %v372
    %405 = vst.msk [vmem:[#allocation2 + $0x8b] sm:$0xff] %vm303, %v373
    %406 = vst.msk [vmem:[#allocation2 + $0x93] sm:$0xff] %vm303, %v374
    %407 = vst.msk [vmem:[#allocation2 + $0x9b] sm:$0xff] %vm303, %v375
    %408 = vst.msk [vmem:[#allocation2 + $0xa3] sm:$0xff] %vm303, %v376
    %409 = vst.msk [vmem:[#allocation2 + $0xab] sm:$0xff] %vm303, %v377
    %410 = vst.msk [vmem:[#allocation2 + $0xb3] sm:$0xff] %vm303, %v378
    %411 = vst.msk [vmem:[#allocation2 + $0xbb] sm:$0xff] %vm303, %v379
    %412 = vst.msk [vmem:[#allocation2 + $0xc3] sm:$0xff] %vm303, %v380
    %413 = vst.msk [vmem:[#allocation2 + $0xcb] sm:$0xff] %vm303, %v381
    %414 = vst.msk [vmem:[#allocation2 + $0xd3] sm:$0xff] %vm303, %v382
    %415 = vst.msk [vmem:[#allocation2 + $0xdb] sm:$0xff] %vm303, %v383
    %416 = vst.msk [vmem:[#allocation2 + $0xe3] sm:$0xff] %vm303, %v384
    %417 = vst.msk [vmem:[#allocation2 + $0xeb] sm:$0xff] %vm303, %v385
    %418 = vst.msk [vmem:[#allocation2 + $0xf3] sm:$0xff] %vm303, %v386
    %419 = vst.msk [vmem:[#allocation2 + $0xfb] sm:$0xff] %vm303, %v387
    %v420 = vld [vmem:[#allocation2] ss:$4 sm:$0xff]
    %s421 = scalar_lea.vmem [#allocation2], 32
    %v422 = vld [vmem:[%s421] ss:$4 sm:$0xff]
    %s423 = scalar_lea.vmem [#allocation2], 64
    %v424 = vld [vmem:[%s423] ss:$4 sm:$0xff]
    %s425 = scalar_lea.vmem [#allocation2], 96
    %v426 = vld [vmem:[%s425] ss:$4 sm:$0xff]
    %s427 = scalar_lea.vmem [#allocation2], 128
    %v428 = vld [vmem:[%s427] ss:$4 sm:$0xff]
    %s429 = scalar_lea.vmem [#allocation2], 160
    %v430 = vld [vmem:[%s429] ss:$4 sm:$0xff]
    %s431 = scalar_lea.vmem [#allocation2], 192
    %v432 = vld [vmem:[%s431] ss:$4 sm:$0xff]
    %s433 = scalar_lea.vmem [#allocation2], 224
    %v434 = vld [vmem:[%s433] ss:$4 sm:$0xff]
    %v435 = vpack.c.bf16 %v422, %v420
    %v436 = vpack.c.bf16 %v426, %v424
    %v437 = vpack.c.bf16 %v430, %v428
    %v438 = vpack.c.bf16 %v434, %v432
    %v439 = vld [vmem:[#allocation10] sm:$0x1]
    %s440 = scalar_lea.vmem [#allocation2], 1
    %v441 = vld [vmem:[%s440] ss:$4 sm:$0xff]
    %s442 = scalar_lea.vmem [#allocation2], 33
    %v443 = vld [vmem:[%s442] ss:$4 sm:$0xff]
    %s444 = scalar_lea.vmem [#allocation2], 65
    %v445 = vld [vmem:[%s444] ss:$4 sm:$0xff]
    %s446 = scalar_lea.vmem [#allocation2], 97
    %v447 = vld [vmem:[%s446] ss:$4 sm:$0xff]
    %s448 = scalar_lea.vmem [#allocation2], 129
    %v449 = vld [vmem:[%s448] ss:$4 sm:$0xff]
    %s450 = scalar_lea.vmem [#allocation2], 161
    %v451 = vld [vmem:[%s450] ss:$4 sm:$0xff]
    %s452 = scalar_lea.vmem [#allocation2], 193
    %v453 = vld [vmem:[%s452] ss:$4 sm:$0xff]
    %s454 = scalar_lea.vmem [#allocation2], 225
    %v455 = vld [vmem:[%s454] ss:$4 sm:$0xff]
    %v456 = vpack.c.bf16 %v443, %v441
    %v457 = vpack.c.bf16 %v447, %v445
    %v458 = vpack.c.bf16 %v451, %v449
    %v459 = vpack.c.bf16 %v455, %v453
    %s460 = scalar_lea.vmem [#allocation10], 1
    %v461 = vld [vmem:[%s460] sm:$0x1]
    %v463 = vsel %vm303, %v456, 0
    %v466 = vsel %vm303, %v457, 0
    %v469 = vsel %vm303, %v458, 0
    %v472 = vsel %vm303, %v459, 0
    %vm474 = vcmask 1040384
    %v476 = vsel %vm474, %v461, 0
    %478 = vmatpush.bf16.msra.mxu0 0
    %479 = vmatpush.bf16.msra.mxu0 0
    %480 = vmatpush.bf16.msra.mxu0 0
    %481 = vmatpush.bf16.msra.mxu0 0
    %482 = vmatpush.bf16.msra.mxu0 0
    %483 = vmatpush.bf16.msra.mxu0 0
    %484 = vmatpush.bf16.msra.mxu0 0
    %485 = vmatpush.bf16.msra.mxu0 %v476
    %486 = vmatmul.bf16.gmra.mxu0 %v463
    %v487 = vpop.f32.mrf.mxu0
    %v488 = vadd.f32 0.0, %v487
    %v489 = vpop.f32.mrf.mxu0
    %v490 = vadd.f32 0.0, %v489
    %491 = vmatmul.bf16.gmra.mxu0 %v466
    %v492 = vpop.f32.mrf.mxu0
    %v493 = vadd.f32 0.0, %v492
    %v494 = vpop.f32.mrf.mxu0
    %v495 = vadd.f32 0.0, %v494
    %496 = vmatmul.bf16.gmra.mxu0 %v469
    %v497 = vpop.f32.mrf.mxu0
    %v498 = vadd.f32 0.0, %v497
    %v499 = vpop.f32.mrf.mxu0
    %v500 = vadd.f32 0.0, %v499
    %501 = vmatmul.bf16.gmra.mxu0 %v472
    %v502 = vpop.f32.mrf.mxu0
    %v503 = vadd.f32 0.0, %v502
    %v504 = vpop.f32.mrf.mxu0
    %v505 = vadd.f32 0.0, %v504
    %506 = vdwg.mxu0
    %v508 = vsel %vm303, %v435, 0
    %v511 = vsel %vm303, %v436, 0
    %v514 = vsel %vm303, %v437, 0
    %v517 = vsel %vm303, %v438, 0
    %v520 = vsel %vm474, %v439, 0
    %522 = vmatpush.bf16.msra.mxu0 0
    %523 = vmatpush.bf16.msra.mxu0 0
    %524 = vmatpush.bf16.msra.mxu0 0
    %525 = vmatpush.bf16.msra.mxu0 0
    %526 = vmatpush.bf16.msra.mxu0 0
    %527 = vmatpush.bf16.msra.mxu0 0
    %528 = vmatpush.bf16.msra.mxu0 0
    %529 = vmatpush.bf16.msra.mxu0 %v520
    %530 = vmatmul.bf16.gmra.mxu0 %v508
    %v531 = vpop.f32.mrf.mxu0
    %v532 = vadd.f32 %v488, %v531
    %v533 = vpop.f32.mrf.mxu0
    %v534 = vadd.f32 %v490, %v533
    %535 = vmatmul.bf16.gmra.mxu0 %v511
    %v536 = vpop.f32.mrf.mxu0
    %v537 = vadd.f32 %v493, %v536
    %v538 = vpop.f32.mrf.mxu0
    %v539 = vadd.f32 %v495, %v538
    %540 = vmatmul.bf16.gmra.mxu0 %v514
    %v541 = vpop.f32.mrf.mxu0
    %v542 = vadd.f32 %v498, %v541
    %v543 = vpop.f32.mrf.mxu0
    %v544 = vadd.f32 %v500, %v543
    %545 = vmatmul.bf16.gmra.mxu0 %v517
    %v546 = vpop.f32.mrf.mxu0
    %v547 = vadd.f32 %v503, %v546
    %v548 = vpop.f32.mrf.mxu0
    %v549 = vadd.f32 %v505, %v548
    %550 = vdwg.mxu0
    %s551 = scalar_lea.vmem [#allocation2], 2
    %v552 = vld [vmem:[%s551] ss:$4 sm:$0xff]
    %s553 = scalar_lea.vmem [#allocation2], 34
    %v554 = vld [vmem:[%s553] ss:$4 sm:$0xff]
    %s555 = scalar_lea.vmem [#allocation2], 66
    %v556 = vld [vmem:[%s555] ss:$4 sm:$0xff]
    %s557 = scalar_lea.vmem [#allocation2], 98
    %v558 = vld [vmem:[%s557] ss:$4 sm:$0xff]
    %s559 = scalar_lea.vmem [#allocation2], 130
    %v560 = vld [vmem:[%s559] ss:$4 sm:$0xff]
    %s561 = scalar_lea.vmem [#allocation2], 162
    %v562 = vld [vmem:[%s561] ss:$4 sm:$0xff]
    %s563 = scalar_lea.vmem [#allocation2], 194
    %v564 = vld [vmem:[%s563] ss:$4 sm:$0xff]
    %s565 = scalar_lea.vmem [#allocation2], 226
    %v566 = vld [vmem:[%s565] ss:$4 sm:$0xff]
    %v567 = vpack.c.bf16 %v554, %v552
    %v568 = vpack.c.bf16 %v558, %v556
    %v569 = vpack.c.bf16 %v562, %v560
    %v570 = vpack.c.bf16 %v566, %v564
    %s571 = scalar_lea.vmem [#allocation10], 2
    %v572 = vld [vmem:[%s571] sm:$0x1]
    %v574 = vsel %vm303, %v567, 0
    %v577 = vsel %vm303, %v568, 0
    %v580 = vsel %vm303, %v569, 0
    %v583 = vsel %vm303, %v570, 0
    %v586 = vsel %vm474, %v572, 0
    %588 = vmatpush.bf16.msra.mxu0 0
    %589 = vmatpush.bf16.msra.mxu0 0
    %590 = vmatpush.bf16.msra.mxu0 0
    %591 = vmatpush.bf16.msra.mxu0 0
    %592 = vmatpush.bf16.msra.mxu0 0
    %593 = vmatpush.bf16.msra.mxu0 0
    %594 = vmatpush.bf16.msra.mxu0 0
    %595 = vmatpush.bf16.msra.mxu0 %v586
    %596 = vmatmul.bf16.gmra.mxu0 %v574
    %v597 = vpop.f32.mrf.mxu0
    %v598 = vadd.f32 0.0, %v597
    %v599 = vpop.f32.mrf.mxu0
    %v600 = vadd.f32 0.0, %v599
    %601 = vmatmul.bf16.gmra.mxu0 %v577
    %v602 = vpop.f32.mrf.mxu0
    %v603 = vadd.f32 0.0, %v602
    %v604 = vpop.f32.mrf.mxu0
    %v605 = vadd.f32 0.0, %v604
    %606 = vmatmul.bf16.gmra.mxu0 %v580
    %v607 = vpop.f32.mrf.mxu0
    %v608 = vadd.f32 0.0, %v607
    %v609 = vpop.f32.mrf.mxu0
    %v610 = vadd.f32 0.0, %v609
    %611 = vmatmul.bf16.gmra.mxu0 %v583
    %v612 = vpop.f32.mrf.mxu0
    %v613 = vadd.f32 0.0, %v612
    %v614 = vpop.f32.mrf.mxu0
    %v615 = vadd.f32 0.0, %v614
    %616 = vdwg.mxu0
    %v617 = vadd.f32 %v532, %v598
    %v618 = vadd.f32 %v534, %v600
    %v619 = vadd.f32 %v537, %v603
    %v620 = vadd.f32 %v539, %v605
    %v621 = vadd.f32 %v542, %v608
    %v622 = vadd.f32 %v544, %v610
    %v623 = vadd.f32 %v547, %v613
    %v624 = vadd.f32 %v549, %v615
    %s625 = scalar_lea.vmem [#allocation2], 3
    %v626 = vld [vmem:[%s625] ss:$4 sm:$0xff]
    %s627 = scalar_lea.vmem [#allocation2], 35
    %v628 = vld [vmem:[%s627] ss:$4 sm:$0xff]
    %s629 = scalar_lea.vmem [#allocation2], 67
    %v630 = vld [vmem:[%s629] ss:$4 sm:$0xff]
    %s631 = scalar_lea.vmem [#allocation2], 99
    %v632 = vld [vmem:[%s631] ss:$4 sm:$0xff]
    %s633 = scalar_lea.vmem [#allocation2], 131
    %v634 = vld [vmem:[%s633] ss:$4 sm:$0xff]
    %s635 = scalar_lea.vmem [#allocation2], 163
    %v636 = vld [vmem:[%s635] ss:$4 sm:$0xff]
    %s637 = scalar_lea.vmem [#allocation2], 195
    %v638 = vld [vmem:[%s637] ss:$4 sm:$0xff]
    %s639 = scalar_lea.vmem [#allocation2], 227
    %v640 = vld [vmem:[%s639] ss:$4 sm:$0xff]
    %v641 = vpack.c.bf16 %v628, %v626
    %v642 = vpack.c.bf16 %v632, %v630
    %v643 = vpack.c.bf16 %v636, %v634
    %v644 = vpack.c.bf16 %v640, %v638
    %s645 = scalar_lea.vmem [#allocation10], 3
    %v646 = vld [vmem:[%s645] sm:$0x1]
    %v648 = vsel %vm303, %v641, 0
    %v651 = vsel %vm303, %v642, 0
    %v654 = vsel %vm303, %v643, 0
    %v657 = vsel %vm303, %v644, 0
    %v660 = vsel %vm474, %v646, 0
    %662 = vmatpush.bf16.msra.mxu0 0
    %663 = vmatpush.bf16.msra.mxu0 0
    %664 = vmatpush.bf16.msra.mxu0 0
    %665 = vmatpush.bf16.msra.mxu0 0
    %666 = vmatpush.bf16.msra.mxu0 0
    %667 = vmatpush.bf16.msra.mxu0 0
    %668 = vmatpush.bf16.msra.mxu0 0
    %669 = vmatpush.bf16.msra.mxu0 %v660
    %670 = vmatmul.bf16.gmra.mxu0 %v648
    %v671 = vpop.f32.mrf.mxu0
    %v672 = vadd.f32 0.0, %v671
    %v673 = vpop.f32.mrf.mxu0
    %v674 = vadd.f32 0.0, %v673
    %675 = vmatmul.bf16.gmra.mxu0 %v651
    %v676 = vpop.f32.mrf.mxu0
    %v677 = vadd.f32 0.0, %v676
    %v678 = vpop.f32.mrf.mxu0
    %v679 = vadd.f32 0.0, %v678
    %680 = vmatmul.bf16.gmra.mxu0 %v654
    %v681 = vpop.f32.mrf.mxu0
    %v682 = vadd.f32 0.0, %v681
    %v683 = vpop.f32.mrf.mxu0
    %v684 = vadd.f32 0.0, %v683
    %685 = vmatmul.bf16.gmra.mxu0 %v657
    %v686 = vpop.f32.mrf.mxu0
    %v687 = vadd.f32 0.0, %v686
    %v688 = vpop.f32.mrf.mxu0
    %v689 = vadd.f32 0.0, %v688
    %690 = vdwg.mxu0
    %v691 = vadd.f32 %v617, %v672
    %v692 = vadd.f32 %v618, %v674
    %v693 = vadd.f32 %v619, %v677
    %v694 = vadd.f32 %v620, %v679
    %v695 = vadd.f32 %v621, %v682
    %v696 = vadd.f32 %v622, %v684
    %v697 = vadd.f32 %v623, %v687
    %v698 = vadd.f32 %v624, %v689
    %s699 = scalar_lea.vmem [#allocation2], 4
    %v700 = vld [vmem:[%s699] ss:$4 sm:$0xff]
    %s701 = scalar_lea.vmem [#allocation2], 36
    %v702 = vld [vmem:[%s701] ss:$4 sm:$0xff]
    %s703 = scalar_lea.vmem [#allocation2], 68
    %v704 = vld [vmem:[%s703] ss:$4 sm:$0xff]
    %s705 = scalar_lea.vmem [#allocation2], 100
    %v706 = vld [vmem:[%s705] ss:$4 sm:$0xff]
    %s707 = scalar_lea.vmem [#allocation2], 132
    %v708 = vld [vmem:[%s707] ss:$4 sm:$0xff]
    %s709 = scalar_lea.vmem [#allocation2], 164
    %v710 = vld [vmem:[%s709] ss:$4 sm:$0xff]
    %s711 = scalar_lea.vmem [#allocation2], 196
    %v712 = vld [vmem:[%s711] ss:$4 sm:$0xff]
    %s713 = scalar_lea.vmem [#allocation2], 228
    %v714 = vld [vmem:[%s713] ss:$4 sm:$0xff]
    %v715 = vpack.c.bf16 %v702, %v700
    %v716 = vpack.c.bf16 %v706, %v704
    %v717 = vpack.c.bf16 %v710, %v708
    %v718 = vpack.c.bf16 %v714, %v712
    %s719 = scalar_lea.vmem [#allocation10], 4
    %v720 = vld [vmem:[%s719] sm:$0x1]
    %v722 = vsel %vm303, %v715, 0
    %v725 = vsel %vm303, %v716, 0
    %v728 = vsel %vm303, %v717, 0
    %v731 = vsel %vm303, %v718, 0
    %v734 = vsel %vm474, %v720, 0
    %736 = vmatpush.bf16.msra.mxu0 0
    %737 = vmatpush.bf16.msra.mxu0 0
    %738 = vmatpush.bf16.msra.mxu0 0
    %739 = vmatpush.bf16.msra.mxu0 0
    %740 = vmatpush.bf16.msra.mxu0 0
    %741 = vmatpush.bf16.msra.mxu0 0
    %742 = vmatpush.bf16.msra.mxu0 0
    %743 = vmatpush.bf16.msra.mxu0 %v734
    %744 = vmatmul.bf16.gmra.mxu0 %v722
    %v745 = vpop.f32.mrf.mxu0
    %v746 = vadd.f32 0.0, %v745
    %v747 = vpop.f32.mrf.mxu0
    %v748 = vadd.f32 0.0, %v747
    %749 = vmatmul.bf16.gmra.mxu0 %v725
    %v750 = vpop.f32.mrf.mxu0
    %v751 = vadd.f32 0.0, %v750
    %v752 = vpop.f32.mrf.mxu0
    %v753 = vadd.f32 0.0, %v752
    %754 = vmatmul.bf16.gmra.mxu0 %v728
    %v755 = vpop.f32.mrf.mxu0
    %v756 = vadd.f32 0.0, %v755
    %v757 = vpop.f32.mrf.mxu0
    %v758 = vadd.f32 0.0, %v757
    %759 = vmatmul.bf16.gmra.mxu0 %v731
    %v760 = vpop.f32.mrf.mxu0
    %v761 = vadd.f32 0.0, %v760
    %v762 = vpop.f32.mrf.mxu0
    %v763 = vadd.f32 0.0, %v762
    %764 = vdwg.mxu0
    %v765 = vadd.f32 %v691, %v746
    %v766 = vadd.f32 %v692, %v748
    %v767 = vadd.f32 %v693, %v751
    %v768 = vadd.f32 %v694, %v753
    %v769 = vadd.f32 %v695, %v756
    %v770 = vadd.f32 %v696, %v758
    %v771 = vadd.f32 %v697, %v761
    %v772 = vadd.f32 %v698, %v763
    %s773 = scalar_lea.vmem [#allocation2], 5
    %v774 = vld [vmem:[%s773] ss:$4 sm:$0xff]
    %s775 = scalar_lea.vmem [#allocation2], 37
    %v776 = vld [vmem:[%s775] ss:$4 sm:$0xff]
    %s777 = scalar_lea.vmem [#allocation2], 69
    %v778 = vld [vmem:[%s777] ss:$4 sm:$0xff]
    %s779 = scalar_lea.vmem [#allocation2], 101
    %v780 = vld [vmem:[%s779] ss:$4 sm:$0xff]
    %s781 = scalar_lea.vmem [#allocation2], 133
    %v782 = vld [vmem:[%s781] ss:$4 sm:$0xff]
    %s783 = scalar_lea.vmem [#allocation2], 165
    %v784 = vld [vmem:[%s783] ss:$4 sm:$0xff]
    %s785 = scalar_lea.vmem [#allocation2], 197
    %v786 = vld [vmem:[%s785] ss:$4 sm:$0xff]
    %s787 = scalar_lea.vmem [#allocation2], 229
    %v788 = vld [vmem:[%s787] ss:$4 sm:$0xff]
    %v789 = vpack.c.bf16 %v776, %v774
    %v790 = vpack.c.bf16 %v780, %v778
    %v791 = vpack.c.bf16 %v784, %v782
    %v792 = vpack.c.bf16 %v788, %v786
    %s793 = scalar_lea.vmem [#allocation10], 5
    %v794 = vld [vmem:[%s793] sm:$0x1]
    %v796 = vsel %vm303, %v789, 0
    %v799 = vsel %vm303, %v790, 0
    %v802 = vsel %vm303, %v791, 0
    %v805 = vsel %vm303, %v792, 0
    %v808 = vsel %vm474, %v794, 0
    %810 = vmatpush.bf16.msra.mxu0 0
    %811 = vmatpush.bf16.msra.mxu0 0
    %812 = vmatpush.bf16.msra.mxu0 0
    %813 = vmatpush.bf16.msra.mxu0 0
    %814 = vmatpush.bf16.msra.mxu0 0
    %815 = vmatpush.bf16.msra.mxu0 0
    %816 = vmatpush.bf16.msra.mxu0 0
    %817 = vmatpush.bf16.msra.mxu0 %v808
    %818 = vmatmul.bf16.gmra.mxu0 %v796
    %v819 = vpop.f32.mrf.mxu0
    %v820 = vadd.f32 0.0, %v819
    %v821 = vpop.f32.mrf.mxu0
    %v822 = vadd.f32 0.0, %v821
    %823 = vmatmul.bf16.gmra.mxu0 %v799
    %v824 = vpop.f32.mrf.mxu0
    %v825 = vadd.f32 0.0, %v824
    %v826 = vpop.f32.mrf.mxu0
    %v827 = vadd.f32 0.0, %v826
    %828 = vmatmul.bf16.gmra.mxu0 %v802
    %v829 = vpop.f32.mrf.mxu0
    %v830 = vadd.f32 0.0, %v829
    %v831 = vpop.f32.mrf.mxu0
    %v832 = vadd.f32 0.0, %v831
    %833 = vmatmul.bf16.gmra.mxu0 %v805
    %v834 = vpop.f32.mrf.mxu0
    %v835 = vadd.f32 0.0, %v834
    %v836 = vpop.f32.mrf.mxu0
    %v837 = vadd.f32 0.0, %v836
    %838 = vdwg.mxu0
    %v839 = vadd.f32 %v765, %v820
    %v840 = vadd.f32 %v766, %v822
    %v841 = vadd.f32 %v767, %v825
    %v842 = vadd.f32 %v768, %v827
    %v843 = vadd.f32 %v769, %v830
    %v844 = vadd.f32 %v770, %v832
    %v845 = vadd.f32 %v771, %v835
    %v846 = vadd.f32 %v772, %v837
    %s847 = scalar_lea.vmem [#allocation2], 6
    %v848 = vld [vmem:[%s847] ss:$4 sm:$0xff]
    %s849 = scalar_lea.vmem [#allocation2], 38
    %v850 = vld [vmem:[%s849] ss:$4 sm:$0xff]
    %s851 = scalar_lea.vmem [#allocation2], 70
    %v852 = vld [vmem:[%s851] ss:$4 sm:$0xff]
    %s853 = scalar_lea.vmem [#allocation2], 102
    %v854 = vld [vmem:[%s853] ss:$4 sm:$0xff]
    %s855 = scalar_lea.vmem [#allocation2], 134
    %v856 = vld [vmem:[%s855] ss:$4 sm:$0xff]
    %s857 = scalar_lea.vmem [#allocation2], 166
    %v858 = vld [vmem:[%s857] ss:$4 sm:$0xff]
    %s859 = scalar_lea.vmem [#allocation2], 198
    %v860 = vld [vmem:[%s859] ss:$4 sm:$0xff]
    %s861 = scalar_lea.vmem [#allocation2], 230
    %v862 = vld [vmem:[%s861] ss:$4 sm:$0xff]
    %v863 = vpack.c.bf16 %v850, %v848
    %v864 = vpack.c.bf16 %v854, %v852
    %v865 = vpack.c.bf16 %v858, %v856
    %v866 = vpack.c.bf16 %v862, %v860
    %s867 = scalar_lea.vmem [#allocation10], 6
    %v868 = vld [vmem:[%s867] sm:$0x1]
    %v870 = vsel %vm303, %v863, 0
    %v873 = vsel %vm303, %v864, 0
    %v876 = vsel %vm303, %v865, 0
    %v879 = vsel %vm303, %v866, 0
    %v882 = vsel %vm474, %v868, 0
    %884 = vmatpush.bf16.msra.mxu0 0
    %885 = vmatpush.bf16.msra.mxu0 0
    %886 = vmatpush.bf16.msra.mxu0 0
    %887 = vmatpush.bf16.msra.mxu0 0
    %888 = vmatpush.bf16.msra.mxu0 0
    %889 = vmatpush.bf16.msra.mxu0 0
    %890 = vmatpush.bf16.msra.mxu0 0
    %891 = vmatpush.bf16.msra.mxu0 %v882
    %892 = vmatmul.bf16.gmra.mxu0 %v870
    %v893 = vpop.f32.mrf.mxu0
    %v894 = vadd.f32 0.0, %v893
    %v895 = vpop.f32.mrf.mxu0
    %v896 = vadd.f32 0.0, %v895
    %897 = vmatmul.bf16.gmra.mxu0 %v873
    %v898 = vpop.f32.mrf.mxu0
    %v899 = vadd.f32 0.0, %v898
    %v900 = vpop.f32.mrf.mxu0
    %v901 = vadd.f32 0.0, %v900
    %902 = vmatmul.bf16.gmra.mxu0 %v876
    %v903 = vpop.f32.mrf.mxu0
    %v904 = vadd.f32 0.0, %v903
    %v905 = vpop.f32.mrf.mxu0
    %v906 = vadd.f32 0.0, %v905
    %907 = vmatmul.bf16.gmra.mxu0 %v879
    %v908 = vpop.f32.mrf.mxu0
    %v909 = vadd.f32 0.0, %v908
    %v910 = vpop.f32.mrf.mxu0
    %v911 = vadd.f32 0.0, %v910
    %912 = vdwg.mxu0
    %v913 = vadd.f32 %v839, %v894
    %v914 = vadd.f32 %v840, %v896
    %v915 = vadd.f32 %v841, %v899
    %v916 = vadd.f32 %v842, %v901
    %v917 = vadd.f32 %v843, %v904
    %v918 = vadd.f32 %v844, %v906
    %v919 = vadd.f32 %v845, %v909
    %v920 = vadd.f32 %v846, %v911
    %v921 = vld [vmem:[#allocation12] sm:$0x1]
    %v923 = vperm.slane %v921, 0
    %v925 = vadd.f32 %v913, %v923
    %v926 = vadd.f32 %v914, %v923
    %v927 = vadd.f32 %v915, %v923
    %v928 = vadd.f32 %v916, %v923
    %v929 = vadd.f32 %v917, %v923
    %v930 = vadd.f32 %v918, %v923
    %v931 = vadd.f32 %v919, %v923
    %v932 = vadd.f32 %v920, %v923
    %v933 = vmax.f32 %v925, 0.0
    %v934 = vmax.f32 %v926, 0.0
    %v935 = vmax.f32 %v927, 0.0
    %v936 = vmax.f32 %v928, 0.0
    %v937 = vmax.f32 %v929, 0.0
    %v938 = vmax.f32 %v930, 0.0
    %v939 = vmax.f32 %v931, 0.0
    %v940 = vmax.f32 %v932, 0.0
    %941 = vst.msk [vmem:[#allocation3 + $0x2] sm:$0xff] %vm338, %v933
    %942 = vst.msk [vmem:[#allocation3 + $0xa] sm:$0xff] %vm338, %v934
    %943 = vst.msk [vmem:[#allocation3 + $0x12] sm:$0xff] %vm338, %v935
    %944 = vst.msk [vmem:[#allocation3 + $0x1a] sm:$0xff] %vm338, %v936
    %945 = vst.msk [vmem:[#allocation3 + $0x22] sm:$0xff] %vm338, %v937
    %946 = vst.msk [vmem:[#allocation3 + $0x2a] sm:$0xff] %vm338, %v938
    %947 = vst.msk [vmem:[#allocation3 + $0x32] sm:$0xff] %vm338, %v939
    %948 = vst.msk [vmem:[#allocation3 + $0x3a] sm:$0xff] %vm338, %v940
    %v949 = vld [vmem:[#allocation3] ss:$4 sm:$0xff]
    %s950 = scalar_lea.vmem [#allocation3], 32
    %v951 = vld [vmem:[%s950] ss:$4 sm:$0xff]
    %v952 = vpack.c.bf16 %v951, %v949
    %v953 = vld [vmem:[%s4] sm:$0xf]
    %v954 = vld [vmem:[%s4 + $0x4] sm:$0xf]
    %v955 = vld [vmem:[%s4 + $0x8] sm:$0xf]
    %v956 = vld [vmem:[%s4 + $0xc] sm:$0xf]
    %s957 = scalar_lea.vmem [#allocation3], 1
    %v958 = vld [vmem:[%s957] ss:$4 sm:$0xff]
    %s959 = scalar_lea.vmem [#allocation3], 33
    %v960 = vld [vmem:[%s959] ss:$4 sm:$0xff]
    %v961 = vpack.c.bf16 %v960, %v958
    %s962 = scalar_lea.vmem %s4, 16
    %v963 = vld [vmem:[%s962] sm:$0xf]
    %v964 = vld [vmem:[%s962 + $0x4] sm:$0xf]
    %v965 = vld [vmem:[%s962 + $0x8] sm:$0xf]
    %v966 = vld [vmem:[%s962 + $0xc] sm:$0xf]
    %v971 = vunpack.c.l.b16 %v963
    %v972 = vunpack.c.l.b16 %v964
    %v973 = vunpack.c.l.b16 %v965
    %v974 = vunpack.c.l.b16 %v966
    %v975 = vpack.c.b16 %v972, %v971
    %v976 = vpack.c.b16 %v974, %v973
    %v980 = vsel %vm338, %v961, 0
    %982 = vmatpush.bf16.msra.mxu0 0
    %983 = vmatpush.bf16.msra.mxu0 0
    %984 = vmatpush.bf16.msra.mxu0 0
    %985 = vmatpush.bf16.msra.mxu0 0
    %986 = vmatpush.bf16.msra.mxu0 0
    %987 = vmatpush.bf16.msra.mxu0 0
    %988 = vmatpush.bf16.msra.mxu0 %v976
    %989 = vmatpush.bf16.msra.mxu0 %v975
    %990 = vmatmul.bf16.gmra.mxu0 %v980
    %v991 = vpop.f32.mrf.mxu0
    %v992 = vadd.f32 0.0, %v991
    %v993 = vpop.f32.mrf.mxu0
    %v994 = vadd.f32 0.0, %v993
    %995 = vdwg.mxu0
    %v1000 = vunpack.c.l.b16 %v953
    %v1001 = vunpack.c.l.b16 %v954
    %v1002 = vunpack.c.l.b16 %v955
    %v1003 = vunpack.c.l.b16 %v956
    %v1004 = vpack.c.b16 %v1001, %v1000
    %v1005 = vpack.c.b16 %v1003, %v1002
    %v1009 = vsel %vm338, %v952, 0
    %1011 = vmatpush.bf16.msra.mxu0 0
    %1012 = vmatpush.bf16.msra.mxu0 0
    %1013 = vmatpush.bf16.msra.mxu0 0
    %1014 = vmatpush.bf16.msra.mxu0 0
    %1015 = vmatpush.bf16.msra.mxu0 0
    %1016 = vmatpush.bf16.msra.mxu0 0
    %1017 = vmatpush.bf16.msra.mxu0 %v1005
    %1018 = vmatpush.bf16.msra.mxu0 %v1004
    %1019 = vmatmul.bf16.gmra.mxu0 %v1009
    %v1020 = vpop.f32.mrf.mxu0
    %v1021 = vadd.f32 %v992, %v1020
    %v1022 = vpop.f32.mrf.mxu0
    %v1023 = vadd.f32 %v994, %v1022
    %1024 = vdwg.mxu0
    %s1025 = scalar_lea.vmem [#allocation3], 2
    %v1026 = vld [vmem:[%s1025] ss:$4 sm:$0xff]
    %s1027 = scalar_lea.vmem [#allocation3], 34
    %v1028 = vld [vmem:[%s1027] ss:$4 sm:$0xff]
    %v1029 = vpack.c.bf16 %v1028, %v1026
    %s1030 = scalar_lea.vmem %s4, 32
    %v1031 = vld [vmem:[%s1030] sm:$0xf]
    %v1032 = vld [vmem:[%s1030 + $0x4] sm:$0xf]
    %v1033 = vld [vmem:[%s1030 + $0x8] sm:$0xf]
    %v1034 = vld [vmem:[%s1030 + $0xc] sm:$0xf]
    %v1039 = vunpack.c.l.b16 %v1031
    %v1040 = vunpack.c.l.b16 %v1032
    %v1041 = vunpack.c.l.b16 %v1033
    %v1042 = vunpack.c.l.b16 %v1034
    %v1043 = vpack.c.b16 %v1040, %v1039
    %v1044 = vpack.c.b16 %v1042, %v1041
    %v1048 = vsel %vm338, %v1029, 0
    %1050 = vmatpush.bf16.msra.mxu0 0
    %1051 = vmatpush.bf16.msra.mxu0 0
    %1052 = vmatpush.bf16.msra.mxu0 0
    %1053 = vmatpush.bf16.msra.mxu0 0
    %1054 = vmatpush.bf16.msra.mxu0 0
    %1055 = vmatpush.bf16.msra.mxu0 0
    %1056 = vmatpush.bf16.msra.mxu0 %v1044
    %1057 = vmatpush.bf16.msra.mxu0 %v1043
    %1058 = vmatmul.bf16.gmra.mxu0 %v1048
    %v1059 = vpop.f32.mrf.mxu0
    %v1060 = vadd.f32 0.0, %v1059
    %v1061 = vpop.f32.mrf.mxu0
    %v1062 = vadd.f32 0.0, %v1061
    %1063 = vdwg.mxu0
    %v1064 = vadd.f32 %v1021, %v1060
    %v1065 = vadd.f32 %v1023, %v1062
    %s1066 = scalar_lea.vmem [#allocation3], 3
    %v1067 = vld [vmem:[%s1066] ss:$4 sm:$0xff]
    %s1068 = scalar_lea.vmem [#allocation3], 35
    %v1069 = vld [vmem:[%s1068] ss:$4 sm:$0xff]
    %v1070 = vpack.c.bf16 %v1069, %v1067
    %s1071 = scalar_lea.vmem %s4, 48
    %v1072 = vld [vmem:[%s1071] sm:$0xf]
    %v1073 = vld [vmem:[%s1071 + $0x4] sm:$0xf]
    %v1074 = vld [vmem:[%s1071 + $0x8] sm:$0xf]
    %v1075 = vld [vmem:[%s1071 + $0xc] sm:$0xf]
    %v1080 = vunpack.c.l.b16 %v1072
    %v1081 = vunpack.c.l.b16 %v1073
    %v1082 = vunpack.c.l.b16 %v1074
    %v1083 = vunpack.c.l.b16 %v1075
    %v1084 = vpack.c.b16 %v1081, %v1080
    %v1085 = vpack.c.b16 %v1083, %v1082
    %v1089 = vsel %vm338, %v1070, 0
    %1091 = vmatpush.bf16.msra.mxu0 0
    %1092 = vmatpush.bf16.msra.mxu0 0
    %1093 = vmatpush.bf16.msra.mxu0 0
    %1094 = vmatpush.bf16.msra.mxu0 0
    %1095 = vmatpush.bf16.msra.mxu0 0
    %1096 = vmatpush.bf16.msra.mxu0 0
    %1097 = vmatpush.bf16.msra.mxu0 %v1085
    %1098 = vmatpush.bf16.msra.mxu0 %v1084
    %1099 = vmatmul.bf16.gmra.mxu0 %v1089
    %v1100 = vpop.f32.mrf.mxu0
    %v1101 = vadd.f32 0.0, %v1100
    %v1102 = vpop.f32.mrf.mxu0
    %v1103 = vadd.f32 0.0, %v1102
    %1104 = vdwg.mxu0
    %v1105 = vadd.f32 %v1064, %v1101
    %v1106 = vadd.f32 %v1065, %v1103
    %s1107 = scalar_lea.vmem [#allocation3], 4
    %v1108 = vld [vmem:[%s1107] ss:$4 sm:$0xff]
    %s1109 = scalar_lea.vmem [#allocation3], 36
    %v1110 = vld [vmem:[%s1109] ss:$4 sm:$0xff]
    %v1111 = vpack.c.bf16 %v1110, %v1108
    %s1112 = scalar_lea.vmem %s4, 64
    %v1113 = vld [vmem:[%s1112] sm:$0xf]
    %v1114 = vld [vmem:[%s1112 + $0x4] sm:$0xf]
    %v1115 = vld [vmem:[%s1112 + $0x8] sm:$0xf]
    %v1116 = vld [vmem:[%s1112 + $0xc] sm:$0xf]
    %v1121 = vunpack.c.l.b16 %v1113
    %v1122 = vunpack.c.l.b16 %v1114
    %v1123 = vunpack.c.l.b16 %v1115
    %v1124 = vunpack.c.l.b16 %v1116
    %v1125 = vpack.c.b16 %v1122, %v1121
    %v1126 = vpack.c.b16 %v1124, %v1123
    %v1130 = vsel %vm338, %v1111, 0
    %1132 = vmatpush.bf16.msra.mxu0 0
    %1133 = vmatpush.bf16.msra.mxu0 0
    %1134 = vmatpush.bf16.msra.mxu0 0
    %1135 = vmatpush.bf16.msra.mxu0 0
    %1136 = vmatpush.bf16.msra.mxu0 0
    %1137 = vmatpush.bf16.msra.mxu0 0
    %1138 = vmatpush.bf16.msra.mxu0 %v1126
    %1139 = vmatpush.bf16.msra.mxu0 %v1125
    %1140 = vmatmul.bf16.gmra.mxu0 %v1130
    %v1141 = vpop.f32.mrf.mxu0
    %v1142 = vadd.f32 0.0, %v1141
    %v1143 = vpop.f32.mrf.mxu0
    %v1144 = vadd.f32 0.0, %v1143
    %1145 = vdwg.mxu0
    %v1146 = vadd.f32 %v1105, %v1142
    %v1147 = vadd.f32 %v1106, %v1144
    %v1148 = vld [vmem:[#allocation13] sm:$0x1]
    %v1150 = vperm.slane %v1148, 0
    %v1152 = vadd.f32 %v1146, %v1150
    %v1153 = vadd.f32 %v1147, %v1150
    %v1154 = vmax.f32 %v1152, 0.0
    %v1155 = vmax.f32 %v1153, 0.0
    %1156 = vst.msk [vmem:[#allocation4 + $0x1] sm:$0xff] %vm349, %v1154
    %1157 = vst.msk [vmem:[#allocation4 + $0x9] sm:$0xff] %vm349, %v1155
    %v1158 = vld [vmem:[#allocation4] ss:$2 sm:$0xff]
    %v1159 = vpack.c.bf16 %v1158, %v1158
    %v1160 = vld [vmem:[#allocation15] sm:$0xf]
    %v1161 = vld [vmem:[#allocation15 + $0x4] sm:$0xf]
    %v1162 = vld [vmem:[#allocation15 + $0x8] sm:$0xf]
    %v1163 = vld [vmem:[#allocation15 + $0xc] sm:$0xf]
    %v1164 = vld [vmem:[#allocation15 + $0x10] sm:$0xf]
    %v1165 = vld [vmem:[#allocation15 + $0x14] sm:$0xf]
    %v1166 = vld [vmem:[#allocation15 + $0x18] sm:$0xf]
    %v1167 = vld [vmem:[#allocation15 + $0x1c] sm:$0xf]
    %s1168 = scalar_lea.vmem [#allocation4], 1
    %v1169 = vld [vmem:[%s1168] ss:$2 sm:$0xff]
    %v1170 = vpack.c.bf16 %v1169, %v1169
    %s1171 = scalar_lea.vmem [#allocation15], 32
    %v1172 = vld [vmem:[%s1171] sm:$0xf]
    %v1173 = vld [vmem:[%s1171 + $0x4] sm:$0xf]
    %v1174 = vld [vmem:[%s1171 + $0x8] sm:$0xf]
    %v1175 = vld [vmem:[%s1171 + $0xc] sm:$0xf]
    %v1176 = vld [vmem:[%s1171 + $0x10] sm:$0xf]
    %v1177 = vld [vmem:[%s1171 + $0x14] sm:$0xf]
    %v1178 = vld [vmem:[%s1171 + $0x18] sm:$0xf]
    %v1179 = vld [vmem:[%s1171 + $0x1c] sm:$0xf]
    %v1188 = vunpack.c.l.b16 %v1172
    %v1189 = vunpack.c.l.b16 %v1173
    %v1190 = vunpack.c.l.b16 %v1174
    %v1191 = vunpack.c.l.b16 %v1175
    %v1192 = vunpack.c.l.b16 %v1176
    %v1193 = vunpack.c.l.b16 %v1177
    %v1194 = vunpack.c.l.b16 %v1178
    %v1195 = vunpack.c.l.b16 %v1179
    %v1196 = vpack.c.b16 %v1189, %v1188
    %v1197 = vpack.c.b16 %v1191, %v1190
    %v1198 = vpack.c.b16 %v1193, %v1192
    %v1199 = vpack.c.b16 %v1195, %v1194
    %v1205 = vsel %vm349, %v1170, 0
    %1207 = vmatpush.bf16.msra.mxu0 0
    %1208 = vmatpush.bf16.msra.mxu0 0
    %1209 = vmatpush.bf16.msra.mxu0 0
    %1210 = vmatpush.bf16.msra.mxu0 0
    %1211 = vmatpush.bf16.msra.mxu0 %v1199
    %1212 = vmatpush.bf16.msra.mxu0 %v1198
    %1213 = vmatpush.bf16.msra.mxu0 %v1197
    %1214 = vmatpush.bf16.msra.mxu0 %v1196
    %1215 = vmatmul.bf16.gmra.mxu0 %v1205
    %v1216 = vpop.f32.mrf.mxu0
    %v1217 = vadd.f32 0.0, %v1216
    %v1218 = vpop.f32.mrf.mxu0
    %1219 = vdwg.mxu0
    %v1228 = vunpack.c.l.b16 %v1160
    %v1229 = vunpack.c.l.b16 %v1161
    %v1230 = vunpack.c.l.b16 %v1162
    %v1231 = vunpack.c.l.b16 %v1163
    %v1232 = vunpack.c.l.b16 %v1164
    %v1233 = vunpack.c.l.b16 %v1165
    %v1234 = vunpack.c.l.b16 %v1166
    %v1235 = vunpack.c.l.b16 %v1167
    %v1236 = vpack.c.b16 %v1229, %v1228
    %v1237 = vpack.c.b16 %v1231, %v1230
    %v1238 = vpack.c.b16 %v1233, %v1232
    %v1239 = vpack.c.b16 %v1235, %v1234
    %v1245 = vsel %vm349, %v1159, 0
    %1247 = vmatpush.bf16.msra.mxu0 0
    %1248 = vmatpush.bf16.msra.mxu0 0
    %1249 = vmatpush.bf16.msra.mxu0 0
    %1250 = vmatpush.bf16.msra.mxu0 0
    %1251 = vmatpush.bf16.msra.mxu0 %v1239
    %1252 = vmatpush.bf16.msra.mxu0 %v1238
    %1253 = vmatpush.bf16.msra.mxu0 %v1237
    %1254 = vmatpush.bf16.msra.mxu0 %v1236
    %1255 = vmatmul.bf16.gmra.mxu0 %v1245
    %v1256 = vpop.f32.mrf.mxu0
    %v1257 = vadd.f32 %v1217, %v1256
    %v1258 = vpop.f32.mrf.mxu0
    %1259 = vdwg.mxu0
    %s1260 = scalar_lea.vmem [#allocation4], 2
    %v1261 = vld [vmem:[%s1260] ss:$2 sm:$0xff]
    %v1262 = vpack.c.bf16 %v1261, %v1261
    %s1263 = scalar_lea.vmem [#allocation15], 64
    %v1264 = vld [vmem:[%s1263] sm:$0xf]
    %v1265 = vld [vmem:[%s1263 + $0x4] sm:$0xf]
    %v1266 = vld [vmem:[%s1263 + $0x8] sm:$0xf]
    %v1267 = vld [vmem:[%s1263 + $0xc] sm:$0xf]
    %v1268 = vld [vmem:[%s1263 + $0x10] sm:$0xf]
    %v1269 = vld [vmem:[%s1263 + $0x14] sm:$0xf]
    %v1270 = vld [vmem:[%s1263 + $0x18] sm:$0xf]
    %v1271 = vld [vmem:[%s1263 + $0x1c] sm:$0xf]
    %v1280 = vunpack.c.l.b16 %v1264
    %v1281 = vunpack.c.l.b16 %v1265
    %v1282 = vunpack.c.l.b16 %v1266
    %v1283 = vunpack.c.l.b16 %v1267
    %v1284 = vunpack.c.l.b16 %v1268
    %v1285 = vunpack.c.l.b16 %v1269
    %v1286 = vunpack.c.l.b16 %v1270
    %v1287 = vunpack.c.l.b16 %v1271
    %v1288 = vpack.c.b16 %v1281, %v1280
    %v1289 = vpack.c.b16 %v1283, %v1282
    %v1290 = vpack.c.b16 %v1285, %v1284
    %v1291 = vpack.c.b16 %v1287, %v1286
    %v1297 = vsel %vm349, %v1262, 0
    %1299 = vmatpush.bf16.msra.mxu0 0
    %1300 = vmatpush.bf16.msra.mxu0 0
    %1301 = vmatpush.bf16.msra.mxu0 0
    %1302 = vmatpush.bf16.msra.mxu0 0
    %1303 = vmatpush.bf16.msra.mxu0 %v1291
    %1304 = vmatpush.bf16.msra.mxu0 %v1290
    %1305 = vmatpush.bf16.msra.mxu0 %v1289
    %1306 = vmatpush.bf16.msra.mxu0 %v1288
    %1307 = vmatmul.bf16.gmra.mxu0 %v1297
    %v1308 = vpop.f32.mrf.mxu0
    %v1309 = vadd.f32 0.0, %v1308
    %v1310 = vpop.f32.mrf.mxu0
    %1311 = vdwg.mxu0
    %v1312 = vadd.f32 %v1257, %v1309
    %v1313 = vld [vmem:[#allocation16] sm:$0x1]
    %v1315 = vperm.slane %v1313, 0
    %v1317 = vadd.f32 %v1312, %v1315
    %v1318 = vmax.f32 %v1317, 0.0
    %1319 = vst [vmem:[#allocation5 + $0x1] sm:$0xff] %v1318
    %v1320 = vld [vmem:[#allocation5] ss:$2 sm:$0xf]
    %v1321 = vpack.c.bf16 %v1320, %v1320
    %v1322 = vld [vmem:[%s8] sm:$0xff]
    %v1323 = vld [vmem:[%s8 + $0x8] sm:$0xff]
    %v1324 = vld [vmem:[%s8 + $0x10] sm:$0xff]
    %v1325 = vld [vmem:[%s8 + $0x18] sm:$0xff]
    %v1326 = vld [vmem:[%s8 + $0x20] sm:$0xff]
    %v1327 = vld [vmem:[%s8 + $0x28] sm:$0xff]
    %v1328 = vld [vmem:[%s8 + $0x30] sm:$0xff]
    %v1329 = vld [vmem:[%s8 + $0x38] sm:$0xff]
    %v1330 = vld [vmem:[%s8 + $0x40] sm:$0xff]
    %v1331 = vld [vmem:[%s8 + $0x48] sm:$0xff]
    %v1332 = vld [vmem:[%s8 + $0x50] sm:$0xff]
    %v1333 = vld [vmem:[%s8 + $0x58] sm:$0xff]
    %v1334 = vld [vmem:[%s8 + $0x60] sm:$0xff]
    %v1335 = vld [vmem:[%s8 + $0x68] sm:$0xff]
    %v1336 = vld [vmem:[%s8 + $0x70] sm:$0xff]
    %v1337 = vld [vmem:[%s8 + $0x78] sm:$0xff]
    %s1338 = scalar_lea.vmem [#allocation5], 1
    %v1339 = vld [vmem:[%s1338] ss:$2 sm:$0xf]
    %v1340 = vpack.c.bf16 %v1339, %v1339
    %s1341 = scalar_lea.vmem %s8, 128
    %v1342 = vld [vmem:[%s1341] sm:$0xff]
    %v1343 = vld [vmem:[%s1341 + $0x8] sm:$0xff]
    %v1344 = vld [vmem:[%s1341 + $0x10] sm:$0xff]
    %v1345 = vld [vmem:[%s1341 + $0x18] sm:$0xff]
    %v1346 = vld [vmem:[%s1341 + $0x20] sm:$0xff]
    %v1347 = vld [vmem:[%s1341 + $0x28] sm:$0xff]
    %v1348 = vld [vmem:[%s1341 + $0x30] sm:$0xff]
    %v1349 = vld [vmem:[%s1341 + $0x38] sm:$0xff]
    %v1350 = vld [vmem:[%s1341 + $0x40] sm:$0xff]
    %v1351 = vld [vmem:[%s1341 + $0x48] sm:$0xff]
    %v1352 = vld [vmem:[%s1341 + $0x50] sm:$0xff]
    %v1353 = vld [vmem:[%s1341 + $0x58] sm:$0xff]
    %v1354 = vld [vmem:[%s1341 + $0x60] sm:$0xff]
    %v1355 = vld [vmem:[%s1341 + $0x68] sm:$0xff]
    %v1356 = vld [vmem:[%s1341 + $0x70] sm:$0xff]
    %v1357 = vld [vmem:[%s1341 + $0x78] sm:$0xff]
    %v1374 = vunpack.c.l.b16 %v1342
    %v1375 = vunpack.c.h.b16 %v1342
    %v1376 = vunpack.c.l.b16 %v1343
    %v1377 = vunpack.c.h.b16 %v1343
    %v1378 = vunpack.c.l.b16 %v1344
    %v1379 = vunpack.c.h.b16 %v1344
    %v1380 = vunpack.c.l.b16 %v1345
    %v1381 = vunpack.c.h.b16 %v1345
    %v1382 = vunpack.c.l.b16 %v1346
    %v1383 = vunpack.c.h.b16 %v1346
    %v1384 = vunpack.c.l.b16 %v1347
    %v1385 = vunpack.c.h.b16 %v1347
    %v1386 = vunpack.c.l.b16 %v1348
    %v1387 = vunpack.c.h.b16 %v1348
    %v1388 = vunpack.c.l.b16 %v1349
    %v1389 = vunpack.c.h.b16 %v1349
    %v1390 = vunpack.c.l.b16 %v1350
    %v1391 = vunpack.c.h.b16 %v1350
    %v1392 = vunpack.c.l.b16 %v1351
    %v1393 = vunpack.c.h.b16 %v1351
    %v1394 = vunpack.c.l.b16 %v1352
    %v1395 = vunpack.c.h.b16 %v1352
    %v1396 = vunpack.c.l.b16 %v1353
    %v1397 = vunpack.c.h.b16 %v1353
    %v1398 = vunpack.c.l.b16 %v1354
    %v1399 = vunpack.c.h.b16 %v1354
    %v1400 = vunpack.c.l.b16 %v1355
    %v1401 = vunpack.c.h.b16 %v1355
    %v1402 = vunpack.c.l.b16 %v1356
    %v1403 = vunpack.c.h.b16 %v1356
    %v1404 = vunpack.c.l.b16 %v1357
    %v1405 = vunpack.c.h.b16 %v1357
    %v1406 = vpack.c.b16 %v1376, %v1374
    %v1407 = vpack.c.b16 %v1377, %v1375
    %v1408 = vpack.c.b16 %v1380, %v1378
    %v1409 = vpack.c.b16 %v1381, %v1379
    %v1410 = vpack.c.b16 %v1384, %v1382
    %v1411 = vpack.c.b16 %v1385, %v1383
    %v1412 = vpack.c.b16 %v1388, %v1386
    %v1413 = vpack.c.b16 %v1389, %v1387
    %v1414 = vpack.c.b16 %v1392, %v1390
    %v1415 = vpack.c.b16 %v1393, %v1391
    %v1416 = vpack.c.b16 %v1396, %v1394
    %v1417 = vpack.c.b16 %v1397, %v1395
    %v1418 = vpack.c.b16 %v1400, %v1398
    %v1419 = vpack.c.b16 %v1401, %v1399
    %v1420 = vpack.c.b16 %v1404, %v1402
    %v1421 = vpack.c.b16 %v1405, %v1403
    %1438 = vmatpush.bf16.msra.mxu0 %v1420
    %1439 = vmatpush.bf16.msra.mxu0 %v1418
    %1440 = vmatpush.bf16.msra.mxu0 %v1416
    %1441 = vmatpush.bf16.msra.mxu0 %v1414
    %1442 = vmatpush.bf16.msra.mxu0 %v1412
    %1443 = vmatpush.bf16.msra.mxu0 %v1410
    %1444 = vmatpush.bf16.msra.mxu0 %v1408
    %1445 = vmatpush.bf16.msra.mxu0 %v1406
    %1446 = vmatmul.bf16.gmra.mxu0 %v1340
    %v1447 = vpop.f32.mrf.mxu0
    %v1448 = vadd.f32 0.0, %v1447
    %v1449 = vpop.f32.mrf.mxu0
    %1450 = vdwg.mxu0
    %1451 = vmatpush.bf16.msra.mxu0 %v1421
    %1452 = vmatpush.bf16.msra.mxu0 %v1419
    %1453 = vmatpush.bf16.msra.mxu0 %v1417
    %1454 = vmatpush.bf16.msra.mxu0 %v1415
    %1455 = vmatpush.bf16.msra.mxu0 %v1413
    %1456 = vmatpush.bf16.msra.mxu0 %v1411
    %1457 = vmatpush.bf16.msra.mxu0 %v1409
    %1458 = vmatpush.bf16.msra.mxu0 %v1407
    %1459 = vmatmul.bf16.gmra.mxu0 %v1340
    %v1460 = vpop.f32.mrf.mxu0
    %v1461 = vadd.f32 0.0, %v1460
    %v1462 = vpop.f32.mrf.mxu0
    %1463 = vdwg.mxu0
    %v1480 = vunpack.c.l.b16 %v1322
    %v1481 = vunpack.c.h.b16 %v1322
    %v1482 = vunpack.c.l.b16 %v1323
    %v1483 = vunpack.c.h.b16 %v1323
    %v1484 = vunpack.c.l.b16 %v1324
    %v1485 = vunpack.c.h.b16 %v1324
    %v1486 = vunpack.c.l.b16 %v1325
    %v1487 = vunpack.c.h.b16 %v1325
    %v1488 = vunpack.c.l.b16 %v1326
    %v1489 = vunpack.c.h.b16 %v1326
    %v1490 = vunpack.c.l.b16 %v1327
    %v1491 = vunpack.c.h.b16 %v1327
    %v1492 = vunpack.c.l.b16 %v1328
    %v1493 = vunpack.c.h.b16 %v1328
    %v1494 = vunpack.c.l.b16 %v1329
    %v1495 = vunpack.c.h.b16 %v1329
    %v1496 = vunpack.c.l.b16 %v1330
    %v1497 = vunpack.c.h.b16 %v1330
    %v1498 = vunpack.c.l.b16 %v1331
    %v1499 = vunpack.c.h.b16 %v1331
    %v1500 = vunpack.c.l.b16 %v1332
    %v1501 = vunpack.c.h.b16 %v1332
    %v1502 = vunpack.c.l.b16 %v1333
    %v1503 = vunpack.c.h.b16 %v1333
    %v1504 = vunpack.c.l.b16 %v1334
    %v1505 = vunpack.c.h.b16 %v1334
    %v1506 = vunpack.c.l.b16 %v1335
    %v1507 = vunpack.c.h.b16 %v1335
    %v1508 = vunpack.c.l.b16 %v1336
    %v1509 = vunpack.c.h.b16 %v1336
    %v1510 = vunpack.c.l.b16 %v1337
    %v1511 = vunpack.c.h.b16 %v1337
    %v1512 = vpack.c.b16 %v1482, %v1480
    %v1513 = vpack.c.b16 %v1483, %v1481
    %v1514 = vpack.c.b16 %v1486, %v1484
    %v1515 = vpack.c.b16 %v1487, %v1485
    %v1516 = vpack.c.b16 %v1490, %v1488
    %v1517 = vpack.c.b16 %v1491, %v1489
    %v1518 = vpack.c.b16 %v1494, %v1492
    %v1519 = vpack.c.b16 %v1495, %v1493
    %v1520 = vpack.c.b16 %v1498, %v1496
    %v1521 = vpack.c.b16 %v1499, %v1497
    %v1522 = vpack.c.b16 %v1502, %v1500
    %v1523 = vpack.c.b16 %v1503, %v1501
    %v1524 = vpack.c.b16 %v1506, %v1504
    %v1525 = vpack.c.b16 %v1507, %v1505
    %v1526 = vpack.c.b16 %v1510, %v1508
    %v1527 = vpack.c.b16 %v1511, %v1509
    %1544 = vmatpush.bf16.msra.mxu0 %v1526
    %1545 = vmatpush.bf16.msra.mxu0 %v1524
    %1546 = vmatpush.bf16.msra.mxu0 %v1522
    %1547 = vmatpush.bf16.msra.mxu0 %v1520
    %1548 = vmatpush.bf16.msra.mxu0 %v1518
    %1549 = vmatpush.bf16.msra.mxu0 %v1516
    %1550 = vmatpush.bf16.msra.mxu0 %v1514
    %1551 = vmatpush.bf16.msra.mxu0 %v1512
    %1552 = vmatmul.bf16.gmra.mxu0 %v1321
    %v1553 = vpop.f32.mrf.mxu0
    %v1554 = vadd.f32 %v1448, %v1553
    %v1555 = vpop.f32.mrf.mxu0
    %1556 = vdwg.mxu0
    %1557 = vmatpush.bf16.msra.mxu0 %v1527
    %1558 = vmatpush.bf16.msra.mxu0 %v1525
    %1559 = vmatpush.bf16.msra.mxu0 %v1523
    %1560 = vmatpush.bf16.msra.mxu0 %v1521
    %1561 = vmatpush.bf16.msra.mxu0 %v1519
    %1562 = vmatpush.bf16.msra.mxu0 %v1517
    %1563 = vmatpush.bf16.msra.mxu0 %v1515
    %1564 = vmatpush.bf16.msra.mxu0 %v1513
    %1565 = vmatmul.bf16.gmra.mxu0 %v1321
    %v1566 = vpop.f32.mrf.mxu0
    %v1567 = vadd.f32 %v1461, %v1566
    %v1568 = vpop.f32.mrf.mxu0
    %1569 = vdwg.mxu0
    %s1570 = scalar_lea.vmem [#allocation5], 2
    %v1571 = vld [vmem:[%s1570] ss:$2 sm:$0xf]
    %v1572 = vpack.c.bf16 %v1571, %v1571
    %s1573 = scalar_lea.vmem %s8, 256
    %v1574 = vld [vmem:[%s1573] sm:$0xff]
    %v1575 = vld [vmem:[%s1573 + $0x8] sm:$0xff]
    %v1576 = vld [vmem:[%s1573 + $0x10] sm:$0xff]
    %v1577 = vld [vmem:[%s1573 + $0x18] sm:$0xff]
    %v1578 = vld [vmem:[%s1573 + $0x20] sm:$0xff]
    %v1579 = vld [vmem:[%s1573 + $0x28] sm:$0xff]
    %v1580 = vld [vmem:[%s1573 + $0x30] sm:$0xff]
    %v1581 = vld [vmem:[%s1573 + $0x38] sm:$0xff]
    %v1582 = vld [vmem:[%s1573 + $0x40] sm:$0xff]
    %v1583 = vld [vmem:[%s1573 + $0x48] sm:$0xff]
    %v1584 = vld [vmem:[%s1573 + $0x50] sm:$0xff]
    %v1585 = vld [vmem:[%s1573 + $0x58] sm:$0xff]
    %v1586 = vld [vmem:[%s1573 + $0x60] sm:$0xff]
    %v1587 = vld [vmem:[%s1573 + $0x68] sm:$0xff]
    %v1588 = vld [vmem:[%s1573 + $0x70] sm:$0xff]
    %v1589 = vld [vmem:[%s1573 + $0x78] sm:$0xff]
    %v1606 = vunpack.c.l.b16 %v1574
    %v1607 = vunpack.c.h.b16 %v1574
    %v1608 = vunpack.c.l.b16 %v1575
    %v1609 = vunpack.c.h.b16 %v1575
    %v1610 = vunpack.c.l.b16 %v1576
    %v1611 = vunpack.c.h.b16 %v1576
    %v1612 = vunpack.c.l.b16 %v1577
    %v1613 = vunpack.c.h.b16 %v1577
    %v1614 = vunpack.c.l.b16 %v1578
    %v1615 = vunpack.c.h.b16 %v1578
    %v1616 = vunpack.c.l.b16 %v1579
    %v1617 = vunpack.c.h.b16 %v1579
    %v1618 = vunpack.c.l.b16 %v1580
    %v1619 = vunpack.c.h.b16 %v1580
    %v1620 = vunpack.c.l.b16 %v1581
    %v1621 = vunpack.c.h.b16 %v1581
    %v1622 = vunpack.c.l.b16 %v1582
    %v1623 = vunpack.c.h.b16 %v1582
    %v1624 = vunpack.c.l.b16 %v1583
    %v1625 = vunpack.c.h.b16 %v1583
    %v1626 = vunpack.c.l.b16 %v1584
    %v1627 = vunpack.c.h.b16 %v1584
    %v1628 = vunpack.c.l.b16 %v1585
    %v1629 = vunpack.c.h.b16 %v1585
    %v1630 = vunpack.c.l.b16 %v1586
    %v1631 = vunpack.c.h.b16 %v1586
    %v1632 = vunpack.c.l.b16 %v1587
    %v1633 = vunpack.c.h.b16 %v1587
    %v1634 = vunpack.c.l.b16 %v1588
    %v1635 = vunpack.c.h.b16 %v1588
    %v1636 = vunpack.c.l.b16 %v1589
    %v1637 = vunpack.c.h.b16 %v1589
    %v1638 = vpack.c.b16 %v1608, %v1606
    %v1639 = vpack.c.b16 %v1609, %v1607
    %v1640 = vpack.c.b16 %v1612, %v1610
    %v1641 = vpack.c.b16 %v1613, %v1611
    %v1642 = vpack.c.b16 %v1616, %v1614
    %v1643 = vpack.c.b16 %v1617, %v1615
    %v1644 = vpack.c.b16 %v1620, %v1618
    %v1645 = vpack.c.b16 %v1621, %v1619
    %v1646 = vpack.c.b16 %v1624, %v1622
    %v1647 = vpack.c.b16 %v1625, %v1623
    %v1648 = vpack.c.b16 %v1628, %v1626
    %v1649 = vpack.c.b16 %v1629, %v1627
    %v1650 = vpack.c.b16 %v1632, %v1630
    %v1651 = vpack.c.b16 %v1633, %v1631
    %v1652 = vpack.c.b16 %v1636, %v1634
    %v1653 = vpack.c.b16 %v1637, %v1635
    %1670 = vmatpush.bf16.msra.mxu0 %v1652
    %1671 = vmatpush.bf16.msra.mxu0 %v1650
    %1672 = vmatpush.bf16.msra.mxu0 %v1648
    %1673 = vmatpush.bf16.msra.mxu0 %v1646
    %1674 = vmatpush.bf16.msra.mxu0 %v1644
    %1675 = vmatpush.bf16.msra.mxu0 %v1642
    %1676 = vmatpush.bf16.msra.mxu0 %v1640
    %1677 = vmatpush.bf16.msra.mxu0 %v1638
    %1678 = vmatmul.bf16.gmra.mxu0 %v1572
    %v1679 = vpop.f32.mrf.mxu0
    %v1680 = vadd.f32 0.0, %v1679
    %v1681 = vpop.f32.mrf.mxu0
    %1682 = vdwg.mxu0
    %1683 = vmatpush.bf16.msra.mxu0 %v1653
    %1684 = vmatpush.bf16.msra.mxu0 %v1651
    %1685 = vmatpush.bf16.msra.mxu0 %v1649
    %1686 = vmatpush.bf16.msra.mxu0 %v1647
    %1687 = vmatpush.bf16.msra.mxu0 %v1645
    %1688 = vmatpush.bf16.msra.mxu0 %v1643
    %1689 = vmatpush.bf16.msra.mxu0 %v1641
    %1690 = vmatpush.bf16.msra.mxu0 %v1639
    %1691 = vmatmul.bf16.gmra.mxu0 %v1572
    %v1692 = vpop.f32.mrf.mxu0
    %v1693 = vadd.f32 0.0, %v1692
    %v1694 = vpop.f32.mrf.mxu0
    %1695 = vdwg.mxu0
    %v1696 = vadd.f32 %v1554, %v1680
    %v1697 = vadd.f32 %v1567, %v1693
    %v1698 = vld [vmem:[#allocation18] sm:$0x3]
    %v1700 = vperm.slane %v1698, 0
    %v1701 = vperm.slane %v1698, 1
    %v1704 = vadd.f32 %v1696, %v1700
    %v1705 = vadd.f32 %v1697, %v1701
    %v1706 = vmax.f32 %v1704, 0.0
    %v1707 = vmax.f32 %v1705, 0.0
    %vm1708 = vcmask 1043456
    %v1709 = vsel %vm1708, %v1706, 0.0
    %v1710 = vrot.slane %v1709, 4
    %v1711 = vadd.f32 %v1709, %v1710
    %v1712 = vrot.slane %v1711, 2
    %v1713 = vadd.f32 %v1711, %v1712
    %v1714 = vrot.slane %v1713, 1
    %v1715 = vadd.f32 %v1713, %v1714
    %v1716 = vsel %vm1708, %v1707, 0.0
    %v1717 = vrot.slane %v1716, 4
    %v1718 = vadd.f32 %v1716, %v1717
    %v1719 = vrot.slane %v1718, 2
    %v1720 = vadd.f32 %v1718, %v1719
    %v1721 = vrot.slane %v1720, 1
    %v1722 = vadd.f32 %v1720, %v1721
    %v1723 = vmul.f32 %v1715, 0.25
    %v1724 = vmul.f32 %v1722, 0.25
    %v1727 = vrot.slane %v1724, 7
    %v1728 = vsel %vm474, %v1723, %v1727
    %v1730 = vlaneseq
    %vm1731 = vcmp.ge.s32.totalorder %v1730, 0
    %vm1732 = vcmp.lt.s32.totalorder %v1730, 256
    %vm1733 = vmand %vm1731, %vm1732
    %1734 = vst.msk [vmem:[#allocation6] ss:$2 sm:$0x3] %vm1733, %v1728
    %s1735 = scalar_lea.vmem %s0, 256
    %v1736 = vld [vmem:[%s1735] sm:$0xff]
    %v1737 = vld [vmem:[%s1735 + $0x8] sm:$0xff]
    %v1738 = vld [vmem:[%s1735 + $0x10] sm:$0xff]
    %v1739 = vld [vmem:[%s1735 + $0x18] sm:$0xff]
    %v1740 = vld [vmem:[%s1735 + $0x20] sm:$0xff]
    %v1741 = vld [vmem:[%s1735 + $0x28] sm:$0xff]
    %v1742 = vld [vmem:[%s1735 + $0x30] sm:$0xff]
    %v1743 = vld [vmem:[%s1735 + $0x38] sm:$0xff]
    %v1744 = vld [vmem:[%s1735 + $0x40] sm:$0xff]
    %v1745 = vld [vmem:[%s1735 + $0x48] sm:$0xff]
    %v1746 = vld [vmem:[%s1735 + $0x50] sm:$0xff]
    %v1747 = vld [vmem:[%s1735 + $0x58] sm:$0xff]
    %v1748 = vld [vmem:[%s1735 + $0x60] sm:$0xff]
    %v1749 = vld [vmem:[%s1735 + $0x68] sm:$0xff]
    %v1750 = vld [vmem:[%s1735 + $0x70] sm:$0xff]
    %v1751 = vld [vmem:[%s1735 + $0x78] sm:$0xff]
    %v1752 = vld [vmem:[%s1735 + $0x80] sm:$0xff]
    %v1753 = vld [vmem:[%s1735 + $0x88] sm:$0xff]
    %v1754 = vld [vmem:[%s1735 + $0x90] sm:$0xff]
    %v1755 = vld [vmem:[%s1735 + $0x98] sm:$0xff]
    %v1756 = vld [vmem:[%s1735 + $0xa0] sm:$0xff]
    %v1757 = vld [vmem:[%s1735 + $0xa8] sm:$0xff]
    %v1758 = vld [vmem:[%s1735 + $0xb0] sm:$0xff]
    %v1759 = vld [vmem:[%s1735 + $0xb8] sm:$0xff]
    %v1760 = vld [vmem:[%s1735 + $0xc0] sm:$0xff]
    %v1761 = vld [vmem:[%s1735 + $0xc8] sm:$0xff]
    %v1762 = vld [vmem:[%s1735 + $0xd0] sm:$0xff]
    %v1763 = vld [vmem:[%s1735 + $0xd8] sm:$0xff]
    %v1764 = vld [vmem:[%s1735 + $0xe0] sm:$0xff]
    %v1765 = vld [vmem:[%s1735 + $0xe8] sm:$0xff]
    %v1766 = vld [vmem:[%s1735 + $0xf0] sm:$0xff]
    %v1767 = vld [vmem:[%s1735 + $0xf8] sm:$0xff]
    %1768 = vst.msk [vmem:[#allocation2 + $0x3] sm:$0xff] %vm303, %v1736
    %1769 = vst.msk [vmem:[#allocation2 + $0xb] sm:$0xff] %vm303, %v1737
    %1770 = vst.msk [vmem:[#allocation2 + $0x13] sm:$0xff] %vm303, %v1738
    %1771 = vst.msk [vmem:[#allocation2 + $0x1b] sm:$0xff] %vm303, %v1739
    %1772 = vst.msk [vmem:[#allocation2 + $0x23] sm:$0xff] %vm303, %v1740
    %1773 = vst.msk [vmem:[#allocation2 + $0x2b] sm:$0xff] %vm303, %v1741
    %1774 = vst.msk [vmem:[#allocation2 + $0x33] sm:$0xff] %vm303, %v1742
    %1775 = vst.msk [vmem:[#allocation2 + $0x3b] sm:$0xff] %vm303, %v1743
    %1776 = vst.msk [vmem:[#allocation2 + $0x43] sm:$0xff] %vm303, %v1744
    %1777 = vst.msk [vmem:[#allocation2 + $0x4b] sm:$0xff] %vm303, %v1745
    %1778 = vst.msk [vmem:[#allocation2 + $0x53] sm:$0xff] %vm303, %v1746
    %1779 = vst.msk [vmem:[#allocation2 + $0x5b] sm:$0xff] %vm303, %v1747
    %1780 = vst.msk [vmem:[#allocation2 + $0x63] sm:$0xff] %vm303, %v1748
    %1781 = vst.msk [vmem:[#allocation2 + $0x6b] sm:$0xff] %vm303, %v1749
    %1782 = vst.msk [vmem:[#allocation2 + $0x73] sm:$0xff] %vm303, %v1750
    %1783 = vst.msk [vmem:[#allocation2 + $0x7b] sm:$0xff] %vm303, %v1751
    %1784 = vst.msk [vmem:[#allocation2 + $0x83] sm:$0xff] %vm303, %v1752
    %1785 = vst.msk [vmem:[#allocation2 + $0x8b] sm:$0xff] %vm303, %v1753
    %1786 = vst.msk [vmem:[#allocation2 + $0x93] sm:$0xff] %vm303, %v1754
    %1787 = vst.msk [vmem:[#allocation2 + $0x9b] sm:$0xff] %vm303, %v1755
    %1788 = vst.msk [vmem:[#allocation2 + $0xa3] sm:$0xff] %vm303, %v1756
    %1789 = vst.msk [vmem:[#allocation2 + $0xab] sm:$0xff] %vm303, %v1757
    %1790 = vst.msk [vmem:[#allocation2 + $0xb3] sm:$0xff] %vm303, %v1758
    %1791 = vst.msk [vmem:[#allocation2 + $0xbb] sm:$0xff] %vm303, %v1759
    %1792 = vst.msk [vmem:[#allocation2 + $0xc3] sm:$0xff] %vm303, %v1760
    %1793 = vst.msk [vmem:[#allocation2 + $0xcb] sm:$0xff] %vm303, %v1761
    %1794 = vst.msk [vmem:[#allocation2 + $0xd3] sm:$0xff] %vm303, %v1762
    %1795 = vst.msk [vmem:[#allocation2 + $0xdb] sm:$0xff] %vm303, %v1763
    %1796 = vst.msk [vmem:[#allocation2 + $0xe3] sm:$0xff] %vm303, %v1764
    %1797 = vst.msk [vmem:[#allocation2 + $0xeb] sm:$0xff] %vm303, %v1765
    %1798 = vst.msk [vmem:[#allocation2 + $0xf3] sm:$0xff] %vm303, %v1766
    %1799 = vst.msk [vmem:[#allocation2 + $0xfb] sm:$0xff] %vm303, %v1767
    %v1800 = vld [vmem:[#allocation2] ss:$4 sm:$0xff]
    %v1801 = vld [vmem:[%s421] ss:$4 sm:$0xff]
    %v1802 = vld [vmem:[%s423] ss:$4 sm:$0xff]
    %v1803 = vld [vmem:[%s425] ss:$4 sm:$0xff]
    %v1804 = vld [vmem:[%s427] ss:$4 sm:$0xff]
    %v1805 = vld [vmem:[%s429] ss:$4 sm:$0xff]
    %v1806 = vld [vmem:[%s431] ss:$4 sm:$0xff]
    %v1807 = vld [vmem:[%s433] ss:$4 sm:$0xff]
    %v1808 = vpack.c.bf16 %v1801, %v1800
    %v1809 = vpack.c.bf16 %v1803, %v1802
    %v1810 = vpack.c.bf16 %v1805, %v1804
    %v1811 = vpack.c.bf16 %v1807, %v1806
    %v1812 = vld [vmem:[#allocation10] sm:$0x1]
    %v1813 = vld [vmem:[%s440] ss:$4 sm:$0xff]
    %v1814 = vld [vmem:[%s442] ss:$4 sm:$0xff]
    %v1815 = vld [vmem:[%s444] ss:$4 sm:$0xff]
    %v1816 = vld [vmem:[%s446] ss:$4 sm:$0xff]
    %v1817 = vld [vmem:[%s448] ss:$4 sm:$0xff]
    %v1818 = vld [vmem:[%s450] ss:$4 sm:$0xff]
    %v1819 = vld [vmem:[%s452] ss:$4 sm:$0xff]
    %v1820 = vld [vmem:[%s454] ss:$4 sm:$0xff]
    %v1821 = vpack.c.bf16 %v1814, %v1813
    %v1822 = vpack.c.bf16 %v1816, %v1815
    %v1823 = vpack.c.bf16 %v1818, %v1817
    %v1824 = vpack.c.bf16 %v1820, %v1819
    %v1825 = vld [vmem:[%s460] sm:$0x1]
    %v1827 = vsel %vm303, %v1821, 0
    %v1830 = vsel %vm303, %v1822, 0
    %v1833 = vsel %vm303, %v1823, 0
    %v1836 = vsel %vm303, %v1824, 0
    %v1839 = vsel %vm474, %v1825, 0
    %1841 = vmatpush.bf16.msra.mxu0 0
    %1842 = vmatpush.bf16.msra.mxu0 0
    %1843 = vmatpush.bf16.msra.mxu0 0
    %1844 = vmatpush.bf16.msra.mxu0 0
    %1845 = vmatpush.bf16.msra.mxu0 0
    %1846 = vmatpush.bf16.msra.mxu0 0
    %1847 = vmatpush.bf16.msra.mxu0 0
    %1848 = vmatpush.bf16.msra.mxu0 %v1839
    %1849 = vmatmul.bf16.gmra.mxu0 %v1827
    %v1850 = vpop.f32.mrf.mxu0
    %v1851 = vadd.f32 0.0, %v1850
    %v1852 = vpop.f32.mrf.mxu0
    %v1853 = vadd.f32 0.0, %v1852
    %1854 = vmatmul.bf16.gmra.mxu0 %v1830
    %v1855 = vpop.f32.mrf.mxu0
    %v1856 = vadd.f32 0.0, %v1855
    %v1857 = vpop.f32.mrf.mxu0
    %v1858 = vadd.f32 0.0, %v1857
    %1859 = vmatmul.bf16.gmra.mxu0 %v1833
    %v1860 = vpop.f32.mrf.mxu0
    %v1861 = vadd.f32 0.0, %v1860
    %v1862 = vpop.f32.mrf.mxu0
    %v1863 = vadd.f32 0.0, %v1862
    %1864 = vmatmul.bf16.gmra.mxu0 %v1836
    %v1865 = vpop.f32.mrf.mxu0
    %v1866 = vadd.f32 0.0, %v1865
    %v1867 = vpop.f32.mrf.mxu0
    %v1868 = vadd.f32 0.0, %v1867
    %1869 = vdwg.mxu0
    %v1871 = vsel %vm303, %v1808, 0
    %v1874 = vsel %vm303, %v1809, 0
    %v1877 = vsel %vm303, %v1810, 0
    %v1880 = vsel %vm303, %v1811, 0
    %v1883 = vsel %vm474, %v1812, 0
    %1885 = vmatpush.bf16.msra.mxu0 0
    %1886 = vmatpush.bf16.msra.mxu0 0
    %1887 = vmatpush.bf16.msra.mxu0 0
    %1888 = vmatpush.bf16.msra.mxu0 0
    %1889 = vmatpush.bf16.msra.mxu0 0
    %1890 = vmatpush.bf16.msra.mxu0 0
    %1891 = vmatpush.bf16.msra.mxu0 0
    %1892 = vmatpush.bf16.msra.mxu0 %v1883
    %1893 = vmatmul.bf16.gmra.mxu0 %v1871
    %v1894 = vpop.f32.mrf.mxu0
    %v1895 = vadd.f32 %v1851, %v1894
    %v1896 = vpop.f32.mrf.mxu0
    %v1897 = vadd.f32 %v1853, %v1896
    %1898 = vmatmul.bf16.gmra.mxu0 %v1874
    %v1899 = vpop.f32.mrf.mxu0
    %v1900 = vadd.f32 %v1856, %v1899
    %v1901 = vpop.f32.mrf.mxu0
    %v1902 = vadd.f32 %v1858, %v1901
    %1903 = vmatmul.bf16.gmra.mxu0 %v1877
    %v1904 = vpop.f32.mrf.mxu0
    %v1905 = vadd.f32 %v1861, %v1904
    %v1906 = vpop.f32.mrf.mxu0
    %v1907 = vadd.f32 %v1863, %v1906
    %1908 = vmatmul.bf16.gmra.mxu0 %v1880
    %v1909 = vpop.f32.mrf.mxu0
    %v1910 = vadd.f32 %v1866, %v1909
    %v1911 = vpop.f32.mrf.mxu0
    %v1912 = vadd.f32 %v1868, %v1911
    %1913 = vdwg.mxu0
    %v1914 = vld [vmem:[%s551] ss:$4 sm:$0xff]
    %v1915 = vld [vmem:[%s553] ss:$4 sm:$0xff]
    %v1916 = vld [vmem:[%s555] ss:$4 sm:$0xff]
    %v1917 = vld [vmem:[%s557] ss:$4 sm:$0xff]
    %v1918 = vld [vmem:[%s559] ss:$4 sm:$0xff]
    %v1919 = vld [vmem:[%s561] ss:$4 sm:$0xff]
    %v1920 = vld [vmem:[%s563] ss:$4 sm:$0xff]
    %v1921 = vld [vmem:[%s565] ss:$4 sm:$0xff]
    %v1922 = vpack.c.bf16 %v1915, %v1914
    %v1923 = vpack.c.bf16 %v1917, %v1916
    %v1924 = vpack.c.bf16 %v1919, %v1918
    %v1925 = vpack.c.bf16 %v1921, %v1920
    %v1926 = vld [vmem:[%s571] sm:$0x1]
    %v1928 = vsel %vm303, %v1922, 0
    %v1931 = vsel %vm303, %v1923, 0
    %v1934 = vsel %vm303, %v1924, 0
    %v1937 = vsel %vm303, %v1925, 0
    %v1940 = vsel %vm474, %v1926, 0
    %1942 = vmatpush.bf16.msra.mxu0 0
    %1943 = vmatpush.bf16.msra.mxu0 0
    %1944 = vmatpush.bf16.msra.mxu0 0
    %1945 = vmatpush.bf16.msra.mxu0 0
    %1946 = vmatpush.bf16.msra.mxu0 0
    %1947 = vmatpush.bf16.msra.mxu0 0
    %1948 = vmatpush.bf16.msra.mxu0 0
    %1949 = vmatpush.bf16.msra.mxu0 %v1940
    %1950 = vmatmul.bf16.gmra.mxu0 %v1928
    %v1951 = vpop.f32.mrf.mxu0
    %v1952 = vadd.f32 0.0, %v1951
    %v1953 = vpop.f32.mrf.mxu0
    %v1954 = vadd.f32 0.0, %v1953
    %1955 = vmatmul.bf16.gmra.mxu0 %v1931
    %v1956 = vpop.f32.mrf.mxu0
    %v1957 = vadd.f32 0.0, %v1956
    %v1958 = vpop.f32.mrf.mxu0
    %v1959 = vadd.f32 0.0, %v1958
    %1960 = vmatmul.bf16.gmra.mxu0 %v1934
    %v1961 = vpop.f32.mrf.mxu0
    %v1962 = vadd.f32 0.0, %v1961
    %v1963 = vpop.f32.mrf.mxu0
    %v1964 = vadd.f32 0.0, %v1963
    %1965 = vmatmul.bf16.gmra.mxu0 %v1937
    %v1966 = vpop.f32.mrf.mxu0
    %v1967 = vadd.f32 0.0, %v1966
    %v1968 = vpop.f32.mrf.mxu0
    %v1969 = vadd.f32 0.0, %v1968
    %1970 = vdwg.mxu0
    %v1971 = vadd.f32 %v1895, %v1952
    %v1972 = vadd.f32 %v1897, %v1954
    %v1973 = vadd.f32 %v1900, %v1957
    %v1974 = vadd.f32 %v1902, %v1959
    %v1975 = vadd.f32 %v1905, %v1962
    %v1976 = vadd.f32 %v1907, %v1964
    %v1977 = vadd.f32 %v1910, %v1967
    %v1978 = vadd.f32 %v1912, %v1969
    %v1979 = vld [vmem:[%s625] ss:$4 sm:$0xff]
    %v1980 = vld [vmem:[%s627] ss:$4 sm:$0xff]
    %v1981 = vld [vmem:[%s629] ss:$4 sm:$0xff]
    %v1982 = vld [vmem:[%s631] ss:$4 sm:$0xff]
    %v1983 = vld [vmem:[%s633] ss:$4 sm:$0xff]
    %v1984 = vld [vmem:[%s635] ss:$4 sm:$0xff]
    %v1985 = vld [vmem:[%s637] ss:$4 sm:$0xff]
    %v1986 = vld [vmem:[%s639] ss:$4 sm:$0xff]
    %v1987 = vpack.c.bf16 %v1980, %v1979
    %v1988 = vpack.c.bf16 %v1982, %v1981
    %v1989 = vpack.c.bf16 %v1984, %v1983
    %v1990 = vpack.c.bf16 %v1986, %v1985
    %v1991 = vld [vmem:[%s645] sm:$0x1]
    %v1993 = vsel %vm303, %v1987, 0
    %v1996 = vsel %vm303, %v1988, 0
    %v1999 = vsel %vm303, %v1989, 0
    %v2002 = vsel %vm303, %v1990, 0
    %v2005 = vsel %vm474, %v1991, 0
    %2007 = vmatpush.bf16.msra.mxu0 0
    %2008 = vmatpush.bf16.msra.mxu0 0
    %2009 = vmatpush.bf16.msra.mxu0 0
    %2010 = vmatpush.bf16.msra.mxu0 0
    %2011 = vmatpush.bf16.msra.mxu0 0
    %2012 = vmatpush.bf16.msra.mxu0 0
    %2013 = vmatpush.bf16.msra.mxu0 0
    %2014 = vmatpush.bf16.msra.mxu0 %v2005
    %2015 = vmatmul.bf16.gmra.mxu0 %v1993
    %v2016 = vpop.f32.mrf.mxu0
    %v2017 = vadd.f32 0.0, %v2016
    %v2018 = vpop.f32.mrf.mxu0
    %v2019 = vadd.f32 0.0, %v2018
    %2020 = vmatmul.bf16.gmra.mxu0 %v1996
    %v2021 = vpop.f32.mrf.mxu0
    %v2022 = vadd.f32 0.0, %v2021
    %v2023 = vpop.f32.mrf.mxu0
    %v2024 = vadd.f32 0.0, %v2023
    %2025 = vmatmul.bf16.gmra.mxu0 %v1999
    %v2026 = vpop.f32.mrf.mxu0
    %v2027 = vadd.f32 0.0, %v2026
    %v2028 = vpop.f32.mrf.mxu0
    %v2029 = vadd.f32 0.0, %v2028
    %2030 = vmatmul.bf16.gmra.mxu0 %v2002
    %v2031 = vpop.f32.mrf.mxu0
    %v2032 = vadd.f32 0.0, %v2031
    %v2033 = vpop.f32.mrf.mxu0
    %v2034 = vadd.f32 0.0, %v2033
    %2035 = vdwg.mxu0
    %v2036 = vadd.f32 %v1971, %v2017
    %v2037 = vadd.f32 %v1972, %v2019
    %v2038 = vadd.f32 %v1973, %v2022
    %v2039 = vadd.f32 %v1974, %v2024
    %v2040 = vadd.f32 %v1975, %v2027
    %v2041 = vadd.f32 %v1976, %v2029
    %v2042 = vadd.f32 %v1977, %v2032
    %v2043 = vadd.f32 %v1978, %v2034
    %v2044 = vld [vmem:[%s699] ss:$4 sm:$0xff]
    %v2045 = vld [vmem:[%s701] ss:$4 sm:$0xff]
    %v2046 = vld [vmem:[%s703] ss:$4 sm:$0xff]
    %v2047 = vld [vmem:[%s705] ss:$4 sm:$0xff]
    %v2048 = vld [vmem:[%s707] ss:$4 sm:$0xff]
    %v2049 = vld [vmem:[%s709] ss:$4 sm:$0xff]
    %v2050 = vld [vmem:[%s711] ss:$4 sm:$0xff]
    %v2051 = vld [vmem:[%s713] ss:$4 sm:$0xff]
    %v2052 = vpack.c.bf16 %v2045, %v2044
    %v2053 = vpack.c.bf16 %v2047, %v2046
    %v2054 = vpack.c.bf16 %v2049, %v2048
    %v2055 = vpack.c.bf16 %v2051, %v2050
    %v2056 = vld [vmem:[%s719] sm:$0x1]
    %v2058 = vsel %vm303, %v2052, 0
    %v2061 = vsel %vm303, %v2053, 0
    %v2064 = vsel %vm303, %v2054, 0
    %v2067 = vsel %vm303, %v2055, 0
    %v2070 = vsel %vm474, %v2056, 0
    %2072 = vmatpush.bf16.msra.mxu0 0
    %2073 = vmatpush.bf16.msra.mxu0 0
    %2074 = vmatpush.bf16.msra.mxu0 0
    %2075 = vmatpush.bf16.msra.mxu0 0
    %2076 = vmatpush.bf16.msra.mxu0 0
    %2077 = vmatpush.bf16.msra.mxu0 0
    %2078 = vmatpush.bf16.msra.mxu0 0
    %2079 = vmatpush.bf16.msra.mxu0 %v2070
    %2080 = vmatmul.bf16.gmra.mxu0 %v2058
    %v2081 = vpop.f32.mrf.mxu0
    %v2082 = vadd.f32 0.0, %v2081
    %v2083 = vpop.f32.mrf.mxu0
    %v2084 = vadd.f32 0.0, %v2083
    %2085 = vmatmul.bf16.gmra.mxu0 %v2061
    %v2086 = vpop.f32.mrf.mxu0
    %v2087 = vadd.f32 0.0, %v2086
    %v2088 = vpop.f32.mrf.mxu0
    %v2089 = vadd.f32 0.0, %v2088
    %2090 = vmatmul.bf16.gmra.mxu0 %v2064
    %v2091 = vpop.f32.mrf.mxu0
    %v2092 = vadd.f32 0.0, %v2091
    %v2093 = vpop.f32.mrf.mxu0
    %v2094 = vadd.f32 0.0, %v2093
    %2095 = vmatmul.bf16.gmra.mxu0 %v2067
    %v2096 = vpop.f32.mrf.mxu0
    %v2097 = vadd.f32 0.0, %v2096
    %v2098 = vpop.f32.mrf.mxu0
    %v2099 = vadd.f32 0.0, %v2098
    %2100 = vdwg.mxu0
    %v2101 = vadd.f32 %v2036, %v2082
    %v2102 = vadd.f32 %v2037, %v2084
    %v2103 = vadd.f32 %v2038, %v2087
    %v2104 = vadd.f32 %v2039, %v2089
    %v2105 = vadd.f32 %v2040, %v2092
    %v2106 = vadd.f32 %v2041, %v2094
    %v2107 = vadd.f32 %v2042, %v2097
    %v2108 = vadd.f32 %v2043, %v2099
    %v2109 = vld [vmem:[%s773] ss:$4 sm:$0xff]
    %v2110 = vld [vmem:[%s775] ss:$4 sm:$0xff]
    %v2111 = vld [vmem:[%s777] ss:$4 sm:$0xff]
    %v2112 = vld [vmem:[%s779] ss:$4 sm:$0xff]
    %v2113 = vld [vmem:[%s781] ss:$4 sm:$0xff]
    %v2114 = vld [vmem:[%s783] ss:$4 sm:$0xff]
    %v2115 = vld [vmem:[%s785] ss:$4 sm:$0xff]
    %v2116 = vld [vmem:[%s787] ss:$4 sm:$0xff]
    %v2117 = vpack.c.bf16 %v2110, %v2109
    %v2118 = vpack.c.bf16 %v2112, %v2111
    %v2119 = vpack.c.bf16 %v2114, %v2113
    %v2120 = vpack.c.bf16 %v2116, %v2115
    %v2121 = vld [vmem:[%s793] sm:$0x1]
    %v2123 = vsel %vm303, %v2117, 0
    %v2126 = vsel %vm303, %v2118, 0
    %v2129 = vsel %vm303, %v2119, 0
    %v2132 = vsel %vm303, %v2120, 0
    %v2135 = vsel %vm474, %v2121, 0
    %2137 = vmatpush.bf16.msra.mxu0 0
    %2138 = vmatpush.bf16.msra.mxu0 0
    %2139 = vmatpush.bf16.msra.mxu0 0
    %2140 = vmatpush.bf16.msra.mxu0 0
    %2141 = vmatpush.bf16.msra.mxu0 0
    %2142 = vmatpush.bf16.msra.mxu0 0
    %2143 = vmatpush.bf16.msra.mxu0 0
    %2144 = vmatpush.bf16.msra.mxu0 %v2135
    %2145 = vmatmul.bf16.gmra.mxu0 %v2123
    %v2146 = vpop.f32.mrf.mxu0
    %v2147 = vadd.f32 0.0, %v2146
    %v2148 = vpop.f32.mrf.mxu0
    %v2149 = vadd.f32 0.0, %v2148
    %2150 = vmatmul.bf16.gmra.mxu0 %v2126
    %v2151 = vpop.f32.mrf.mxu0
    %v2152 = vadd.f32 0.0, %v2151
    %v2153 = vpop.f32.mrf.mxu0
    %v2154 = vadd.f32 0.0, %v2153
    %2155 = vmatmul.bf16.gmra.mxu0 %v2129
    %v2156 = vpop.f32.mrf.mxu0
    %v2157 = vadd.f32 0.0, %v2156
    %v2158 = vpop.f32.mrf.mxu0
    %v2159 = vadd.f32 0.0, %v2158
    %2160 = vmatmul.bf16.gmra.mxu0 %v2132
    %v2161 = vpop.f32.mrf.mxu0
    %v2162 = vadd.f32 0.0, %v2161
    %v2163 = vpop.f32.mrf.mxu0
    %v2164 = vadd.f32 0.0, %v2163
    %2165 = vdwg.mxu0
    %v2166 = vadd.f32 %v2101, %v2147
    %v2167 = vadd.f32 %v2102, %v2149
    %v2168 = vadd.f32 %v2103, %v2152
    %v2169 = vadd.f32 %v2104, %v2154
    %v2170 = vadd.f32 %v2105, %v2157
    %v2171 = vadd.f32 %v2106, %v2159
    %v2172 = vadd.f32 %v2107, %v2162
    %v2173 = vadd.f32 %v2108, %v2164
    %v2174 = vld [vmem:[%s847] ss:$4 sm:$0xff]
    %v2175 = vld [vmem:[%s849] ss:$4 sm:$0xff]
    %v2176 = vld [vmem:[%s851] ss:$4 sm:$0xff]
    %v2177 = vld [vmem:[%s853] ss:$4 sm:$0xff]
    %v2178 = vld [vmem:[%s855] ss:$4 sm:$0xff]
    %v2179 = vld [vmem:[%s857] ss:$4 sm:$0xff]
    %v2180 = vld [vmem:[%s859] ss:$4 sm:$0xff]
    %v2181 = vld [vmem:[%s861] ss:$4 sm:$0xff]
    %v2182 = vpack.c.bf16 %v2175, %v2174
    %v2183 = vpack.c.bf16 %v2177, %v2176
    %v2184 = vpack.c.bf16 %v2179, %v2178
    %v2185 = vpack.c.bf16 %v2181, %v2180
    %v2186 = vld [vmem:[%s867] sm:$0x1]
    %v2188 = vsel %vm303, %v2182, 0
    %v2191 = vsel %vm303, %v2183, 0
    %v2194 = vsel %vm303, %v2184, 0
    %v2197 = vsel %vm303, %v2185, 0
    %v2200 = vsel %vm474, %v2186, 0
    %2202 = vmatpush.bf16.msra.mxu0 0
    %2203 = vmatpush.bf16.msra.mxu0 0
    %2204 = vmatpush.bf16.msra.mxu0 0
    %2205 = vmatpush.bf16.msra.mxu0 0
    %2206 = vmatpush.bf16.msra.mxu0 0
    %2207 = vmatpush.bf16.msra.mxu0 0
    %2208 = vmatpush.bf16.msra.mxu0 0
    %2209 = vmatpush.bf16.msra.mxu0 %v2200
    %2210 = vmatmul.bf16.gmra.mxu0 %v2188
    %v2211 = vpop.f32.mrf.mxu0
    %v2212 = vadd.f32 0.0, %v2211
    %v2213 = vpop.f32.mrf.mxu0
    %v2214 = vadd.f32 0.0, %v2213
    %2215 = vmatmul.bf16.gmra.mxu0 %v2191
    %v2216 = vpop.f32.mrf.mxu0
    %v2217 = vadd.f32 0.0, %v2216
    %v2218 = vpop.f32.mrf.mxu0
    %v2219 = vadd.f32 0.0, %v2218
    %2220 = vmatmul.bf16.gmra.mxu0 %v2194
    %v2221 = vpop.f32.mrf.mxu0
    %v2222 = vadd.f32 0.0, %v2221
    %v2223 = vpop.f32.mrf.mxu0
    %v2224 = vadd.f32 0.0, %v2223
    %2225 = vmatmul.bf16.gmra.mxu0 %v2197
    %v2226 = vpop.f32.mrf.mxu0
    %v2227 = vadd.f32 0.0, %v2226
    %v2228 = vpop.f32.mrf.mxu0
    %v2229 = vadd.f32 0.0, %v2228
    %2230 = vdwg.mxu0
    %v2231 = vadd.f32 %v2166, %v2212
    %v2232 = vadd.f32 %v2167, %v2214
    %v2233 = vadd.f32 %v2168, %v2217
    %v2234 = vadd.f32 %v2169, %v2219
    %v2235 = vadd.f32 %v2170, %v2222
    %v2236 = vadd.f32 %v2171, %v2224
    %v2237 = vadd.f32 %v2172, %v2227
    %v2238 = vadd.f32 %v2173, %v2229
    %v2239 = vld [vmem:[#allocation12] sm:$0x1]
    %v2241 = vperm.slane %v2239, 0
    %v2243 = vadd.f32 %v2231, %v2241
    %v2244 = vadd.f32 %v2232, %v2241
    %v2245 = vadd.f32 %v2233, %v2241
    %v2246 = vadd.f32 %v2234, %v2241
    %v2247 = vadd.f32 %v2235, %v2241
    %v2248 = vadd.f32 %v2236, %v2241
    %v2249 = vadd.f32 %v2237, %v2241
    %v2250 = vadd.f32 %v2238, %v2241
    %v2251 = vmax.f32 %v2243, 0.0
    %v2252 = vmax.f32 %v2244, 0.0
    %v2253 = vmax.f32 %v2245, 0.0
    %v2254 = vmax.f32 %v2246, 0.0
    %v2255 = vmax.f32 %v2247, 0.0
    %v2256 = vmax.f32 %v2248, 0.0
    %v2257 = vmax.f32 %v2249, 0.0
    %v2258 = vmax.f32 %v2250, 0.0
    %2259 = vst.msk [vmem:[#allocation3 + $0x2] sm:$0xff] %vm338, %v2251
    %2260 = vst.msk [vmem:[#allocation3 + $0xa] sm:$0xff] %vm338, %v2252
    %2261 = vst.msk [vmem:[#allocation3 + $0x12] sm:$0xff] %vm338, %v2253
    %2262 = vst.msk [vmem:[#allocation3 + $0x1a] sm:$0xff] %vm338, %v2254
    %2263 = vst.msk [vmem:[#allocation3 + $0x22] sm:$0xff] %vm338, %v2255
    %2264 = vst.msk [vmem:[#allocation3 + $0x2a] sm:$0xff] %vm338, %v2256
    %2265 = vst.msk [vmem:[#allocation3 + $0x32] sm:$0xff] %vm338, %v2257
    %2266 = vst.msk [vmem:[#allocation3 + $0x3a] sm:$0xff] %vm338, %v2258
    %v2267 = vld [vmem:[#allocation3] ss:$4 sm:$0xff]
    %v2268 = vld [vmem:[%s950] ss:$4 sm:$0xff]
    %v2269 = vpack.c.bf16 %v2268, %v2267
    %v2270 = vld [vmem:[%s4] sm:$0xf]
    %v2271 = vld [vmem:[%s4 + $0x4] sm:$0xf]
    %v2272 = vld [vmem:[%s4 + $0x8] sm:$0xf]
    %v2273 = vld [vmem:[%s4 + $0xc] sm:$0xf]
    %v2274 = vld [vmem:[%s957] ss:$4 sm:$0xff]
    %v2275 = vld [vmem:[%s959] ss:$4 sm:$0xff]
    %v2276 = vpack.c.bf16 %v2275, %v2274
    %v2277 = vld [vmem:[%s962] sm:$0xf]
    %v2278 = vld [vmem:[%s962 + $0x4] sm:$0xf]
    %v2279 = vld [vmem:[%s962 + $0x8] sm:$0xf]
    %v2280 = vld [vmem:[%s962 + $0xc] sm:$0xf]
    %v2285 = vunpack.c.l.b16 %v2277
    %v2286 = vunpack.c.l.b16 %v2278
    %v2287 = vunpack.c.l.b16 %v2279
    %v2288 = vunpack.c.l.b16 %v2280
    %v2289 = vpack.c.b16 %v2286, %v2285
    %v2290 = vpack.c.b16 %v2288, %v2287
    %v2294 = vsel %vm338, %v2276, 0
    %2296 = vmatpush.bf16.msra.mxu0 0
    %2297 = vmatpush.bf16.msra.mxu0 0
    %2298 = vmatpush.bf16.msra.mxu0 0
    %2299 = vmatpush.bf16.msra.mxu0 0
    %2300 = vmatpush.bf16.msra.mxu0 0
    %2301 = vmatpush.bf16.msra.mxu0 0
    %2302 = vmatpush.bf16.msra.mxu0 %v2290
    %2303 = vmatpush.bf16.msra.mxu0 %v2289
    %2304 = vmatmul.bf16.gmra.mxu0 %v2294
    %v2305 = vpop.f32.mrf.mxu0
    %v2306 = vadd.f32 0.0, %v2305
    %v2307 = vpop.f32.mrf.mxu0
    %v2308 = vadd.f32 0.0, %v2307
    %2309 = vdwg.mxu0
    %v2314 = vunpack.c.l.b16 %v2270
    %v2315 = vunpack.c.l.b16 %v2271
    %v2316 = vunpack.c.l.b16 %v2272
    %v2317 = vunpack.c.l.b16 %v2273
    %v2318 = vpack.c.b16 %v2315, %v2314
    %v2319 = vpack.c.b16 %v2317, %v2316
    %v2323 = vsel %vm338, %v2269, 0
    %2325 = vmatpush.bf16.msra.mxu0 0
    %2326 = vmatpush.bf16.msra.mxu0 0
    %2327 = vmatpush.bf16.msra.mxu0 0
    %2328 = vmatpush.bf16.msra.mxu0 0
    %2329 = vmatpush.bf16.msra.mxu0 0
    %2330 = vmatpush.bf16.msra.mxu0 0
    %2331 = vmatpush.bf16.msra.mxu0 %v2319
    %2332 = vmatpush.bf16.msra.mxu0 %v2318
    %2333 = vmatmul.bf16.gmra.mxu0 %v2323
    %v2334 = vpop.f32.mrf.mxu0
    %v2335 = vadd.f32 %v2306, %v2334
    %v2336 = vpop.f32.mrf.mxu0
    %v2337 = vadd.f32 %v2308, %v2336
    %2338 = vdwg.mxu0
    %v2339 = vld [vmem:[%s1025] ss:$4 sm:$0xff]
    %v2340 = vld [vmem:[%s1027] ss:$4 sm:$0xff]
    %v2341 = vpack.c.bf16 %v2340, %v2339
    %v2342 = vld [vmem:[%s1030] sm:$0xf]
    %v2343 = vld [vmem:[%s1030 + $0x4] sm:$0xf]
    %v2344 = vld [vmem:[%s1030 + $0x8] sm:$0xf]
    %v2345 = vld [vmem:[%s1030 + $0xc] sm:$0xf]
    %v2350 = vunpack.c.l.b16 %v2342
    %v2351 = vunpack.c.l.b16 %v2343
    %v2352 = vunpack.c.l.b16 %v2344
    %v2353 = vunpack.c.l.b16 %v2345
    %v2354 = vpack.c.b16 %v2351, %v2350
    %v2355 = vpack.c.b16 %v2353, %v2352
    %v2359 = vsel %vm338, %v2341, 0
    %2361 = vmatpush.bf16.msra.mxu0 0
    %2362 = vmatpush.bf16.msra.mxu0 0
    %2363 = vmatpush.bf16.msra.mxu0 0
    %2364 = vmatpush.bf16.msra.mxu0 0
    %2365 = vmatpush.bf16.msra.mxu0 0
    %2366 = vmatpush.bf16.msra.mxu0 0
    %2367 = vmatpush.bf16.msra.mxu0 %v2355
    %2368 = vmatpush.bf16.msra.mxu0 %v2354
    %2369 = vmatmul.bf16.gmra.mxu0 %v2359
    %v2370 = vpop.f32.mrf.mxu0
    %v2371 = vadd.f32 0.0, %v2370
    %v2372 = vpop.f32.mrf.mxu0
    %v2373 = vadd.f32 0.0, %v2372
    %2374 = vdwg.mxu0
    %v2375 = vadd.f32 %v2335, %v2371
    %v2376 = vadd.f32 %v2337, %v2373
    %v2377 = vld [vmem:[%s1066] ss:$4 sm:$0xff]
    %v2378 = vld [vmem:[%s1068] ss:$4 sm:$0xff]
    %v2379 = vpack.c.bf16 %v2378, %v2377
    %v2380 = vld [vmem:[%s1071] sm:$0xf]
    %v2381 = vld [vmem:[%s1071 + $0x4] sm:$0xf]
    %v2382 = vld [vmem:[%s1071 + $0x8] sm:$0xf]
    %v2383 = vld [vmem:[%s1071 + $0xc] sm:$0xf]
    %v2388 = vunpack.c.l.b16 %v2380
    %v2389 = vunpack.c.l.b16 %v2381
    %v2390 = vunpack.c.l.b16 %v2382
    %v2391 = vunpack.c.l.b16 %v2383
    %v2392 = vpack.c.b16 %v2389, %v2388
    %v2393 = vpack.c.b16 %v2391, %v2390
    %v2397 = vsel %vm338, %v2379, 0
    %2399 = vmatpush.bf16.msra.mxu0 0
    %2400 = vmatpush.bf16.msra.mxu0 0
    %2401 = vmatpush.bf16.msra.mxu0 0
    %2402 = vmatpush.bf16.msra.mxu0 0
    %2403 = vmatpush.bf16.msra.mxu0 0
    %2404 = vmatpush.bf16.msra.mxu0 0
    %2405 = vmatpush.bf16.msra.mxu0 %v2393
    %2406 = vmatpush.bf16.msra.mxu0 %v2392
    %2407 = vmatmul.bf16.gmra.mxu0 %v2397
    %v2408 = vpop.f32.mrf.mxu0
    %v2409 = vadd.f32 0.0, %v2408
    %v2410 = vpop.f32.mrf.mxu0
    %v2411 = vadd.f32 0.0, %v2410
    %2412 = vdwg.mxu0
    %v2413 = vadd.f32 %v2375, %v2409
    %v2414 = vadd.f32 %v2376, %v2411
    %v2415 = vld [vmem:[%s1107] ss:$4 sm:$0xff]
    %v2416 = vld [vmem:[%s1109] ss:$4 sm:$0xff]
    %v2417 = vpack.c.bf16 %v2416, %v2415
    %v2418 = vld [vmem:[%s1112] sm:$0xf]
    %v2419 = vld [vmem:[%s1112 + $0x4] sm:$0xf]
    %v2420 = vld [vmem:[%s1112 + $0x8] sm:$0xf]
    %v2421 = vld [vmem:[%s1112 + $0xc] sm:$0xf]
    %v2426 = vunpack.c.l.b16 %v2418
    %v2427 = vunpack.c.l.b16 %v2419
    %v2428 = vunpack.c.l.b16 %v2420
    %v2429 = vunpack.c.l.b16 %v2421
    %v2430 = vpack.c.b16 %v2427, %v2426
    %v2431 = vpack.c.b16 %v2429, %v2428
    %v2435 = vsel %vm338, %v2417, 0
    %2437 = vmatpush.bf16.msra.mxu0 0
    %2438 = vmatpush.bf16.msra.mxu0 0
    %2439 = vmatpush.bf16.msra.mxu0 0
    %2440 = vmatpush.bf16.msra.mxu0 0
    %2441 = vmatpush.bf16.msra.mxu0 0
    %2442 = vmatpush.bf16.msra.mxu0 0
    %2443 = vmatpush.bf16.msra.mxu0 %v2431
    %2444 = vmatpush.bf16.msra.mxu0 %v2430
    %2445 = vmatmul.bf16.gmra.mxu0 %v2435
    %v2446 = vpop.f32.mrf.mxu0
    %v2447 = vadd.f32 0.0, %v2446
    %v2448 = vpop.f32.mrf.mxu0
    %v2449 = vadd.f32 0.0, %v2448
    %2450 = vdwg.mxu0
    %v2451 = vadd.f32 %v2413, %v2447
    %v2452 = vadd.f32 %v2414, %v2449
    %v2453 = vld [vmem:[#allocation13] sm:$0x1]
    %v2455 = vperm.slane %v2453, 0
    %v2457 = vadd.f32 %v2451, %v2455
    %v2458 = vadd.f32 %v2452, %v2455
    %v2459 = vmax.f32 %v2457, 0.0
    %v2460 = vmax.f32 %v2458, 0.0
    %2461 = vst.msk [vmem:[#allocation4 + $0x1] sm:$0xff] %vm349, %v2459
    %2462 = vst.msk [vmem:[#allocation4 + $0x9] sm:$0xff] %vm349, %v2460
    %v2463 = vld [vmem:[#allocation4] ss:$2 sm:$0xff]
    %v2464 = vpack.c.bf16 %v2463, %v2463
    %v2465 = vld [vmem:[#allocation15] sm:$0xf]
    %v2466 = vld [vmem:[#allocation15 + $0x4] sm:$0xf]
    %v2467 = vld [vmem:[#allocation15 + $0x8] sm:$0xf]
    %v2468 = vld [vmem:[#allocation15 + $0xc] sm:$0xf]
    %v2469 = vld [vmem:[#allocation15 + $0x10] sm:$0xf]
    %v2470 = vld [vmem:[#allocation15 + $0x14] sm:$0xf]
    %v2471 = vld [vmem:[#allocation15 + $0x18] sm:$0xf]
    %v2472 = vld [vmem:[#allocation15 + $0x1c] sm:$0xf]
    %v2473 = vld [vmem:[%s1168] ss:$2 sm:$0xff]
    %v2474 = vpack.c.bf16 %v2473, %v2473
    %v2475 = vld [vmem:[%s1171] sm:$0xf]
    %v2476 = vld [vmem:[%s1171 + $0x4] sm:$0xf]
    %v2477 = vld [vmem:[%s1171 + $0x8] sm:$0xf]
    %v2478 = vld [vmem:[%s1171 + $0xc] sm:$0xf]
    %v2479 = vld [vmem:[%s1171 + $0x10] sm:$0xf]
    %v2480 = vld [vmem:[%s1171 + $0x14] sm:$0xf]
    %v2481 = vld [vmem:[%s1171 + $0x18] sm:$0xf]
    %v2482 = vld [vmem:[%s1171 + $0x1c] sm:$0xf]
    %v2491 = vunpack.c.l.b16 %v2475
    %v2492 = vunpack.c.l.b16 %v2476
    %v2493 = vunpack.c.l.b16 %v2477
    %v2494 = vunpack.c.l.b16 %v2478
    %v2495 = vunpack.c.l.b16 %v2479
    %v2496 = vunpack.c.l.b16 %v2480
    %v2497 = vunpack.c.l.b16 %v2481
    %v2498 = vunpack.c.l.b16 %v2482
    %v2499 = vpack.c.b16 %v2492, %v2491
    %v2500 = vpack.c.b16 %v2494, %v2493
    %v2501 = vpack.c.b16 %v2496, %v2495
    %v2502 = vpack.c.b16 %v2498, %v2497
    %v2508 = vsel %vm349, %v2474, 0
    %2510 = vmatpush.bf16.msra.mxu0 0
    %2511 = vmatpush.bf16.msra.mxu0 0
    %2512 = vmatpush.bf16.msra.mxu0 0
    %2513 = vmatpush.bf16.msra.mxu0 0
    %2514 = vmatpush.bf16.msra.mxu0 %v2502
    %2515 = vmatpush.bf16.msra.mxu0 %v2501
    %2516 = vmatpush.bf16.msra.mxu0 %v2500
    %2517 = vmatpush.bf16.msra.mxu0 %v2499
    %2518 = vmatmul.bf16.gmra.mxu0 %v2508
    %v2519 = vpop.f32.mrf.mxu0
    %v2520 = vadd.f32 0.0, %v2519
    %v2521 = vpop.f32.mrf.mxu0
    %2522 = vdwg.mxu0
    %v2531 = vunpack.c.l.b16 %v2465
    %v2532 = vunpack.c.l.b16 %v2466
    %v2533 = vunpack.c.l.b16 %v2467
    %v2534 = vunpack.c.l.b16 %v2468
    %v2535 = vunpack.c.l.b16 %v2469
    %v2536 = vunpack.c.l.b16 %v2470
    %v2537 = vunpack.c.l.b16 %v2471
    %v2538 = vunpack.c.l.b16 %v2472
    %v2539 = vpack.c.b16 %v2532, %v2531
    %v2540 = vpack.c.b16 %v2534, %v2533
    %v2541 = vpack.c.b16 %v2536, %v2535
    %v2542 = vpack.c.b16 %v2538, %v2537
    %v2548 = vsel %vm349, %v2464, 0
    %2550 = vmatpush.bf16.msra.mxu0 0
    %2551 = vmatpush.bf16.msra.mxu0 0
    %2552 = vmatpush.bf16.msra.mxu0 0
    %2553 = vmatpush.bf16.msra.mxu0 0
    %2554 = vmatpush.bf16.msra.mxu0 %v2542
    %2555 = vmatpush.bf16.msra.mxu0 %v2541
    %2556 = vmatpush.bf16.msra.mxu0 %v2540
    %2557 = vmatpush.bf16.msra.mxu0 %v2539
    %2558 = vmatmul.bf16.gmra.mxu0 %v2548
    %v2559 = vpop.f32.mrf.mxu0
    %v2560 = vadd.f32 %v2520, %v2559
    %v2561 = vpop.f32.mrf.mxu0
    %2562 = vdwg.mxu0
    %v2563 = vld [vmem:[%s1260] ss:$2 sm:$0xff]
    %v2564 = vpack.c.bf16 %v2563, %v2563
    %v2565 = vld [vmem:[%s1263] sm:$0xf]
    %v2566 = vld [vmem:[%s1263 + $0x4] sm:$0xf]
    %v2567 = vld [vmem:[%s1263 + $0x8] sm:$0xf]
    %v2568 = vld [vmem:[%s1263 + $0xc] sm:$0xf]
    %v2569 = vld [vmem:[%s1263 + $0x10] sm:$0xf]
    %v2570 = vld [vmem:[%s1263 + $0x14] sm:$0xf]
    %v2571 = vld [vmem:[%s1263 + $0x18] sm:$0xf]
    %v2572 = vld [vmem:[%s1263 + $0x1c] sm:$0xf]
    %v2581 = vunpack.c.l.b16 %v2565
    %v2582 = vunpack.c.l.b16 %v2566
    %v2583 = vunpack.c.l.b16 %v2567
    %v2584 = vunpack.c.l.b16 %v2568
    %v2585 = vunpack.c.l.b16 %v2569
    %v2586 = vunpack.c.l.b16 %v2570
    %v2587 = vunpack.c.l.b16 %v2571
    %v2588 = vunpack.c.l.b16 %v2572
    %v2589 = vpack.c.b16 %v2582, %v2581
    %v2590 = vpack.c.b16 %v2584, %v2583
    %v2591 = vpack.c.b16 %v2586, %v2585
    %v2592 = vpack.c.b16 %v2588, %v2587
    %v2598 = vsel %vm349, %v2564, 0
    %2600 = vmatpush.bf16.msra.mxu0 0
    %2601 = vmatpush.bf16.msra.mxu0 0
    %2602 = vmatpush.bf16.msra.mxu0 0
    %2603 = vmatpush.bf16.msra.mxu0 0
    %2604 = vmatpush.bf16.msra.mxu0 %v2592
    %2605 = vmatpush.bf16.msra.mxu0 %v2591
    %2606 = vmatpush.bf16.msra.mxu0 %v2590
    %2607 = vmatpush.bf16.msra.mxu0 %v2589
    %2608 = vmatmul.bf16.gmra.mxu0 %v2598
    %v2609 = vpop.f32.mrf.mxu0
    %v2610 = vadd.f32 0.0, %v2609
    %v2611 = vpop.f32.mrf.mxu0
    %2612 = vdwg.mxu0
    %v2613 = vadd.f32 %v2560, %v2610
    %v2614 = vld [vmem:[#allocation16] sm:$0x1]
    %v2616 = vperm.slane %v2614, 0
    %v2618 = vadd.f32 %v2613, %v2616
    %v2619 = vmax.f32 %v2618, 0.0
    %2620 = vst [vmem:[#allocation5 + $0x1] sm:$0xff] %v2619
    %v2621 = vld [vmem:[#allocation5] ss:$2 sm:$0xf]
    %v2622 = vpack.c.bf16 %v2621, %v2621
    %v2623 = vld [vmem:[%s8] sm:$0xff]
    %v2624 = vld [vmem:[%s8 + $0x8] sm:$0xff]
    %v2625 = vld [vmem:[%s8 + $0x10] sm:$0xff]
    %v2626 = vld [vmem:[%s8 + $0x18] sm:$0xff]
    %v2627 = vld [vmem:[%s8 + $0x20] sm:$0xff]
    %v2628 = vld [vmem:[%s8 + $0x28] sm:$0xff]
    %v2629 = vld [vmem:[%s8 + $0x30] sm:$0xff]
    %v2630 = vld [vmem:[%s8 + $0x38] sm:$0xff]
    %v2631 = vld [vmem:[%s8 + $0x40] sm:$0xff]
    %v2632 = vld [vmem:[%s8 + $0x48] sm:$0xff]
    %v2633 = vld [vmem:[%s8 + $0x50] sm:$0xff]
    %v2634 = vld [vmem:[%s8 + $0x58] sm:$0xff]
    %v2635 = vld [vmem:[%s8 + $0x60] sm:$0xff]
    %v2636 = vld [vmem:[%s8 + $0x68] sm:$0xff]
    %v2637 = vld [vmem:[%s8 + $0x70] sm:$0xff]
    %v2638 = vld [vmem:[%s8 + $0x78] sm:$0xff]
    %v2639 = vld [vmem:[%s1338] ss:$2 sm:$0xf]
    %v2640 = vpack.c.bf16 %v2639, %v2639
    %v2641 = vld [vmem:[%s1341] sm:$0xff]
    %v2642 = vld [vmem:[%s1341 + $0x8] sm:$0xff]
    %v2643 = vld [vmem:[%s1341 + $0x10] sm:$0xff]
    %v2644 = vld [vmem:[%s1341 + $0x18] sm:$0xff]
    %v2645 = vld [vmem:[%s1341 + $0x20] sm:$0xff]
    %v2646 = vld [vmem:[%s1341 + $0x28] sm:$0xff]
    %v2647 = vld [vmem:[%s1341 + $0x30] sm:$0xff]
    %v2648 = vld [vmem:[%s1341 + $0x38] sm:$0xff]
    %v2649 = vld [vmem:[%s1341 + $0x40] sm:$0xff]
    %v2650 = vld [vmem:[%s1341 + $0x48] sm:$0xff]
    %v2651 = vld [vmem:[%s1341 + $0x50] sm:$0xff]
    %v2652 = vld [vmem:[%s1341 + $0x58] sm:$0xff]
    %v2653 = vld [vmem:[%s1341 + $0x60] sm:$0xff]
    %v2654 = vld [vmem:[%s1341 + $0x68] sm:$0xff]
    %v2655 = vld [vmem:[%s1341 + $0x70] sm:$0xff]
    %v2656 = vld [vmem:[%s1341 + $0x78] sm:$0xff]
    %v2673 = vunpack.c.l.b16 %v2641
    %v2674 = vunpack.c.h.b16 %v2641
    %v2675 = vunpack.c.l.b16 %v2642
    %v2676 = vunpack.c.h.b16 %v2642
    %v2677 = vunpack.c.l.b16 %v2643
    %v2678 = vunpack.c.h.b16 %v2643
    %v2679 = vunpack.c.l.b16 %v2644
    %v2680 = vunpack.c.h.b16 %v2644
    %v2681 = vunpack.c.l.b16 %v2645
    %v2682 = vunpack.c.h.b16 %v2645
    %v2683 = vunpack.c.l.b16 %v2646
    %v2684 = vunpack.c.h.b16 %v2646
    %v2685 = vunpack.c.l.b16 %v2647
    %v2686 = vunpack.c.h.b16 %v2647
    %v2687 = vunpack.c.l.b16 %v2648
    %v2688 = vunpack.c.h.b16 %v2648
    %v2689 = vunpack.c.l.b16 %v2649
    %v2690 = vunpack.c.h.b16 %v2649
    %v2691 = vunpack.c.l.b16 %v2650
    %v2692 = vunpack.c.h.b16 %v2650
    %v2693 = vunpack.c.l.b16 %v2651
    %v2694 = vunpack.c.h.b16 %v2651
    %v2695 = vunpack.c.l.b16 %v2652
    %v2696 = vunpack.c.h.b16 %v2652
    %v2697 = vunpack.c.l.b16 %v2653
    %v2698 = vunpack.c.h.b16 %v2653
    %v2699 = vunpack.c.l.b16 %v2654
    %v2700 = vunpack.c.h.b16 %v2654
    %v2701 = vunpack.c.l.b16 %v2655
    %v2702 = vunpack.c.h.b16 %v2655
    %v2703 = vunpack.c.l.b16 %v2656
    %v2704 = vunpack.c.h.b16 %v2656
    %v2705 = vpack.c.b16 %v2675, %v2673
    %v2706 = vpack.c.b16 %v2676, %v2674
    %v2707 = vpack.c.b16 %v2679, %v2677
    %v2708 = vpack.c.b16 %v2680, %v2678
    %v2709 = vpack.c.b16 %v2683, %v2681
    %v2710 = vpack.c.b16 %v2684, %v2682
    %v2711 = vpack.c.b16 %v2687, %v2685
    %v2712 = vpack.c.b16 %v2688, %v2686
    %v2713 = vpack.c.b16 %v2691, %v2689
    %v2714 = vpack.c.b16 %v2692, %v2690
    %v2715 = vpack.c.b16 %v2695, %v2693
    %v2716 = vpack.c.b16 %v2696, %v2694
    %v2717 = vpack.c.b16 %v2699, %v2697
    %v2718 = vpack.c.b16 %v2700, %v2698
    %v2719 = vpack.c.b16 %v2703, %v2701
    %v2720 = vpack.c.b16 %v2704, %v2702
    %2737 = vmatpush.bf16.msra.mxu0 %v2719
    %2738 = vmatpush.bf16.msra.mxu0 %v2717
    %2739 = vmatpush.bf16.msra.mxu0 %v2715
    %2740 = vmatpush.bf16.msra.mxu0 %v2713
    %2741 = vmatpush.bf16.msra.mxu0 %v2711
    %2742 = vmatpush.bf16.msra.mxu0 %v2709
    %2743 = vmatpush.bf16.msra.mxu0 %v2707
    %2744 = vmatpush.bf16.msra.mxu0 %v2705
    %2745 = vmatmul.bf16.gmra.mxu0 %v2640
    %v2746 = vpop.f32.mrf.mxu0
    %v2747 = vadd.f32 0.0, %v2746
    %v2748 = vpop.f32.mrf.mxu0
    %2749 = vdwg.mxu0
    %2750 = vmatpush.bf16.msra.mxu0 %v2720
    %2751 = vmatpush.bf16.msra.mxu0 %v2718
    %2752 = vmatpush.bf16.msra.mxu0 %v2716
    %2753 = vmatpush.bf16.msra.mxu0 %v2714
    %2754 = vmatpush.bf16.msra.mxu0 %v2712
    %2755 = vmatpush.bf16.msra.mxu0 %v2710
    %2756 = vmatpush.bf16.msra.mxu0 %v2708
    %2757 = vmatpush.bf16.msra.mxu0 %v2706
    %2758 = vmatmul.bf16.gmra.mxu0 %v2640
    %v2759 = vpop.f32.mrf.mxu0
    %v2760 = vadd.f32 0.0, %v2759
    %v2761 = vpop.f32.mrf.mxu0
    %2762 = vdwg.mxu0
    %v2779 = vunpack.c.l.b16 %v2623
    %v2780 = vunpack.c.h.b16 %v2623
    %v2781 = vunpack.c.l.b16 %v2624
    %v2782 = vunpack.c.h.b16 %v2624
    %v2783 = vunpack.c.l.b16 %v2625
    %v2784 = vunpack.c.h.b16 %v2625
    %v2785 = vunpack.c.l.b16 %v2626
    %v2786 = vunpack.c.h.b16 %v2626
    %v2787 = vunpack.c.l.b16 %v2627
    %v2788 = vunpack.c.h.b16 %v2627
    %v2789 = vunpack.c.l.b16 %v2628
    %v2790 = vunpack.c.h.b16 %v2628
    %v2791 = vunpack.c.l.b16 %v2629
    %v2792 = vunpack.c.h.b16 %v2629
    %v2793 = vunpack.c.l.b16 %v2630
    %v2794 = vunpack.c.h.b16 %v2630
    %v2795 = vunpack.c.l.b16 %v2631
    %v2796 = vunpack.c.h.b16 %v2631
    %v2797 = vunpack.c.l.b16 %v2632
    %v2798 = vunpack.c.h.b16 %v2632
    %v2799 = vunpack.c.l.b16 %v2633
    %v2800 = vunpack.c.h.b16 %v2633
    %v2801 = vunpack.c.l.b16 %v2634
    %v2802 = vunpack.c.h.b16 %v2634
    %v2803 = vunpack.c.l.b16 %v2635
    %v2804 = vunpack.c.h.b16 %v2635
    %v2805 = vunpack.c.l.b16 %v2636
    %v2806 = vunpack.c.h.b16 %v2636
    %v2807 = vunpack.c.l.b16 %v2637
    %v2808 = vunpack.c.h.b16 %v2637
    %v2809 = vunpack.c.l.b16 %v2638
    %v2810 = vunpack.c.h.b16 %v2638
    %v2811 = vpack.c.b16 %v2781, %v2779
    %v2812 = vpack.c.b16 %v2782, %v2780
    %v2813 = vpack.c.b16 %v2785, %v2783
    %v2814 = vpack.c.b16 %v2786, %v2784
    %v2815 = vpack.c.b16 %v2789, %v2787
    %v2816 = vpack.c.b16 %v2790, %v2788
    %v2817 = vpack.c.b16 %v2793, %v2791
    %v2818 = vpack.c.b16 %v2794, %v2792
    %v2819 = vpack.c.b16 %v2797, %v2795
    %v2820 = vpack.c.b16 %v2798, %v2796
    %v2821 = vpack.c.b16 %v2801, %v2799
    %v2822 = vpack.c.b16 %v2802, %v2800
    %v2823 = vpack.c.b16 %v2805, %v2803
    %v2824 = vpack.c.b16 %v2806, %v2804
    %v2825 = vpack.c.b16 %v2809, %v2807
    %v2826 = vpack.c.b16 %v2810, %v2808
    %2843 = vmatpush.bf16.msra.mxu0 %v2825
    %2844 = vmatpush.bf16.msra.mxu0 %v2823
    %2845 = vmatpush.bf16.msra.mxu0 %v2821
    %2846 = vmatpush.bf16.msra.mxu0 %v2819
    %2847 = vmatpush.bf16.msra.mxu0 %v2817
    %2848 = vmatpush.bf16.msra.mxu0 %v2815
    %2849 = vmatpush.bf16.msra.mxu0 %v2813
    %2850 = vmatpush.bf16.msra.mxu0 %v2811
    %2851 = vmatmul.bf16.gmra.mxu0 %v2622
    %v2852 = vpop.f32.mrf.mxu0
    %v2853 = vadd.f32 %v2747, %v2852
    %v2854 = vpop.f32.mrf.mxu0
    %2855 = vdwg.mxu0
    %2856 = vmatpush.bf16.msra.mxu0 %v2826
    %2857 = vmatpush.bf16.msra.mxu0 %v2824
    %2858 = vmatpush.bf16.msra.mxu0 %v2822
    %2859 = vmatpush.bf16.msra.mxu0 %v2820
    %2860 = vmatpush.bf16.msra.mxu0 %v2818
    %2861 = vmatpush.bf16.msra.mxu0 %v2816
    %2862 = vmatpush.bf16.msra.mxu0 %v2814
    %2863 = vmatpush.bf16.msra.mxu0 %v2812
    %2864 = vmatmul.bf16.gmra.mxu0 %v2622
    %v2865 = vpop.f32.mrf.mxu0
    %v2866 = vadd.f32 %v2760, %v2865
    %v2867 = vpop.f32.mrf.mxu0
    %2868 = vdwg.mxu0
    %v2869 = vld [vmem:[%s1570] ss:$2 sm:$0xf]
    %v2870 = vpack.c.bf16 %v2869, %v2869
    %v2871 = vld [vmem:[%s1573] sm:$0xff]
    %v2872 = vld [vmem:[%s1573 + $0x8] sm:$0xff]
    %v2873 = vld [vmem:[%s1573 + $0x10] sm:$0xff]
    %v2874 = vld [vmem:[%s1573 + $0x18] sm:$0xff]
    %v2875 = vld [vmem:[%s1573 + $0x20] sm:$0xff]
    %v2876 = vld [vmem:[%s1573 + $0x28] sm:$0xff]
    %v2877 = vld [vmem:[%s1573 + $0x30] sm:$0xff]
    %v2878 = vld [vmem:[%s1573 + $0x38] sm:$0xff]
    %v2879 = vld [vmem:[%s1573 + $0x40] sm:$0xff]
    %v2880 = vld [vmem:[%s1573 + $0x48] sm:$0xff]
    %v2881 = vld [vmem:[%s1573 + $0x50] sm:$0xff]
    %v2882 = vld [vmem:[%s1573 + $0x58] sm:$0xff]
    %v2883 = vld [vmem:[%s1573 + $0x60] sm:$0xff]
    %v2884 = vld [vmem:[%s1573 + $0x68] sm:$0xff]
    %v2885 = vld [vmem:[%s1573 + $0x70] sm:$0xff]
    %v2886 = vld [vmem:[%s1573 + $0x78] sm:$0xff]
    %v2903 = vunpack.c.l.b16 %v2871
    %v2904 = vunpack.c.h.b16 %v2871
    %v2905 = vunpack.c.l.b16 %v2872
    %v2906 = vunpack.c.h.b16 %v2872
    %v2907 = vunpack.c.l.b16 %v2873
    %v2908 = vunpack.c.h.b16 %v2873
    %v2909 = vunpack.c.l.b16 %v2874
    %v2910 = vunpack.c.h.b16 %v2874
    %v2911 = vunpack.c.l.b16 %v2875
    %v2912 = vunpack.c.h.b16 %v2875
    %v2913 = vunpack.c.l.b16 %v2876
    %v2914 = vunpack.c.h.b16 %v2876
    %v2915 = vunpack.c.l.b16 %v2877
    %v2916 = vunpack.c.h.b16 %v2877
    %v2917 = vunpack.c.l.b16 %v2878
    %v2918 = vunpack.c.h.b16 %v2878
    %v2919 = vunpack.c.l.b16 %v2879
    %v2920 = vunpack.c.h.b16 %v2879
    %v2921 = vunpack.c.l.b16 %v2880
    %v2922 = vunpack.c.h.b16 %v2880
    %v2923 = vunpack.c.l.b16 %v2881
    %v2924 = vunpack.c.h.b16 %v2881
    %v2925 = vunpack.c.l.b16 %v2882
    %v2926 = vunpack.c.h.b16 %v2882
    %v2927 = vunpack.c.l.b16 %v2883
    %v2928 = vunpack.c.h.b16 %v2883
    %v2929 = vunpack.c.l.b16 %v2884
    %v2930 = vunpack.c.h.b16 %v2884
    %v2931 = vunpack.c.l.b16 %v2885
    %v2932 = vunpack.c.h.b16 %v2885
    %v2933 = vunpack.c.l.b16 %v2886
    %v2934 = vunpack.c.h.b16 %v2886
    %v2935 = vpack.c.b16 %v2905, %v2903
    %v2936 = vpack.c.b16 %v2906, %v2904
    %v2937 = vpack.c.b16 %v2909, %v2907
    %v2938 = vpack.c.b16 %v2910, %v2908
    %v2939 = vpack.c.b16 %v2913, %v2911
    %v2940 = vpack.c.b16 %v2914, %v2912
    %v2941 = vpack.c.b16 %v2917, %v2915
    %v2942 = vpack.c.b16 %v2918, %v2916
    %v2943 = vpack.c.b16 %v2921, %v2919
    %v2944 = vpack.c.b16 %v2922, %v2920
    %v2945 = vpack.c.b16 %v2925, %v2923
    %v2946 = vpack.c.b16 %v2926, %v2924
    %v2947 = vpack.c.b16 %v2929, %v2927
    %v2948 = vpack.c.b16 %v2930, %v2928
    %v2949 = vpack.c.b16 %v2933, %v2931
    %v2950 = vpack.c.b16 %v2934, %v2932
    %2967 = vmatpush.bf16.msra.mxu0 %v2949
    %2968 = vmatpush.bf16.msra.mxu0 %v2947
    %2969 = vmatpush.bf16.msra.mxu0 %v2945
    %2970 = vmatpush.bf16.msra.mxu0 %v2943
    %2971 = vmatpush.bf16.msra.mxu0 %v2941
    %2972 = vmatpush.bf16.msra.mxu0 %v2939
    %2973 = vmatpush.bf16.msra.mxu0 %v2937
    %2974 = vmatpush.bf16.msra.mxu0 %v2935
    %2975 = vmatmul.bf16.gmra.mxu0 %v2870
    %v2976 = vpop.f32.mrf.mxu0
    %v2977 = vadd.f32 0.0, %v2976
    %v2978 = vpop.f32.mrf.mxu0
    %2979 = vdwg.mxu0
    %2980 = vmatpush.bf16.msra.mxu0 %v2950
    %2981 = vmatpush.bf16.msra.mxu0 %v2948
    %2982 = vmatpush.bf16.msra.mxu0 %v2946
    %2983 = vmatpush.bf16.msra.mxu0 %v2944
    %2984 = vmatpush.bf16.msra.mxu0 %v2942
    %2985 = vmatpush.bf16.msra.mxu0 %v2940
    %2986 = vmatpush.bf16.msra.mxu0 %v2938
    %2987 = vmatpush.bf16.msra.mxu0 %v2936
    %2988 = vmatmul.bf16.gmra.mxu0 %v2870
    %v2989 = vpop.f32.mrf.mxu0
    %v2990 = vadd.f32 0.0, %v2989
    %v2991 = vpop.f32.mrf.mxu0
    %2992 = vdwg.mxu0
    %v2993 = vadd.f32 %v2853, %v2977
    %v2994 = vadd.f32 %v2866, %v2990
    %v2995 = vld [vmem:[#allocation18] sm:$0x3]
    %v2997 = vperm.slane %v2995, 0
    %v2998 = vperm.slane %v2995, 1
    %v3001 = vadd.f32 %v2993, %v2997
    %v3002 = vadd.f32 %v2994, %v2998
    %v3003 = vmax.f32 %v3001, 0.0
    %v3004 = vmax.f32 %v3002, 0.0
    %v3005 = vsel %vm1708, %v3003, 0.0
    %v3006 = vrot.slane %v3005, 4
    %v3007 = vadd.f32 %v3005, %v3006
    %v3008 = vrot.slane %v3007, 2
    %v3009 = vadd.f32 %v3007, %v3008
    %v3010 = vrot.slane %v3009, 1
    %v3011 = vadd.f32 %v3009, %v3010
    %v3012 = vsel %vm1708, %v3004, 0.0
    %v3013 = vrot.slane %v3012, 4
    %v3014 = vadd.f32 %v3012, %v3013
    %v3015 = vrot.slane %v3014, 2
    %v3016 = vadd.f32 %v3014, %v3015
    %v3017 = vrot.slane %v3016, 1
    %v3018 = vadd.f32 %v3016, %v3017
    %v3019 = vmul.f32 %v3011, 0.25
    %v3020 = vmul.f32 %v3018, 0.25
    %v3023 = vrot.slane %v3020, 7
    %v3024 = vsel %vm474, %v3019, %v3023
    %s3026 = scalar_lea.vmem [#allocation6], 1
    %3027 = vst.msk [vmem:[%s3026] ss:$2 sm:$0x3] %vm1733, %v3024
    %v3028 = vld [vmem:[#allocation6] sm:$0xf]
    %v3029 = vld [vmem:[%s10] sm:$0xff]
    %v3030 = vld [vmem:[%s10 + $0x8] sm:$0xff]
    %v3031 = vld [vmem:[%s10 + $0x10] sm:$0xff]
    %v3032 = vld [vmem:[%s10 + $0x18] sm:$0xff]
    %v3033 = vld [vmem:[%s10 + $0x20] sm:$0xff]
    %v3034 = vld [vmem:[%s10 + $0x28] sm:$0xff]
    %v3035 = vld [vmem:[%s10 + $0x30] sm:$0xff]
    %v3036 = vld [vmem:[%s10 + $0x38] sm:$0xff]
    %v3037 = vld [vmem:[%s10 + $0x40] sm:$0xff]
    %v3038 = vld [vmem:[%s10 + $0x48] sm:$0xff]
    %v3039 = vld [vmem:[%s10 + $0x50] sm:$0xff]
    %v3040 = vld [vmem:[%s10 + $0x58] sm:$0xff]
    %v3041 = vld [vmem:[%s10 + $0x60] sm:$0xff]
    %v3042 = vld [vmem:[%s10 + $0x68] sm:$0xff]
    %v3043 = vld [vmem:[%s10 + $0x70] sm:$0xff]
    %v3044 = vld [vmem:[%s10 + $0x78] sm:$0xff]
    %v3045 = vld [vmem:[%s10 + $0x80] sm:$0xff]
    %v3046 = vld [vmem:[%s10 + $0x88] sm:$0xff]
    %v3047 = vld [vmem:[%s10 + $0x90] sm:$0xff]
    %v3048 = vld [vmem:[%s10 + $0x98] sm:$0xff]
    %v3049 = vld [vmem:[%s10 + $0xa0] sm:$0xff]
    %v3050 = vld [vmem:[%s10 + $0xa8] sm:$0xff]
    %v3051 = vld [vmem:[%s10 + $0xb0] sm:$0xff]
    %v3052 = vld [vmem:[%s10 + $0xb8] sm:$0xff]
    %v3053 = vld [vmem:[%s10 + $0xc0] sm:$0xff]
    %v3054 = vld [vmem:[%s10 + $0xc8] sm:$0xff]
    %v3055 = vld [vmem:[%s10 + $0xd0] sm:$0xff]
    %v3056 = vld [vmem:[%s10 + $0xd8] sm:$0xff]
    %v3057 = vld [vmem:[%s10 + $0xe0] sm:$0xff]
    %v3058 = vld [vmem:[%s10 + $0xe8] sm:$0xff]
    %v3059 = vld [vmem:[%s10 + $0xf0] sm:$0xff]
    %v3060 = vld [vmem:[%s10 + $0xf8] sm:$0xff]
    %v3061 = vld [vmem:[#allocation19] sm:$0x1]
    %v3063 = vperm.slane %v3061, 0
    %3066 = vst [vmem:[#allocation1] ss:$4 sm:$0xff] %v3028
    %v3067 = vld.sshfl [vmem:[#allocation1] sm:$0xff pattern:$0x73625140]
    %v3068 = vld.sshfl [vmem:[#allocation1 + $0x8] sm:$0xff pattern:$0x73625140]
    %3071 = vmatpush.msra.mxu0 %v3044
    %3072 = vmatpush.msra.mxu0 %v3043
    %3073 = vmatpush.msra.mxu0 %v3042
    %3074 = vmatpush.msra.mxu0 %v3041
    %3075 = vmatpush.msra.mxu0 %v3040
    %3076 = vmatpush.msra.mxu0 %v3039
    %3077 = vmatpush.msra.mxu0 %v3038
    %3078 = vmatpush.msra.mxu0 %v3037
    %3079 = vmatpush.msra.mxu0 %v3036
    %3080 = vmatpush.msra.mxu0 %v3035
    %3081 = vmatpush.msra.mxu0 %v3034
    %3082 = vmatpush.msra.mxu0 %v3033
    %3083 = vmatpush.msra.mxu0 %v3032
    %3084 = vmatpush.msra.mxu0 %v3031
    %3085 = vmatpush.msra.mxu0 %v3030
    %3086 = vmatpush.msra.mxu0 %v3029
    %3087 = vmatmul.f32.gmra.mxu0 %v3067
    %v3088 = vpop.f32.mrf.mxu0
    %v3089 = vadd.f32 %v3063, %v3088
    %3090 = vdwg.mxu0
    %3091 = vmatpush.msra.mxu0 %v3060
    %3092 = vmatpush.msra.mxu0 %v3059
    %3093 = vmatpush.msra.mxu0 %v3058
    %3094 = vmatpush.msra.mxu0 %v3057
    %3095 = vmatpush.msra.mxu0 %v3056
    %3096 = vmatpush.msra.mxu0 %v3055
    %3097 = vmatpush.msra.mxu0 %v3054
    %3098 = vmatpush.msra.mxu0 %v3053
    %3099 = vmatpush.msra.mxu0 %v3052
    %3100 = vmatpush.msra.mxu0 %v3051
    %3101 = vmatpush.msra.mxu0 %v3050
    %3102 = vmatpush.msra.mxu0 %v3049
    %3103 = vmatpush.msra.mxu0 %v3048
    %3104 = vmatpush.msra.mxu0 %v3047
    %3105 = vmatpush.msra.mxu0 %v3046
    %3106 = vmatpush.msra.mxu0 %v3045
    %3107 = vmatmul.f32.gmra.mxu0 %v3068
    %v3108 = vpop.f32.mrf.mxu0
    %v3109 = vadd.f32 %v3089, %v3108
    %3110 = vdwg.mxu0
    %v3111 = vmul.f32 %v3109, %v3109
    %vm3112 = vcmask 1041408
    %v3113 = vsel %vm3112, %v3111, 0.0
    %3114 = vadd.xlane.f32.xlu0 %v3113
    %v3115 = vpop.xlane.xlu0 %3114
    %v3116 = vmax.f32 %v3115, 1e-24
    %v3117 = vrsqrt.pop %v3116
    %v3118 = vmul.f32 %v3117, %v3116
    %v3119 = vmul.f32 %v3118, %v3117
    %v3120 = vmul.f32 0.5, %v3119
    %v3121 = vsub.f32 1.5, %v3120
    %v3122 = vmul.f32 %v3117, %v3121
    %vm3123 = vweird.f32 %v3116
    %vm3124 = vweird.f32 %v3117
    %vm3125 = vmor %vm3123, %vm3124
    %v3126 = vsel %vm3125, %v3117, %v3122
    %v3127 = vmul.f32 %v3109, %v3126
    %v3128 = vld [vmem:[#allocation7] sm:$0x3]
    %v3129 = vld [vmem:[%s12] sm:$0xf]
    %v3130 = vld [vmem:[#allocation21] sm:$0x1]
    %v3132 = vperm.slane %v3130, 0
    %vm3134 = vcmask 31744
    %v3136 = vsel %vm3134, %v3128, 0
    %v3139 = vsel %vm1708, %v3129, 0
    %3141 = vmatpush.msra.mxu0 0.0
    %3142 = vmatpush.msra.mxu0 0.0
    %3143 = vmatpush.msra.mxu0 0.0
    %3144 = vmatpush.msra.mxu0 0.0
    %3145 = vmatpush.msra.mxu0 0.0
    %3146 = vmatpush.msra.mxu0 0.0
    %3147 = vmatpush.msra.mxu0 0.0
    %3148 = vmatpush.msra.mxu0 0.0
    %3149 = vmatpush.msra.mxu0 0.0
    %3150 = vmatpush.msra.mxu0 0.0
    %3151 = vmatpush.msra.mxu0 0.0
    %3152 = vmatpush.msra.mxu0 0.0
    %3153 = vmatpush.msra.mxu0 0.0
    %3154 = vmatpush.msra.mxu0 0.0
    %3155 = vmatpush.msra.mxu0 0.0
    %3156 = vmatpush.msra.mxu0 %v3139
    %3157 = vmatmul.f32.gmra.mxu0 %v3136
    %v3158 = vpop.f32.mrf.mxu0
    %v3159 = vadd.f32 %v3132, %v3158
    %3160 = vdwg.mxu0
    %v3161 = vmax.f32 %v3159, 0.0
    %v3162 = vld [vmem:[#allocation22] sm:$0xff]
    %v3163 = vld [vmem:[#allocation22 + $0x8] sm:$0xff]
    %v3164 = vld [vmem:[#allocation22 + $0x10] sm:$0xff]
    %v3165 = vld [vmem:[#allocation22 + $0x18] sm:$0xff]
    %v3166 = vld [vmem:[#allocation24] sm:$0x1]
    %v3168 = vperm.slane %v3166, 0
    %v3171 = vsel %vm338, %v3161, 0
    %3173 = vmatpush.msra.mxu0 0.0
    %3174 = vmatpush.msra.mxu0 0.0
    %3175 = vmatpush.msra.mxu0 0.0
    %3176 = vmatpush.msra.mxu0 0.0
    %3177 = vmatpush.msra.mxu0 0.0
    %3178 = vmatpush.msra.mxu0 0.0
    %3179 = vmatpush.msra.mxu0 0.0
    %3180 = vmatpush.msra.mxu0 0.0
    %3181 = vmatpush.msra.mxu0 0.0
    %3182 = vmatpush.msra.mxu0 0.0
    %3183 = vmatpush.msra.mxu0 0.0
    %3184 = vmatpush.msra.mxu0 0.0
    %3185 = vmatpush.msra.mxu0 %v3165
    %3186 = vmatpush.msra.mxu0 %v3164
    %3187 = vmatpush.msra.mxu0 %v3163
    %3188 = vmatpush.msra.mxu0 %v3162
    %3189 = vmatmul.f32.gmra.mxu0 %v3171
    %v3190 = vpop.f32.mrf.mxu0
    %v3191 = vadd.f32 %v3168, %v3190
    %3192 = vdwg.mxu0
    %v3193 = vmax.f32 %v3191, 0.0
    %v3194 = vld [vmem:[#allocation25] sm:$0xff]
    %v3195 = vld [vmem:[#allocation25 + $0x8] sm:$0xff]
    %v3196 = vld [vmem:[#allocation25 + $0x10] sm:$0xff]
    %v3197 = vld [vmem:[#allocation25 + $0x18] sm:$0xff]
    %v3198 = vld [vmem:[#allocation25 + $0x20] sm:$0xff]
    %v3199 = vld [vmem:[#allocation25 + $0x28] sm:$0xff]
    %v3200 = vld [vmem:[#allocation25 + $0x30] sm:$0xff]
    %v3201 = vld [vmem:[#allocation25 + $0x38] sm:$0xff]
    %v3202 = vld [vmem:[#allocation25 + $0x40] sm:$0xff]
    %v3203 = vld [vmem:[#allocation25 + $0x48] sm:$0xff]
    %v3204 = vld [vmem:[#allocation25 + $0x50] sm:$0xff]
    %v3205 = vld [vmem:[#allocation25 + $0x58] sm:$0xff]
    %v3206 = vld [vmem:[#allocation25 + $0x60] sm:$0xff]
    %v3207 = vld [vmem:[#allocation25 + $0x68] sm:$0xff]
    %v3208 = vld [vmem:[#allocation25 + $0x70] sm:$0xff]
    %v3209 = vld [vmem:[#allocation25 + $0x78] sm:$0xff]
    %v3210 = vld [vmem:[#allocation27] sm:$0xff]
    %v3211 = vld [vmem:[#allocation27 + $0x8] sm:$0xff]
    %v3212 = vld [vmem:[#allocation27 + $0x10] sm:$0xff]
    %v3213 = vld [vmem:[#allocation27 + $0x18] sm:$0xff]
    %v3215 = vsel %vm338, %v3193, 0
    %3217 = vmatpush.msra.mxu0 0.0
    %3218 = vmatpush.msra.mxu0 0.0
    %3219 = vmatpush.msra.mxu0 0.0
    %3220 = vmatpush.msra.mxu0 0.0
    %3221 = vmatpush.msra.mxu0 0.0
    %3222 = vmatpush.msra.mxu0 0.0
    %3223 = vmatpush.msra.mxu0 0.0
    %3224 = vmatpush.msra.mxu0 0.0
    %3225 = vmatpush.msra.mxu0 0.0
    %3226 = vmatpush.msra.mxu0 0.0
    %3227 = vmatpush.msra.mxu0 0.0
    %3228 = vmatpush.msra.mxu0 0.0
    %3229 = vmatpush.msra.mxu0 %v3213
    %3230 = vmatpush.msra.mxu0 %v3212
    %3231 = vmatpush.msra.mxu0 %v3211
    %3232 = vmatpush.msra.mxu0 %v3210
    %3233 = vmatmul.f32.gmra.mxu0 %v3215
    %v3234 = vpop.f32.mrf.mxu0
    %v3235 = vadd.f32 0.0, %v3234
    %3236 = vdwg.mxu0
    %3237 = vmatpush.msra.mxu0 %v3209
    %3238 = vmatpush.msra.mxu0 %v3208
    %3239 = vmatpush.msra.mxu0 %v3207
    %3240 = vmatpush.msra.mxu0 %v3206
    %3241 = vmatpush.msra.mxu0 %v3205
    %3242 = vmatpush.msra.mxu0 %v3204
    %3243 = vmatpush.msra.mxu0 %v3203
    %3244 = vmatpush.msra.mxu0 %v3202
    %3245 = vmatpush.msra.mxu0 %v3201
    %3246 = vmatpush.msra.mxu0 %v3200
    %3247 = vmatpush.msra.mxu0 %v3199
    %3248 = vmatpush.msra.mxu0 %v3198
    %3249 = vmatpush.msra.mxu0 %v3197
    %3250 = vmatpush.msra.mxu0 %v3196
    %3251 = vmatpush.msra.mxu0 %v3195
    %3252 = vmatpush.msra.mxu0 %v3194
    %3253 = vmatmul.f32.gmra.mxu0 %v3127
    %v3254 = vpop.f32.mrf.mxu0
    %v3255 = vadd.f32 %v3235, %v3254
    %3256 = vdwg.mxu0
    %v3257 = vld [vmem:[#allocation28] sm:$0x1]
    %v3259 = vperm.slane %v3257, 0
    %v3261 = vadd.f32 %v3255, %v3259
    %v3262 = vmax.f32 %v3261, 0.0
    %v3263 = vld [vmem:[%s19] sm:$0xff]
    %v3264 = vld [vmem:[%s19 + $0x8] sm:$0xff]
    %v3265 = vld [vmem:[%s19 + $0x10] sm:$0xff]
    %v3266 = vld [vmem:[%s19 + $0x18] sm:$0xff]
    %v3267 = vld [vmem:[%s19 + $0x20] sm:$0xff]
    %v3268 = vld [vmem:[%s19 + $0x28] sm:$0xff]
    %v3269 = vld [vmem:[%s19 + $0x30] sm:$0xff]
    %v3270 = vld [vmem:[%s19 + $0x38] sm:$0xff]
    %v3271 = vld [vmem:[%s19 + $0x40] sm:$0xff]
    %v3272 = vld [vmem:[%s19 + $0x48] sm:$0xff]
    %v3273 = vld [vmem:[%s19 + $0x50] sm:$0xff]
    %v3274 = vld [vmem:[%s19 + $0x58] sm:$0xff]
    %v3275 = vld [vmem:[%s19 + $0x60] sm:$0xff]
    %v3276 = vld [vmem:[%s19 + $0x68] sm:$0xff]
    %v3277 = vld [vmem:[%s19 + $0x70] sm:$0xff]
    %v3278 = vld [vmem:[%s19 + $0x78] sm:$0xff]
    %v3279 = vld [vmem:[#allocation30] sm:$0x1]
    %v3281 = vperm.slane %v3279, 0
    %3283 = vmatpush.msra.mxu0 %v3278
    %3284 = vmatpush.msra.mxu0 %v3277
    %3285 = vmatpush.msra.mxu0 %v3276
    %3286 = vmatpush.msra.mxu0 %v3275
    %3287 = vmatpush.msra.mxu0 %v3274
    %3288 = vmatpush.msra.mxu0 %v3273
    %3289 = vmatpush.msra.mxu0 %v3272
    %3290 = vmatpush.msra.mxu0 %v3271
    %3291 = vmatpush.msra.mxu0 %v3270
    %3292 = vmatpush.msra.mxu0 %v3269
    %3293 = vmatpush.msra.mxu0 %v3268
    %3294 = vmatpush.msra.mxu0 %v3267
    %3295 = vmatpush.msra.mxu0 %v3266
    %3296 = vmatpush.msra.mxu0 %v3265
    %3297 = vmatpush.msra.mxu0 %v3264
    %3298 = vmatpush.msra.mxu0 %v3263
    %3299 = vmatmul.f32.gmra.mxu0 %v3262
    %v3300 = vpop.f32.mrf.mxu0
    %v3301 = vadd.f32 %v3281, %v3300
    %3302 = vdwg.mxu0
    %v3303 = vmax.f32 %v3301, 0.0
    %v3304 = vld [vmem:[%s21] sm:$0xff]
    %v3305 = vld [vmem:[%s21 + $0x8] sm:$0xff]
    %v3306 = vld [vmem:[%s21 + $0x10] sm:$0xff]
    %v3307 = vld [vmem:[%s21 + $0x18] sm:$0xff]
    %v3308 = vld [vmem:[%s21 + $0x20] sm:$0xff]
    %v3309 = vld [vmem:[%s21 + $0x28] sm:$0xff]
    %v3310 = vld [vmem:[%s21 + $0x30] sm:$0xff]
    %v3311 = vld [vmem:[%s21 + $0x38] sm:$0xff]
    %v3312 = vld [vmem:[#allocation31] sm:$0x1]
    %v3314 = vperm.slane %v3312, 0
    %v3317 = vsel %vm349, %v3303, 0
    %3319 = vmatpush.msra.mxu0 0.0
    %3320 = vmatpush.msra.mxu0 0.0
    %3321 = vmatpush.msra.mxu0 0.0
    %3322 = vmatpush.msra.mxu0 0.0
    %3323 = vmatpush.msra.mxu0 0.0
    %3324 = vmatpush.msra.mxu0 0.0
    %3325 = vmatpush.msra.mxu0 0.0
    %3326 = vmatpush.msra.mxu0 0.0
    %3327 = vmatpush.msra.mxu0 %v3311
    %3328 = vmatpush.msra.mxu0 %v3310
    %3329 = vmatpush.msra.mxu0 %v3309
    %3330 = vmatpush.msra.mxu0 %v3308
    %3331 = vmatpush.msra.mxu0 %v3307
    %3332 = vmatpush.msra.mxu0 %v3306
    %3333 = vmatpush.msra.mxu0 %v3305
    %3334 = vmatpush.msra.mxu0 %v3304
    %3335 = vmatmul.f32.gmra.mxu0 %v3317
    %v3336 = vpop.f32.mrf.mxu0
    %v3337 = vadd.f32 %v3314, %v3336
    %3338 = vdwg.mxu0
    %vm3339 = vcmask 9216
    %3340 = vst.msk [vmem:[#allocation33] sm:$0x3] %vm3339, %v3337
    // Predicated region
    $region158: #{end2end_forward.1} parent=1 // pred_check
      _
    $region159: #{end2end_forward.1} parent=1 // pred_check_branch
      %3342 = sbr.rel (0) target = $region161
    $region160: #{end2end_forward.1} parent=1 // pred_region
      %3344 = vsyncadd [#allocation9], 0
      %s3346 = sshll.u32 [#allocation33], 4
      %s3347 = int_to_ptr.vmem [resolvable:$true] %s3346
      %s3348 = sshll.u32 %s23, 4
      %s3349 = int_to_ptr.hbm [resolvable:$true] %s3348
      %3351 = dma.vmem_to_hbm [thread:$0]  %s3347, 32, %s3349, [#allocation9]
    $region161: #{end2end_forward.1} parent=1 // pred_fallthru
      _
    // Predicated region
    $region162: #{end2end_forward.1} parent=1 // pred_check
      _
    $region163: #{end2end_forward.1} parent=1 // pred_check_branch
      %3353 = sbr.rel (0) target = $region165
    $region164: #{end2end_forward.1} parent=1 // pred_region
      %3355 = dma.done [#allocation9], 32
    $region165: #{end2end_forward.1} parent=1 // pred_fallthru
      _
    %3356 = vsyncpa [#allocation8], 1
    %3357 = vsyncpa [#allocation11], 1
    %3358 = vsyncpa [#allocation14], 1
    %3359 = vsyncpa [#allocation17], 1
    %3360 = vsyncpa [#allocation20], 1
    %3361 = vsyncpa [#allocation23], 1
    %3362 = vsyncpa [#allocation26], 1
    %3363 = vsyncpa [#allocation29], 1
    %3364 = vsyncpa [#allocation32], 1
    %3365 = vsyncpa [#allocation9], 1

</llo_original>
